<compile_context>
chip_gen: v7x
topology: tpu7x:2x2x1
jax: 0.10.0
libtpu: 0.0.40
codegen_flags: <defaults>
</compile_context>

<pallas_src>
import functools
import math

import jax
import jax.numpy as jnp
from jax.experimental import pallas as pl
from jax.experimental.pallas import tpu as pltpu

EPS = 1e-5  # torch.nn.LayerNorm default


# ------------------------------- helpers -------------------------------------

def _vmem_capacity_bytes():
    cap = 64 << 20  # conservative fallback (v7x per-core physical VMEM)
    try:
        info = pltpu.get_tpu_info()
        cap = int(getattr(info, "vmem_capacity_bytes", cap))
    except Exception:
        pass
    return cap


def _default_row_block():
    # 128-MiB-VMEM chips (v5e/v6e) take 512-row tiles comfortably; v7x (64 MiB)
    # stays at 256.
    return 512 if _vmem_capacity_bytes() >= (96 << 20) else 256


_BUF1_STATE = None


def _weights_single_buffered():
    """True iff this build accepts pl.Buffered(1) on an invariant BlockSpec."""
    global _BUF1_STATE
    if _BUF1_STATE is not None:
        return _BUF1_STATE
    ok = False
    if hasattr(pl, "Buffered"):
        try:
            cspec = pl.BlockSpec((8, 128), lambda i: (0, 0),
                                 pipeline_mode=pl.Buffered(1))

            def _k(c_ref, x_ref, o_ref):
                o_ref[...] = x_ref[...] + c_ref[...]

            f = pl.pallas_call(
                _k,
                out_shape=jax.ShapeDtypeStruct((16, 128), jnp.float32),
                grid=(2,),
                in_specs=[cspec, pl.BlockSpec((8, 128), lambda i: (i, 0))],
                out_specs=pl.BlockSpec((8, 128), lambda i: (i, 0)))
            # AOT lower+compile: exercises both the Pallas->Mosaic and the
            # Mosaic backend stages without touching any live trace.
            jax.jit(f).lower(
                jax.ShapeDtypeStruct((8, 128), jnp.float32),
                jax.ShapeDtypeStruct((16, 128), jnp.float32)).compile()
            ok = True
        except Exception:
            ok = False
    _BUF1_STATE = ok
    return ok


def _const_spec(block_shape):
    """BlockSpec for a grid-invariant (weight/bias) block, single-buffered when
    the build supports it (it is DMA'd once; double-buffering only wastes VMEM)."""
    imap = lambda *_: (0,) * len(block_shape)
    if _weights_single_buffered():
        return pl.BlockSpec(block_shape, imap, pipeline_mode=pl.Buffered(1))
    return pl.BlockSpec(block_shape, imap)


def _cparams(dim_sem, streamed, resident, temps):
    """CompilerParams with a generation-aware VMEM budget.

    streamed: (shape, dtype) blocks that change per grid step (double-buffered).
    resident: grid-invariant weight/bias blocks (counted once if Buffered(1)).
    temps:    in-kernel f32 temporaries (scores, hidden activations, scratch).
    """
    def nbytes(shape, dtype):
        return math.prod(shape) * jnp.dtype(dtype).itemsize

    res_mult = 1 if _weights_single_buffered() else 2
    need = (sum(2 * nbytes(*b) for b in streamed)
            + sum(res_mult * nbytes(*b) for b in resident)
            + sum(nbytes(*b) for b in temps)
            + (4 << 20))                       # margin for compiler scratch
    cap = _vmem_capacity_bytes()
    limit = int(min(max(need, 16 << 20), cap - (8 << 20)))
    return pltpu.CompilerParams(dimension_semantics=dim_sem,
                                vmem_limit_bytes=limit)


def _row_tile(T, row_block):
    return T if T <= row_block else row_block


def _heads_per_block(n_head, dh):
    """Smallest head group whose lane width (hpb*dh) is 128-aligned."""
    for cand in (1, 2, 4, 8, 16):
        if n_head % cand == 0 and (cand * dh) % 128 == 0:
            return cand
    return n_head  # fall back: all heads per step (block = full D lane width)


def _layernorm_f32(x, g, b):
    """LayerNorm over the last dim in float32 (CLIP LayerNorm upcasts)."""
    mu = jnp.mean(x, axis=-1, keepdims=True)
    var = jnp.mean(jnp.square(x - mu), axis=-1, keepdims=True)
    return (x - mu) * jax.lax.rsqrt(var + EPS) * g + b


# ----------------------------- Pallas kernels ---------------------------------

def _ln_qkv_kernel(x_ref, g_ref, b_ref, w_ref, bias_ref, o_ref, *,
                   compute_dtype):
    """o[0|1|2] = LayerNorm(x) @ W[:, q|k|v] + b   (fused ln_1 + in_proj)."""
    x = x_ref[...].astype(jnp.float32)
    h = _layernorm_f32(x, g_ref[...].astype(jnp.float32),
                       b_ref[...].astype(jnp.float32))
    acc = jnp.dot(h.astype(compute_dtype), w_ref[...],
                  preferred_element_type=jnp.float32)
    acc = acc + bias_ref[...].astype(jnp.float32)
    D = x_ref.shape[1]
    qkv = acc.astype(o_ref.dtype)
    o_ref[0] = qkv[:, :D]
    o_ref[1] = qkv[:, D:2 * D]
    o_ref[2] = qkv[:, 2 * D:3 * D]


def _attn_proj_kernel(qkv_ref, res_ref, wo_ref, bo_ref, o_ref, acc_ref, *,
                      heads_per_blk, dh, scale, compute_dtype):
    """Fused multi-head attention + out_proj + residual, accumulated over head
    blocks.  Per grid step: a 128-lane-aligned head group of q/k/v (block
    (3, 1, L, P)) and the matching P-row slice of Wo; acc += pair @ Wo_slice.
    The 1/sqrt(dh) scale is applied to the f32 scores."""
    hblk = pl.program_id(1)

    @pl.when(hblk == 0)
    def _():
        acc_ref[...] = (res_ref[0].astype(jnp.float32)
                        + bo_ref[...].astype(jnp.float32))

    outs = []
    for j in range(heads_per_blk):              # static unroll (keeps MXU full)
        q = qkv_ref[0, 0, :, j * dh:(j + 1) * dh]
        k = qkv_ref[1, 0, :, j * dh:(j + 1) * dh]
        v = qkv_ref[2, 0, :, j * dh:(j + 1) * dh]
        s = jax.lax.dot_general(q, k, (((1,), (1,)), ((), ())),
                                preferred_element_type=jnp.float32) * scale
        s = s - jnp.max(s, axis=-1, keepdims=True)
        p = jnp.exp(s)
        # approx reciprocal ~1e-3 rel err: fine for inference; use exact divide
        # for training-grade parity.
        p = p * pl.reciprocal(jnp.sum(p, axis=-1, keepdims=True), approx=True)
        outs.append(jnp.dot(p.astype(compute_dtype), v,
                            preferred_element_type=jnp.float32))
    pair = outs[0] if heads_per_blk == 1 else jnp.concatenate(outs, axis=-1)
    acc_ref[...] += jnp.dot(pair.astype(compute_dtype), wo_ref[...],
                            preferred_element_type=jnp.float32)

    @pl.when(hblk == pl.num_programs(1) - 1)
    def _():
        o_ref[0] = acc_ref[...].astype(o_ref.dtype)


def _ln_mlp_residual_kernel(x_ref, g_ref, b_ref, w1_ref, b1_ref, w2_ref,
                            b2_ref, o_ref, *, compute_dtype):
    """out = x + c_proj(QuickGELU(c_fc(LayerNorm(x)))); hidden stays in VMEM."""
    x = x_ref[...].astype(jnp.float32)
    h = _layernorm_f32(x, g_ref[...].astype(jnp.float32),
                       b_ref[...].astype(jnp.float32))
    h1 = jnp.dot(h.astype(compute_dtype), w1_ref[...],
                 preferred_element_type=jnp.float32)
    h1 = h1 + b1_ref[...].astype(jnp.float32)
    h1 = h1 * jax.nn.sigmoid(1.702 * h1)                   # QuickGELU
    h2 = jnp.dot(h1.astype(compute_dtype), w2_ref[...],
                 preferred_element_type=jnp.float32)
    h2 = h2 + b2_ref[...].astype(jnp.float32)
    o_ref[...] = (x + h2).astype(o_ref.dtype)


# -------------------------------- wrappers ------------------------------------

def _maybe_cast(w, dtype):
    # no-op when params were prepared with prepare_params (cast once, offline)
    return w if w.dtype == dtype else w.astype(dtype)


def ln_qkv(x2d, gamma, beta, w_t, bias, *, row_block, compute_dtype):
    T, D = x2d.shape
    DO = w_t.shape[1]                       # 3*D
    tm = _row_tile(T, row_block)
    w = _maybe_cast(w_t, compute_dtype)
    qkv_dtype = compute_dtype               # bf16 intermediate halves HBM traffic
    streamed = [((tm, D), x2d.dtype), ((3, tm, D), qkv_dtype)]
    resident = [((1, D), gamma.dtype), ((1, D), beta.dtype),
                ((D, DO), w.dtype), ((1, DO), bias.dtype)]
    temps = [((tm, D), jnp.float32)] * 2 + [((tm, DO), jnp.float32)]
    return pl.pallas_call(
        functools.partial(_ln_qkv_kernel, compute_dtype=compute_dtype),
        out_shape=jax.ShapeDtypeStruct((3, T, D), qkv_dtype),
        grid=(pl.cdiv(T, tm),),
        in_specs=[pl.BlockSpec((tm, D), lambda i: (i, 0)),
                  _const_spec((1, D)),
                  _const_spec((1, D)),
                  _const_spec((D, DO)),
                  _const_spec((1, DO))],
        out_specs=pl.BlockSpec((3, tm, D), lambda i: (0, i, 0)),
        compiler_params=_cparams(("parallel",), streamed, resident, temps),
    )(x2d, gamma.reshape(1, D), beta.reshape(1, D), w, bias.reshape(1, DO))


def attention_out_proj(qkv3, res3, wo_t, bo, *, n_head, compute_dtype):
    """qkv3: (3, N, L, D); res3: (N, L, D) residual.  Returns x + attn@Wo + b."""
    _, N, L, D = qkv3.shape
    dh = D // n_head
    hpb = _heads_per_block(n_head, dh)
    P = hpb * dh
    wo = _maybe_cast(wo_t, compute_dtype)
    streamed = [((3, 1, L, P), qkv3.dtype), ((P, D), wo.dtype),
                ((1, L, D), res3.dtype), ((1, L, D), res3.dtype)]
    resident = [((1, D), bo.dtype)]
    temps = ([((L, D), jnp.float32)]                    # accumulator scratch
             + [((L, L), jnp.float32)] * hpb            # per-head scores
             + [((L, P), jnp.float32)] * 2)             # head-group outputs
    return pl.pallas_call(
        functools.partial(_attn_proj_kernel, heads_per_blk=hpb, dh=dh,
                          scale=1.0 / math.sqrt(dh),
                          compute_dtype=compute_dtype),
        out_shape=jax.ShapeDtypeStruct((N, L, D), res3.dtype),
        grid=(N, n_head // hpb),
        in_specs=[pl.BlockSpec((3, 1, L, P), lambda n, h: (0, n, 0, h)),
                  pl.BlockSpec((1, L, D), lambda n, h: (n, 0, 0)),
                  pl.BlockSpec((P, D), lambda n, h: (h, 0)),
                  _const_spec((1, D))],
        out_specs=pl.BlockSpec((1, L, D), lambda n, h: (n, 0, 0)),
        scratch_shapes=[pltpu.VMEM((L, D), jnp.float32)],
        compiler_params=_cparams(("parallel", "arbitrary"),
                                 streamed, resident, temps),
    )(qkv3, res3, wo, bo.reshape(1, D))


def ln_mlp_residual(x2d, gamma, beta, w1_t, b1, w2_t, b2, *, row_block,
                    compute_dtype):
    T, D = x2d.shape
    Hdim = w1_t.shape[1]
    tm = _row_tile(T, row_block)
    w1 = _maybe_cast(w1_t, compute_dtype)
    w2 = _maybe_cast(w2_t, compute_dtype)
    streamed = [((tm, D), x2d.dtype), ((tm, D), x2d.dtype)]
    resident = [((1, D), gamma.dtype), ((1, D), beta.dtype),
                ((D, Hdim), w1.dtype), ((1, Hdim), b1.dtype),
                ((Hdim, D), w2.dtype), ((1, D), b2.dtype)]
    temps = ([((tm, D), jnp.float32)] * 2
             + [((tm, Hdim), jnp.float32)] * 2          # in-kernel 4D hidden
             + [((tm, D), jnp.float32)])
    return pl.pallas_call(
        functools.partial(_ln_mlp_residual_kernel, compute_dtype=compute_dtype),
        out_shape=jax.ShapeDtypeStruct((T, D), x2d.dtype),
        grid=(pl.cdiv(T, tm),),
        in_specs=[pl.BlockSpec((tm, D), lambda i: (i, 0)),
                  _const_spec((1, D)),
                  _const_spec((1, D)),
                  _const_spec((D, Hdim)),
                  _const_spec((1, Hdim)),
                  _const_spec((Hdim, D)),
                  _const_spec((1, D))],
        out_specs=pl.BlockSpec((tm, D), lambda i: (i, 0)),
        compiler_params=_cparams(("parallel",), streamed, resident, temps),
    )(x2d, gamma.reshape(1, D), beta.reshape(1, D), w1, b1.reshape(1, Hdim),
      w2, b2.reshape(1, D))


# ---------------------------- full forward pass --------------------------------

def prepare_params(params, compute_dtype=jnp.bfloat16):
    """Cast matmul weights to the MXU compute dtype ONCE (call outside the
    per-step forward / jit).  LayerNorm params, biases and the prompt stay f32
    (they are consumed in f32 inside the kernels)."""
    out = dict(params)
    for k in ("in_proj_w_t", "out_proj_w_t", "fc_w_t", "proj_w_t"):
        out[k] = params[k].astype(compute_dtype)
    return out


def residual_attention_block_ivlp(x, params, n_head, add_prompt=True,
                                  text_layer=False, row_block=None,
                                  compute_dtype=jnp.bfloat16):
    """x: (L, N, D) sequence-first, like PyTorch nn.MultiheadAttention."""
    L, N, D = x.shape
    if row_block is None:
        row_block = _default_row_block()

    if add_prompt and not text_layer:
        # VPT_shallow visual prompt replaces the trailing n_ctx tokens.
        # Reference code does .half() on the prompt; emulate the fp16
        # truncation before concatenation.
        ctx = params["vpt"].astype(jnp.float16).astype(x.dtype)
        n_ctx = ctx.shape[0]
        visual_context = jnp.broadcast_to(ctx[:, None, :], (n_ctx, N, D))
        x = jnp.concatenate([x[: L - n_ctx], visual_context], axis=0)
        L = x.shape[0]
    # TODO(synk): text_layer / topk prompt-insertion branches and
    # attn_mask / visual_mask support are pure slicing/masking glue and are
    # omitted in this visual-layer configuration.

    T = N * L
    # Batch-first internally; these are the only transposes in the block.
    x2d = jnp.transpose(x, (1, 0, 2)).reshape(T, D)

    # 1. ln_1 + QKV projection -> (3, T, D) in compute dtype.
    qkv = ln_qkv(x2d, params["ln1_g"], params["ln1_b"],
                 params["in_proj_w_t"], params["in_proj_b"],
                 row_block=row_block, compute_dtype=compute_dtype)
    # 2. multi-head attention fused with out_proj + residual (free reshapes).
    x1 = attention_out_proj(qkv.reshape(3, N, L, D), x2d.reshape(N, L, D),
                            params["out_proj_w_t"], params["out_proj_b"],
                            n_head=n_head, compute_dtype=compute_dtype)
    # 3. ln_2 + MLP + residual (the 4D hidden never leaves VMEM).
    out = ln_mlp_residual(x1.reshape(T, D), params["ln2_g"], params["ln2_b"],
                          params["fc_w_t"], params["fc_b"],
                          params["proj_w_t"], params["proj_b"],
                          row_block=row_block, compute_dtype=compute_dtype)

    return jnp.transpose(out.reshape(N, L, D), (1, 0, 2))


# --------------------------- pure-JAX reference ---------------------------------

def reference_forward(x, params, n_head, add_prompt=True, text_layer=False):
    hp = jax.lax.Precision.HIGHEST
    L, N, D = x.shape
    if add_prompt and not text_layer:
        ctx = params["vpt"].astype(jnp.float16).astype(x.dtype)
        n_ctx = ctx.shape[0]
        vis = jnp.broadcast_to(ctx[:, None, :], (n_ctx, N, D))
        x = jnp.concatenate([x[: L - n_ctx], vis], axis=0)
        L = x.shape[0]
    dh = D // n_head

    def ln(v, g, b):
        v = v.astype(jnp.float32)
        mu = v.mean(-1, keepdims=True)
        var = ((v - mu) ** 2).mean(-1, keepdims=True)
        return (v - mu) / jnp.sqrt(var + EPS) * g + b

    h = ln(x, params["ln1_g"], params["ln1_b"])
    qkv = jnp.einsum("lnd,de->lne", h, params["in_proj_w_t"],
                     precision=hp) + params["in_proj_b"]
    q, k, v = jnp.split(qkv, 3, axis=-1)
    q = q * (1.0 / math.sqrt(dh))

    def heads(t):
        return t.reshape(L, N, n_head, dh).transpose(1, 2, 0, 3)

    s = jnp.einsum("nhld,nhmd->nhlm", heads(q), heads(k), precision=hp)
    p = jax.nn.softmax(s, axis=-1)
    o = jnp.einsum("nhlm,nhmd->nhld", p, heads(v), precision=hp)
    o = o.transpose(2, 0, 1, 3).reshape(L, N, D)
    x = x + jnp.einsum("lnd,de->lne", o, params["out_proj_w_t"],
                       precision=hp) + params["out_proj_b"]
    h2 = ln(x, params["ln2_g"], params["ln2_b"])
    m = jnp.einsum("lnd,dh->lnh", h2, params["fc_w_t"],
                   precision=hp) + params["fc_b"]
    m = m * jax.nn.sigmoid(1.702 * m)
    m = jnp.einsum("lnh,hd->lnd", m, params["proj_w_t"],
                   precision=hp) + params["proj_b"]
    return x + m


# -------------------------------- parameters ------------------------------------

def init_params(key, d_model, n_ctx_visual):
    ks = jax.random.split(key, 9)
    std = 0.02
    p = {
        "ln1_g": jnp.ones((d_model,), jnp.float32),
        "ln1_b": jnp.zeros((d_model,), jnp.float32),
        "ln2_g": jnp.ones((d_model,), jnp.float32),
        "ln2_b": jnp.zeros((d_model,), jnp.float32),
        # nn.MultiheadAttention: in_proj_weight (3D, D) -> stored transposed
        "in_proj_w_t": (jax.random.normal(ks[0], (3 * d_model, d_model)) * std).T,
        "in_proj_b": jax.random.normal(ks[1], (3 * d_model,)) * std,
        "out_proj_w_t": (jax.random.normal(ks[2], (d_model, d_model)) * std).T,
        "out_proj_b": jax.random.normal(ks[3], (d_model,)) * std,
        # mlp.c_fc (4D, D), mlp.c_proj (D, 4D) -> stored transposed
        "fc_w_t": (jax.random.normal(ks[4], (4 * d_model, d_model)) * std).T,
        "fc_b": jax.random.normal(ks[5], (4 * d_model,)) * std,
        "proj_w_t": (jax.random.normal(ks[6], (d_model, 4 * d_model)) * std).T,
        "proj_b": jax.random.normal(ks[7], (d_model,)) * std,
        # VPT_shallow: nn.init.normal_(ctx_vectors, std=0.02)
        "vpt": jax.random.normal(ks[8], (n_ctx_visual, d_model)) * std,
    }
    return jax.tree_util.tree_map(lambda a: a.astype(jnp.float32), p)


if __name__ == "__main__":
    # Small shapes, but D=128 / dh=64 so the 128-lane head-pair path and the
    # row-tiled pipeline (row_block=16, grid of 2) are exercised.
    L, N, D, H = 16, 2, 128, 2          # seq, batch, d_model, n_head
    n_ctx_visual = 4

    key = jax.random.PRNGKey(0)
    kx, kp = jax.random.split(key)
    x = jax.random.normal(kx, (L, N, D), dtype=jnp.float32)
    params = init_params(kp, D, n_ctx_visual)

    compute_dtype = jnp.bfloat16
    run_params = prepare_params(params, compute_dtype)   # weights cast once

    _ = _weights_single_buffered()                        # probe before jit

    fwd = jax.jit(functools.partial(residual_attention_block_ivlp, n_head=H,
                                    add_prompt=True, text_layer=False,
                                    row_block=16, compute_dtype=compute_dtype))
    out = jax.block_until_ready(fwd(x, run_params))
    assert out.shape == (L, N, D), out.shape
    assert bool(jnp.all(jnp.isfinite(out)))

    ref = jax.block_until_ready(
        reference_forward(x, params, H, add_prompt=True, text_layer=False))
    err = float(jnp.max(jnp.abs(out.astype(jnp.float32) - ref)))
    tol = 2e-2 if compute_dtype == jnp.float32 else 6e-2
    assert err < tol, f"max abs err vs reference: {err}"
    print("KERNEL_OK")
</pallas_src>

<mosaic_0001>
module attributes {stable_mosaic.version = 11 : i64} {
  func.func @_ln_qkv_kernel(%arg0: i32, %arg1: memref<16x128xf32, #tpu.memory_space<vmem>>, %arg2: memref<1x128xf32, #tpu.memory_space<vmem>>, %arg3: memref<1x128xf32, #tpu.memory_space<vmem>>, %arg4: memref<128x384xbf16, #tpu.memory_space<vmem>>, %arg5: memref<1x384xf32, #tpu.memory_space<vmem>>, %arg6: memref<3x16x128xbf16, #tpu.memory_space<vmem>>) attributes {dimension_semantics = [#tpu.dimension_semantics<parallel>], iteration_bounds = array<i64: 2>, scalar_prefetch = 0 : i64, scratch_operands = 0 : i64, tpu.core_type = #tpu.core_type<tc>, window_params = [{transform_indices = @transform_0, window_bounds = array<i64: 16, 128>}, {pipeline_mode = #tpu.pipeline_mode<synchronous>, transform_indices = @transform_1, window_bounds = array<i64: 1, 128>}, {pipeline_mode = #tpu.pipeline_mode<synchronous>, transform_indices = @transform_2, window_bounds = array<i64: 1, 128>}, {pipeline_mode = #tpu.pipeline_mode<synchronous>, transform_indices = @transform_3, window_bounds = array<i64: 128, 384>}, {pipeline_mode = #tpu.pipeline_mode<synchronous>, transform_indices = @transform_4, window_bounds = array<i64: 1, 384>}, {transform_indices = @transform_5, window_bounds = array<i64: 3, 16, 128>}]} {
    %c0 = arith.constant 0 : index
    %c0_0 = arith.constant 0 : index
    %0 = vector.load %arg1[%c0, %c0_0] : memref<16x128xf32, #tpu.memory_space<vmem>>, vector<16x128xf32>
    %c0_1 = arith.constant 0 : index
    %c0_2 = arith.constant 0 : index
    %1 = vector.load %arg2[%c0_1, %c0_2] : memref<1x128xf32, #tpu.memory_space<vmem>>, vector<1x128xf32>
    %c0_3 = arith.constant 0 : index
    %c0_4 = arith.constant 0 : index
    %2 = vector.load %arg3[%c0_3, %c0_4] : memref<1x128xf32, #tpu.memory_space<vmem>>, vector<1x128xf32>
    %cst = arith.constant dense<0.000000e+00> : vector<16xf32>
    %3 = vector.multi_reduction <add>, %0, %cst [1] : vector<16x128xf32> to vector<16xf32>
    %4 = vector.shape_cast %3 : vector<16xf32> to vector<16x1xf32>
    %cst_5 = arith.constant 1.280000e+02 : f32
    %5 = vector.broadcast %cst_5 : f32 to vector<16x1xf32>
    %6 = arith.divf %4, %5 : vector<16x1xf32>
    %7 = vector.broadcast %6 : vector<16x1xf32> to vector<16x128xf32>
    %8 = arith.subf %0, %7 : vector<16x128xf32>
    %9 = arith.mulf %8, %8 : vector<16x128xf32>
    %cst_6 = arith.constant dense<0.000000e+00> : vector<16xf32>
    %10 = vector.multi_reduction <add>, %9, %cst_6 [1] : vector<16x128xf32> to vector<16xf32>
    %11 = vector.shape_cast %10 : vector<16xf32> to vector<16x1xf32>
    %cst_7 = arith.constant 1.280000e+02 : f32
    %12 = vector.broadcast %cst_7 : f32 to vector<16x1xf32>
    %13 = arith.divf %11, %12 : vector<16x1xf32>
    %14 = vector.broadcast %6 : vector<16x1xf32> to vector<16x128xf32>
    %15 = arith.subf %0, %14 : vector<16x128xf32>
    %cst_8 = arith.constant 9.99999974E-6 : f32
    %16 = vector.broadcast %cst_8 : f32 to vector<16x1xf32>
    %17 = arith.addf %13, %16 : vector<16x1xf32>
    %18 = math.rsqrt %17 : vector<16x1xf32>
    %19 = vector.broadcast %18 : vector<16x1xf32> to vector<16x128xf32>
    %20 = arith.mulf %15, %19 : vector<16x128xf32>
    %21 = vector.broadcast %1 : vector<1x128xf32> to vector<16x128xf32>
    %22 = arith.mulf %20, %21 : vector<16x128xf32>
    %23 = vector.broadcast %2 : vector<1x128xf32> to vector<16x128xf32>
    %24 = arith.addf %22, %23 : vector<16x128xf32>
    %25 = arith.truncf %24 : vector<16x128xf32> to vector<16x128xbf16>
    %c0_9 = arith.constant 0 : index
    %c0_10 = arith.constant 0 : index
    %26 = vector.load %arg4[%c0_9, %c0_10] : memref<128x384xbf16, #tpu.memory_space<vmem>>, vector<128x384xbf16>
    %cst_11 = arith.constant dense<0.000000e+00> : vector<16x384xf32>
    %27 = tpu.matmul %25, %26, %cst_11 {dimension_numbers = #tpu.dot_dimension_numbers<[1], [0], [0], [1], [0, 0, 1, 1], [], []>} : vector<16x128xbf16>, vector<128x384xbf16>, vector<16x384xf32> -> vector<16x384xf32>
    %c0_12 = arith.constant 0 : index
    %c0_13 = arith.constant 0 : index
    %28 = vector.load %arg5[%c0_12, %c0_13] : memref<1x384xf32, #tpu.memory_space<vmem>>, vector<1x384xf32>
    %29 = vector.broadcast %28 : vector<1x384xf32> to vector<16x384xf32>
    %30 = arith.addf %27, %29 : vector<16x384xf32>
    %31 = arith.truncf %30 : vector<16x384xf32> to vector<16x384xbf16>
    %32 = vector.extract_strided_slice %31 {offsets = [0, 0], sizes = [16, 128], strides = [1, 1]} : vector<16x384xbf16> to vector<16x128xbf16>
    %c0_14 = arith.constant 0 : index
    %c0_15 = arith.constant 0 : index
    %c0_16 = arith.constant 0 : index
    %33 = vector.load %arg6[%c0_14, %c0_15, %c0_16] : memref<3x16x128xbf16, #tpu.memory_space<vmem>>, vector<1x16x128xbf16>
    %34 = vector.shape_cast %33 : vector<1x16x128xbf16> to vector<16x128xbf16>
    %35 = vector.shape_cast %32 : vector<16x128xbf16> to vector<1x16x128xbf16>
    tpu.vector_store %arg6[%c0_14, %c0_15, %c0_16], %35 {strides = array<i32>} : memref<3x16x128xbf16, #tpu.memory_space<vmem>>, vector<1x16x128xbf16>,
    %36 = vector.extract_strided_slice %31 {offsets = [0, 128], sizes = [16, 128], strides = [1, 1]} : vector<16x384xbf16> to vector<16x128xbf16>
    %c1 = arith.constant 1 : index
    %c0_17 = arith.constant 0 : index
    %c0_18 = arith.constant 0 : index
    %37 = vector.load %arg6[%c1, %c0_17, %c0_18] : memref<3x16x128xbf16, #tpu.memory_space<vmem>>, vector<1x16x128xbf16>
    %38 = vector.shape_cast %37 : vector<1x16x128xbf16> to vector<16x128xbf16>
    %39 = vector.shape_cast %36 : vector<16x128xbf16> to vector<1x16x128xbf16>
    tpu.vector_store %arg6[%c1, %c0_17, %c0_18], %39 {strides = array<i32>} : memref<3x16x128xbf16, #tpu.memory_space<vmem>>, vector<1x16x128xbf16>,
    %40 = vector.extract_strided_slice %31 {offsets = [0, 256], sizes = [16, 128], strides = [1, 1]} : vector<16x384xbf16> to vector<16x128xbf16>
    %c2 = arith.constant 2 : index
    %c0_19 = arith.constant 0 : index
    %c0_20 = arith.constant 0 : index
    %41 = vector.load %arg6[%c2, %c0_19, %c0_20] : memref<3x16x128xbf16, #tpu.memory_space<vmem>>, vector<1x16x128xbf16>
    %42 = vector.shape_cast %41 : vector<1x16x128xbf16> to vector<16x128xbf16>
    %43 = vector.shape_cast %40 : vector<16x128xbf16> to vector<1x16x128xbf16>
    tpu.vector_store %arg6[%c2, %c0_19, %c0_20], %43 {strides = array<i32>} : memref<3x16x128xbf16, #tpu.memory_space<vmem>>, vector<1x16x128xbf16>,
    return
  }
  func.func @transform_0(%arg0: i32) -> (i32, i32) {
    %c0_i32 = arith.constant 0 : i32
    %c0_i32_0 = arith.constant 0 : i32
    return %arg0, %c0_i32 : i32, i32
  }
  func.func @transform_1(%arg0: i32) -> (i32, i32) {
    %c0_i32 = arith.constant 0 : i32
    %c0_i32_0 = arith.constant 0 : i32
    %c0_i32_1 = arith.constant 0 : i32
    return %c0_i32, %c0_i32_0 : i32, i32
  }
  func.func @transform_2(%arg0: i32) -> (i32, i32) {
    %c0_i32 = arith.constant 0 : i32
    %c0_i32_0 = arith.constant 0 : i32
    %c0_i32_1 = arith.constant 0 : i32
    return %c0_i32, %c0_i32_0 : i32, i32
  }
  func.func @transform_3(%arg0: i32) -> (i32, i32) {
    %c0_i32 = arith.constant 0 : i32
    %c0_i32_0 = arith.constant 0 : i32
    %c0_i32_1 = arith.constant 0 : i32
    return %c0_i32, %c0_i32_0 : i32, i32
  }
  func.func @transform_4(%arg0: i32) -> (i32, i32) {
    %c0_i32 = arith.constant 0 : i32
    %c0_i32_0 = arith.constant 0 : i32
    %c0_i32_1 = arith.constant 0 : i32
    return %c0_i32, %c0_i32_0 : i32, i32
  }
  func.func @transform_5(%arg0: i32) -> (i32, i32, i32) {
    %c0_i32 = arith.constant 0 : i32
    %c0_i32_0 = arith.constant 0 : i32
    %c0_i32_1 = arith.constant 0 : i32
    return %c0_i32, %arg0, %c0_i32_0 : i32, i32, i32
  }
}

module attributes {stable_mosaic.version = 11 : i64} {
  func.func @_ln_mlp_residual_kernel(%arg0: i32, %arg1: memref<16x128xf32, #tpu.memory_space<vmem>>, %arg2: memref<1x128xf32, #tpu.memory_space<vmem>>, %arg3: memref<1x128xf32, #tpu.memory_space<vmem>>, %arg4: memref<128x512xbf16, #tpu.memory_space<vmem>>, %arg5: memref<1x512xf32, #tpu.memory_space<vmem>>, %arg6: memref<512x128xbf16, #tpu.memory_space<vmem>>, %arg7: memref<1x128xf32, #tpu.memory_space<vmem>>, %arg8: memref<16x128xf32, #tpu.memory_space<vmem>>) attributes {dimension_semantics = [#tpu.dimension_semantics<parallel>], iteration_bounds = array<i64: 2>, scalar_prefetch = 0 : i64, scratch_operands = 0 : i64, tpu.core_type = #tpu.core_type<tc>, window_params = [{transform_indices = @transform_0, window_bounds = array<i64: 16, 128>}, {pipeline_mode = #tpu.pipeline_mode<synchronous>, transform_indices = @transform_1, window_bounds = array<i64: 1, 128>}, {pipeline_mode = #tpu.pipeline_mode<synchronous>, transform_indices = @transform_2, window_bounds = array<i64: 1, 128>}, {pipeline_mode = #tpu.pipeline_mode<synchronous>, transform_indices = @transform_3, window_bounds = array<i64: 128, 512>}, {pipeline_mode = #tpu.pipeline_mode<synchronous>, transform_indices = @transform_4, window_bounds = array<i64: 1, 512>}, {pipeline_mode = #tpu.pipeline_mode<synchronous>, transform_indices = @transform_5, window_bounds = array<i64: 512, 128>}, {pipeline_mode = #tpu.pipeline_mode<synchronous>, transform_indices = @transform_6, window_bounds = array<i64: 1, 128>}, {transform_indices = @transform_7, window_bounds = array<i64: 16, 128>}]} {
    %c0 = arith.constant 0 : index
    %c0_0 = arith.constant 0 : index
    %0 = vector.load %arg1[%c0, %c0_0] : memref<16x128xf32, #tpu.memory_space<vmem>>, vector<16x128xf32>
    %c0_1 = arith.constant 0 : index
    %c0_2 = arith.constant 0 : index
    %1 = vector.load %arg2[%c0_1, %c0_2] : memref<1x128xf32, #tpu.memory_space<vmem>>, vector<1x128xf32>
    %c0_3 = arith.constant 0 : index
    %c0_4 = arith.constant 0 : index
    %2 = vector.load %arg3[%c0_3, %c0_4] : memref<1x128xf32, #tpu.memory_space<vmem>>, vector<1x128xf32>
    %cst = arith.constant dense<0.000000e+00> : vector<16xf32>
    %3 = vector.multi_reduction <add>, %0, %cst [1] : vector<16x128xf32> to vector<16xf32>
    %4 = vector.shape_cast %3 : vector<16xf32> to vector<16x1xf32>
    %cst_5 = arith.constant 1.280000e+02 : f32
    %5 = vector.broadcast %cst_5 : f32 to vector<16x1xf32>
    %6 = arith.divf %4, %5 : vector<16x1xf32>
    %7 = vector.broadcast %6 : vector<16x1xf32> to vector<16x128xf32>
    %8 = arith.subf %0, %7 : vector<16x128xf32>
    %9 = arith.mulf %8, %8 : vector<16x128xf32>
    %cst_6 = arith.constant dense<0.000000e+00> : vector<16xf32>
    %10 = vector.multi_reduction <add>, %9, %cst_6 [1] : vector<16x128xf32> to vector<16xf32>
    %11 = vector.shape_cast %10 : vector<16xf32> to vector<16x1xf32>
    %cst_7 = arith.constant 1.280000e+02 : f32
    %12 = vector.broadcast %cst_7 : f32 to vector<16x1xf32>
    %13 = arith.divf %11, %12 : vector<16x1xf32>
    %14 = vector.broadcast %6 : vector<16x1xf32> to vector<16x128xf32>
    %15 = arith.subf %0, %14 : vector<16x128xf32>
    %cst_8 = arith.constant 9.99999974E-6 : f32
    %16 = vector.broadcast %cst_8 : f32 to vector<16x1xf32>
    %17 = arith.addf %13, %16 : vector<16x1xf32>
    %18 = math.rsqrt %17 : vector<16x1xf32>
    %19 = vector.broadcast %18 : vector<16x1xf32> to vector<16x128xf32>
    %20 = arith.mulf %15, %19 : vector<16x128xf32>
    %21 = vector.broadcast %1 : vector<1x128xf32> to vector<16x128xf32>
    %22 = arith.mulf %20, %21 : vector<16x128xf32>
    %23 = vector.broadcast %2 : vector<1x128xf32> to vector<16x128xf32>
    %24 = arith.addf %22, %23 : vector<16x128xf32>
    %25 = arith.truncf %24 : vector<16x128xf32> to vector<16x128xbf16>
    %c0_9 = arith.constant 0 : index
    %c0_10 = arith.constant 0 : index
    %26 = vector.load %arg4[%c0_9, %c0_10] : memref<128x512xbf16, #tpu.memory_space<vmem>>, vector<128x512xbf16>
    %cst_11 = arith.constant dense<0.000000e+00> : vector<16x512xf32>
    %27 = tpu.matmul %25, %26, %cst_11 {dimension_numbers = #tpu.dot_dimension_numbers<[1], [0], [0], [1], [0, 0, 1, 1], [], []>} : vector<16x128xbf16>, vector<128x512xbf16>, vector<16x512xf32> -> vector<16x512xf32>
    %c0_12 = arith.constant 0 : index
    %c0_13 = arith.constant 0 : index
    %28 = vector.load %arg5[%c0_12, %c0_13] : memref<1x512xf32, #tpu.memory_space<vmem>>, vector<1x512xf32>
    %29 = vector.broadcast %28 : vector<1x512xf32> to vector<16x512xf32>
    %30 = arith.addf %27, %29 : vector<16x512xf32>
    %cst_14 = arith.constant 1.702000e+00 : f32
    %31 = vector.broadcast %cst_14 : f32 to vector<16x512xf32>
    %32 = arith.mulf %31, %30 : vector<16x512xf32>
    %33 = arith.negf %32 : vector<16x512xf32>
    %34 = math.exp %33 : vector<16x512xf32>
    %cst_15 = arith.constant 1.000000e+00 : f32
    %35 = vector.broadcast %cst_15 : f32 to vector<16x512xf32>
    %36 = arith.addf %35, %34 : vector<16x512xf32>
    %37 = arith.divf %35, %36 : vector<16x512xf32>
    %38 = arith.mulf %30, %37 : vector<16x512xf32>
    %39 = arith.truncf %38 : vector<16x512xf32> to vector<16x512xbf16>
    %c0_16 = arith.constant 0 : index
    %c0_17 = arith.constant 0 : index
    %40 = vector.load %arg6[%c0_16, %c0_17] : memref<512x128xbf16, #tpu.memory_space<vmem>>, vector<512x128xbf16>
    %cst_18 = arith.constant dense<0.000000e+00> : vector<16x128xf32>
    %41 = tpu.matmul %39, %40, %cst_18 {dimension_numbers = #tpu.dot_dimension_numbers<[1], [0], [0], [1], [0, 0, 1, 1], [], []>} : vector<16x512xbf16>, vector<512x128xbf16>, vector<16x128xf32> -> vector<16x128xf32>
    %c0_19 = arith.constant 0 : index
    %c0_20 = arith.constant 0 : index
    %42 = vector.load %arg7[%c0_19, %c0_20] : memref<1x128xf32, #tpu.memory_space<vmem>>, vector<1x128xf32>
    %43 = vector.broadcast %42 : vector<1x128xf32> to vector<16x128xf32>
    %44 = arith.addf %41, %43 : vector<16x128xf32>
    %45 = arith.addf %0, %44 : vector<16x128xf32>
    %c0_21 = arith.constant 0 : index
    %c0_22 = arith.constant 0 : index
    %46 = vector.load %arg8[%c0_21, %c0_22] : memref<16x128xf32, #tpu.memory_space<vmem>>, vector<16x128xf32>
    tpu.vector_store %arg8[%c0_21, %c0_22], %45 {strides = array<i32>} : memref<16x128xf32, #tpu.memory_space<vmem>>, vector<16x128xf32>,
    return
  }
  func.func @transform_0(%arg0: i32) -> (i32, i32) {
    %c0_i32 = arith.constant 0 : i32
    %c0_i32_0 = arith.constant 0 : i32
    return %arg0, %c0_i32 : i32, i32
  }
  func.func @transform_1(%arg0: i32) -> (i32, i32) {
    %c0_i32 = arith.constant 0 : i32
    %c0_i32_0 = arith.constant 0 : i32
    %c0_i32_1 = arith.constant 0 : i32
    return %c0_i32, %c0_i32_0 : i32, i32
  }
  func.func @transform_2(%arg0: i32) -> (i32, i32) {
    %c0_i32 = arith.constant 0 : i32
    %c0_i32_0 = arith.constant 0 : i32
    %c0_i32_1 = arith.constant 0 : i32
    return %c0_i32, %c0_i32_0 : i32, i32
  }
  func.func @transform_3(%arg0: i32) -> (i32, i32) {
    %c0_i32 = arith.constant 0 : i32
    %c0_i32_0 = arith.constant 0 : i32
    %c0_i32_1 = arith.constant 0 : i32
    return %c0_i32, %c0_i32_0 : i32, i32
  }
  func.func @transform_4(%arg0: i32) -> (i32, i32) {
    %c0_i32 = arith.constant 0 : i32
    %c0_i32_0 = arith.constant 0 : i32
    %c0_i32_1 = arith.constant 0 : i32
    return %c0_i32, %c0_i32_0 : i32, i32
  }
  func.func @transform_5(%arg0: i32) -> (i32, i32) {
    %c0_i32 = arith.constant 0 : i32
    %c0_i32_0 = arith.constant 0 : i32
    %c0_i32_1 = arith.constant 0 : i32
    return %c0_i32, %c0_i32_0 : i32, i32
  }
  func.func @transform_6(%arg0: i32) -> (i32, i32) {
    %c0_i32 = arith.constant 0 : i32
    %c0_i32_0 = arith.constant 0 : i32
    %c0_i32_1 = arith.constant 0 : i32
    return %c0_i32, %c0_i32_0 : i32, i32
  }
  func.func @transform_7(%arg0: i32) -> (i32, i32) {
    %c0_i32 = arith.constant 0 : i32
    %c0_i32_0 = arith.constant 0 : i32
    return %arg0, %c0_i32 : i32, i32
  }
}

module attributes {stable_mosaic.version = 11 : i64} {
  func.func @_attn_proj_kernel(%arg0: i32, %arg1: i32, %arg2: memref<3x1x16x128xbf16, #tpu.memory_space<vmem>>, %arg3: memref<1x16x128xf32, #tpu.memory_space<vmem>>, %arg4: memref<128x128xbf16, #tpu.memory_space<vmem>>, %arg5: memref<1x128xf32, #tpu.memory_space<vmem>>, %arg6: memref<1x16x128xf32, #tpu.memory_space<vmem>>, %arg7: memref<16x128xf32, #tpu.memory_space<vmem>>) attributes {dimension_semantics = [#tpu.dimension_semantics<parallel>, #tpu.dimension_semantics<arbitrary>], iteration_bounds = array<i64: 2, 1>, scalar_prefetch = 0 : i64, scratch_operands = 1 : i64, tpu.core_type = #tpu.core_type<tc>, window_params = [{transform_indices = @transform_0, window_bounds = array<i64: 3, 1, 16, 128>}, {transform_indices = @transform_1, window_bounds = array<i64: 1, 16, 128>}, {transform_indices = @transform_2, window_bounds = array<i64: 128, 128>}, {pipeline_mode = #tpu.pipeline_mode<synchronous>, transform_indices = @transform_3, window_bounds = array<i64: 1, 128>}, {transform_indices = @transform_4, window_bounds = array<i64: 1, 16, 128>}]} {
    %c0_i32 = arith.constant 0 : i32
    %0 = arith.cmpi eq, %arg1, %c0_i32 : i32
    %1 = arith.extui %0 : i1 to i32
    %c0_i32_0 = arith.constant 0 : i32
    %2 = arith.cmpi ne, %1, %c0_i32_0 : i32
    scf.if %2 {
      %c0_39 = arith.constant 0 : index
      %c0_40 = arith.constant 0 : index
      %c0_41 = arith.constant 0 : index
      %55 = vector.load %arg3[%c0_39, %c0_40, %c0_41] : memref<1x16x128xf32, #tpu.memory_space<vmem>>, vector<1x16x128xf32>
      %56 = vector.shape_cast %55 : vector<1x16x128xf32> to vector<16x128xf32>
      %c0_42 = arith.constant 0 : index
      %c0_43 = arith.constant 0 : index
      %57 = vector.load %arg5[%c0_42, %c0_43] : memref<1x128xf32, #tpu.memory_space<vmem>>, vector<1x128xf32>
      %58 = vector.broadcast %57 : vector<1x128xf32> to vector<16x128xf32>
      %59 = arith.addf %56, %58 : vector<16x128xf32>
      %c0_44 = arith.constant 0 : index
      %c0_45 = arith.constant 0 : index
      %60 = vector.load %arg7[%c0_44, %c0_45] : memref<16x128xf32, #tpu.memory_space<vmem>>, vector<16x128xf32>
      tpu.vector_store %arg7[%c0_44, %c0_45], %59 {strides = array<i32>} : memref<16x128xf32, #tpu.memory_space<vmem>>, vector<16x128xf32>,
    } else {
    }
    %c0 = arith.constant 0 : index
    %c0_1 = arith.constant 0 : index
    %c0_2 = arith.constant 0 : index
    %c0_3 = arith.constant 0 : index
    %3 = vector.load %arg2[%c0, %c0_1, %c0_2, %c0_3] : memref<3x1x16x128xbf16, #tpu.memory_space<vmem>>, vector<1x1x16x64xbf16>
    %4 = vector.shape_cast %3 : vector<1x1x16x64xbf16> to vector<16x64xbf16>
    %c1 = arith.constant 1 : index
    %c0_4 = arith.constant 0 : index
    %c0_5 = arith.constant 0 : index
    %c0_6 = arith.constant 0 : index
    %5 = vector.load %arg2[%c1, %c0_4, %c0_5, %c0_6] : memref<3x1x16x128xbf16, #tpu.memory_space<vmem>>, vector<1x1x16x64xbf16>
    %6 = vector.shape_cast %5 : vector<1x1x16x64xbf16> to vector<16x64xbf16>
    %c2 = arith.constant 2 : index
    %c0_7 = arith.constant 0 : index
    %c0_8 = arith.constant 0 : index
    %c0_9 = arith.constant 0 : index
    %7 = vector.load %arg2[%c2, %c0_7, %c0_8, %c0_9] : memref<3x1x16x128xbf16, #tpu.memory_space<vmem>>, vector<1x1x16x64xbf16>
    %8 = vector.shape_cast %7 : vector<1x1x16x64xbf16> to vector<16x64xbf16>
    %cst = arith.constant dense<0.000000e+00> : vector<16x16xf32>
    %9 = tpu.matmul %4, %6, %cst {dimension_numbers = #tpu.dot_dimension_numbers<[1], [1], [0], [0], [0, 0, 1, 0], [], []>} : vector<16x64xbf16>, vector<16x64xbf16>, vector<16x16xf32> -> vector<16x16xf32>
    %cst_10 = arith.constant 1.250000e-01 : f32
    %10 = vector.broadcast %cst_10 : f32 to vector<16x16xf32>
    %11 = arith.mulf %9, %10 : vector<16x16xf32>
    %cst_11 = arith.constant dense<0xFF800000> : vector<16xf32>
    %12 = vector.multi_reduction <maximumf>, %11, %cst_11 [1] : vector<16x16xf32> to vector<16xf32>
    %13 = vector.shape_cast %12 : vector<16xf32> to vector<16x1xf32>
    %14 = vector.broadcast %13 : vector<16x1xf32> to vector<16x16xf32>
    %15 = arith.subf %11, %14 : vector<16x16xf32>
    %16 = math.exp %15 : vector<16x16xf32>
    %cst_12 = arith.constant dense<0.000000e+00> : vector<16xf32>
    %17 = vector.multi_reduction <add>, %16, %cst_12 [1] : vector<16x16xf32> to vector<16xf32>
    %18 = vector.shape_cast %17 : vector<16xf32> to vector<16x1xf32>
    %19 = tpu.reciprocal %18 {approx = true} : vector<16x1xf32> -> vector<16x1xf32>
    %20 = vector.broadcast %19 : vector<16x1xf32> to vector<16x16xf32>
    %21 = arith.mulf %16, %20 : vector<16x16xf32>
    %22 = arith.truncf %21 : vector<16x16xf32> to vector<16x16xbf16>
    %cst_13 = arith.constant dense<0.000000e+00> : vector<16x64xf32>
    %23 = tpu.matmul %22, %8, %cst_13 {dimension_numbers = #tpu.dot_dimension_numbers<[1], [0], [0], [1], [0, 0, 1, 1], [], []>} : vector<16x16xbf16>, vector<16x64xbf16>, vector<16x64xf32> -> vector<16x64xf32>
    %c0_14 = arith.constant 0 : index
    %c0_15 = arith.constant 0 : index
    %c0_16 = arith.constant 0 : index
    %c64 = arith.constant 64 : index
    %24 = vector.load %arg2[%c0_14, %c0_15, %c0_16, %c64] : memref<3x1x16x128xbf16, #tpu.memory_space<vmem>>, vector<1x1x16x64xbf16>
    %25 = vector.shape_cast %24 : vector<1x1x16x64xbf16> to vector<16x64xbf16>
    %c1_17 = arith.constant 1 : index
    %c0_18 = arith.constant 0 : index
    %c0_19 = arith.constant 0 : index
    %c64_20 = arith.constant 64 : index
    %26 = vector.load %arg2[%c1_17, %c0_18, %c0_19, %c64_20] : memref<3x1x16x128xbf16, #tpu.memory_space<vmem>>, vector<1x1x16x64xbf16>
    %27 = vector.shape_cast %26 : vector<1x1x16x64xbf16> to vector<16x64xbf16>
    %c2_21 = arith.constant 2 : index
    %c0_22 = arith.constant 0 : index
    %c0_23 = arith.constant 0 : index
    %c64_24 = arith.constant 64 : index
    %28 = vector.load %arg2[%c2_21, %c0_22, %c0_23, %c64_24] : memref<3x1x16x128xbf16, #tpu.memory_space<vmem>>, vector<1x1x16x64xbf16>
    %29 = vector.shape_cast %28 : vector<1x1x16x64xbf16> to vector<16x64xbf16>
    %cst_25 = arith.constant dense<0.000000e+00> : vector<16x16xf32>
    %30 = tpu.matmul %25, %27, %cst_25 {dimension_numbers = #tpu.dot_dimension_numbers<[1], [1], [0], [0], [0, 0, 1, 0], [], []>} : vector<16x64xbf16>, vector<16x64xbf16>, vector<16x16xf32> -> vector<16x16xf32>
    %cst_26 = arith.constant 1.250000e-01 : f32
    %31 = vector.broadcast %cst_26 : f32 to vector<16x16xf32>
    %32 = arith.mulf %30, %31 : vector<16x16xf32>
    %cst_27 = arith.constant dense<0xFF800000> : vector<16xf32>
    %33 = vector.multi_reduction <maximumf>, %32, %cst_27 [1] : vector<16x16xf32> to vector<16xf32>
    %34 = vector.shape_cast %33 : vector<16xf32> to vector<16x1xf32>
    %35 = vector.broadcast %34 : vector<16x1xf32> to vector<16x16xf32>
    %36 = arith.subf %32, %35 : vector<16x16xf32>
    %37 = math.exp %36 : vector<16x16xf32>
    %cst_28 = arith.constant dense<0.000000e+00> : vector<16xf32>
    %38 = vector.multi_reduction <add>, %37, %cst_28 [1] : vector<16x16xf32> to vector<16xf32>
    %39 = vector.shape_cast %38 : vector<16xf32> to vector<16x1xf32>
    %40 = tpu.reciprocal %39 {approx = true} : vector<16x1xf32> -> vector<16x1xf32>
    %41 = vector.broadcast %40 : vector<16x1xf32> to vector<16x16xf32>
    %42 = arith.mulf %37, %41 : vector<16x16xf32>
    %43 = arith.truncf %42 : vector<16x16xf32> to vector<16x16xbf16>
    %cst_29 = arith.constant dense<0.000000e+00> : vector<16x64xf32>
    %44 = tpu.matmul %43, %29, %cst_29 {dimension_numbers = #tpu.dot_dimension_numbers<[1], [0], [0], [1], [0, 0, 1, 1], [], []>} : vector<16x16xbf16>, vector<16x64xbf16>, vector<16x64xf32> -> vector<16x64xf32>
    %45 = tpu.concatenate %23, %44 in 1 : vector<16x64xf32>, vector<16x64xf32> -> vector<16x128xf32>
    %c0_30 = arith.constant 0 : index
    %c0_31 = arith.constant 0 : index
    %46 = vector.load %arg7[%c0_30, %c0_31] : memref<16x128xf32, #tpu.memory_space<vmem>>, vector<16x128xf32>
    %47 = arith.truncf %45 : vector<16x128xf32> to vector<16x128xbf16>
    %c0_32 = arith.constant 0 : index
    %c0_33 = arith.constant 0 : index
    %48 = vector.load %arg4[%c0_32, %c0_33] : memref<128x128xbf16, #tpu.memory_space<vmem>>, vector<128x128xbf16>
    %cst_34 = arith.constant dense<0.000000e+00> : vector<16x128xf32>
    %49 = tpu.matmul %47, %48, %cst_34 {dimension_numbers = #tpu.dot_dimension_numbers<[1], [0], [0], [1], [0, 0, 1, 1], [], []>} : vector<16x128xbf16>, vector<128x128xbf16>, vector<16x128xf32> -> vector<16x128xf32>
    %50 = arith.addf %46, %49 : vector<16x128xf32>
    %c0_35 = arith.constant 0 : index
    %c0_36 = arith.constant 0 : index
    %51 = vector.load %arg7[%c0_35, %c0_36] : memref<16x128xf32, #tpu.memory_space<vmem>>, vector<16x128xf32>
    tpu.vector_store %arg7[%c0_35, %c0_36], %50 {strides = array<i32>} : memref<16x128xf32, #tpu.memory_space<vmem>>, vector<16x128xf32>,
    %c0_i32_37 = arith.constant 0 : i32
    %52 = arith.cmpi eq, %arg1, %c0_i32_37 : i32
    %53 = arith.extui %52 : i1 to i32
    %c0_i32_38 = arith.constant 0 : i32
    %54 = arith.cmpi ne, %53, %c0_i32_38 : i32
    scf.if %54 {
      %c0_39 = arith.constant 0 : index
      %c0_40 = arith.constant 0 : index
      %55 = vector.load %arg7[%c0_39, %c0_40] : memref<16x128xf32, #tpu.memory_space<vmem>>, vector<16x128xf32>
      %c0_41 = arith.constant 0 : index
      %c0_42 = arith.constant 0 : index
      %c0_43 = arith.constant 0 : index
      %56 = vector.load %arg6[%c0_41, %c0_42, %c0_43] : memref<1x16x128xf32, #tpu.memory_space<vmem>>, vector<1x16x128xf32>
      %57 = vector.shape_cast %56 : vector<1x16x128xf32> to vector<16x128xf32>
      %58 = vector.shape_cast %55 : vector<16x128xf32> to vector<1x16x128xf32>
      tpu.vector_store %arg6[%c0_41, %c0_42, %c0_43], %58 {strides = array<i32>} : memref<1x16x128xf32, #tpu.memory_space<vmem>>, vector<1x16x128xf32>,
    } else {
    }
    return
  }
  func.func @transform_0(%arg0: i32, %arg1: i32) -> (i32, i32, i32, i32) {
    %c0_i32 = arith.constant 0 : i32
    %c0_i32_0 = arith.constant 0 : i32
    %c0_i32_1 = arith.constant 0 : i32
    return %c0_i32, %arg0, %c0_i32_0, %arg1 : i32, i32, i32, i32
  }
  func.func @transform_1(%arg0: i32, %arg1: i32) -> (i32, i32, i32) {
    %c0_i32 = arith.constant 0 : i32
    %c0_i32_0 = arith.constant 0 : i32
    %c0_i32_1 = arith.constant 0 : i32
    return %arg0, %c0_i32, %c0_i32_0 : i32, i32, i32
  }
  func.func @transform_2(%arg0: i32, %arg1: i32) -> (i32, i32) {
    %c0_i32 = arith.constant 0 : i32
    %c0_i32_0 = arith.constant 0 : i32
    return %arg1, %c0_i32 : i32, i32
  }
  func.func @transform_3(%arg0: i32, %arg1: i32) -> (i32, i32) {
    %c0_i32 = arith.constant 0 : i32
    %c0_i32_0 = arith.constant 0 : i32
    %c0_i32_1 = arith.constant 0 : i32
    return %c0_i32, %c0_i32_0 : i32, i32
  }
  func.func @transform_4(%arg0: i32, %arg1: i32) -> (i32, i32, i32) {
    %c0_i32 = arith.constant 0 : i32
    %c0_i32_0 = arith.constant 0 : i32
    %c0_i32_1 = arith.constant 0 : i32
    return %arg0, %c0_i32, %c0_i32_0 : i32, i32, i32
  }
}

</mosaic_0001>

<llo_original>
// kernel: residual_attention_block_ivlp.3
$region0: #{residual_attention_block_ivlp.3}
  #allocation0 [shape = 'u32[]', space=smem, size = 0x4, offset = 0x4, fixed_abs, tag = 'smem constant byte address 0x4 - core index']
  #allocation1 [shape = 'u32[144,128]{1,0:T(1,128)}', space=vmem, size = 0x12000, scoped, tag = 'internal scratch']
  %s0 = inlined_call_operand.vmem [shape: f32[32,128], index: 0, kind: input, shape index: {}]
  %s1 = inlined_call_operand.hbm [shape: f32[1,128], index: 1, kind: input, shape index: {}]
  %s2 = inlined_call_operand.hbm [shape: f32[1,128], index: 2, kind: input, shape index: {}]
  %s3 = inlined_call_operand.vmem [shape: bf16[128,384], index: 3, kind: input, shape index: {}]
  %s4 = inlined_call_operand.vmem [shape: f32[1,384], index: 4, kind: input, shape index: {}]
  %s5 = inlined_call_operand.vmem [shape: bf16[3,32,128], index: 5, kind: output, shape index: {}]
  %s6 = sld [smem:[#allocation0]]
  $region98: #{residual_attention_block_ivlp.3} parent=0
    _
  %s8 = ssub.s32 1, %s6
  %s9 = scalar_select 0, %s8, %s6
  $region1: #{residual_attention_block_ivlp.3} parent=0
    #allocation2 [shape = 'u8[512]{0}', space=vmem, size = 0x400, scoped, tag = 'input window, operand 1, single buffered']
    #allocation3 [shape = 's32[2]{0}', space=sflag, size = 0x8, scoped, tag = 'scoped memory for residual_attention_block_ivlp.3']
    #allocation4 [shape = 'u8[512]{0}', space=vmem, size = 0x400, scoped, tag = 'input window, operand 2, single buffered']
    #allocation5 [shape = 's32[1]{0}', space=sflag, size = 0x4, scoped, tag = 'scoped memory for residual_attention_block_ivlp.3']
    #allocation6 [shape = 'u8[24576]{0}', space=vmem, size = 0x6000, scoped, tag = 'output window, operand 0']
    %10 = vsyncpa [#allocation3], 0
    %11 = vsyncpa [#allocation5], 0
    loop: start=0, step=1, limit=4
    $region2: #{residual_attention_block_ivlp.3} parent=1 // loop_pre_header
      _
    $region3: #{residual_attention_block_ivlp.3} parent=1 // loop_header
      %s13 = sphi 0, %s17
      %p14 = scmp.ge.s32.totalorder %s13, 4
      %s23 = sphi 0, %s25
      %s26 = sphi 0, %s23
      %s27 = sphi 0, %s26
      %s43 = sphi 0, %s27
      %s47 = sphi 0, %s47
      %s49 = sphi 0, %s47
      %s50 = sphi 0, %s49
      %s64 = sphi 0, %s50
      %s68 = sphi 0, %s68
      %s70 = sphi 0, %s68
      %s71 = sphi 0, %s70
      %s85 = sphi 0, %s71
      %s89 = sphi 0, %s89
      %s91 = sphi 0, %s89
      %s92 = sphi 0, %s91
      %s106 = sphi 0, %s92
      %s110 = sphi 0, %s110
      %s112 = sphi 0, %s110
      %s113 = sphi 0, %s112
      %s127 = sphi 0, %s113
      %s133 = sphi 0, %s135
      %s136 = sphi 0, %s133
      %s137 = sphi 0, %s136
      %s153 = sphi 0, %s137
    $region4: #{residual_attention_block_ivlp.3} parent=1 // loop_header_branch
      %16 = sbr.rel (%p14) target = $region8
    $region5: #{residual_attention_block_ivlp.3} parent=1 // loop_body
      %s18 = ssub.s32 %s13, 1
      %s19 = ssub.s32 %s13, 2
      %s20 = sadd.s32 %s13, 1
      %s21 = ssub.s32 %s13, %s20
      %p22 = scmp.eq.s32.totalorder %s21, 0
      %s24 = sadd.s32 %s23, 1
      %s25 = scalar_select %p22, %s23, %s24
      %p28 = pneg %p22
      %p29 = scmp.eq.s32.totalorder %s13, 1
      %p30 = por %p28, %p29
      %p31 = scmp.ne.s32.totalorder %s23, %s26
      %p32 = scmp.eq.s32.totalorder %s13, 0
      %p33 = por %p31, %p32
      %p34 = scmp.ne.s32.totalorder %s23, %s26
      %p35 = scmp.eq.s32.totalorder %s18, 1
      %p36 = por %p34, %p35
      %p37 = scmp.ne.s32.totalorder %s26, %s27
      %p38 = scmp.eq.s32.totalorder %s18, 0
      %p39 = por %p37, %p38
      %p40 = scmp.ne.s32.totalorder %s26, %s27
      %p41 = scmp.eq.s32.totalorder %s19, 1
      %p42 = por %p40, %p41
      %p44 = scmp.ne.s32.totalorder %s27, %s43
      %p45 = scmp.eq.s32.totalorder %s19, 0
      %p46 = por %p44, %p45
      %s48 = sadd.s32 %s47, 1
      %p51 = scmp.eq.s32.totalorder %s13, 1
      %p52 = scmp.ne.s32.totalorder %s47, %s49
      %p53 = scmp.eq.s32.totalorder %s13, 0
      %p54 = por %p52, %p53
      %p55 = scmp.ne.s32.totalorder %s47, %s49
      %p56 = scmp.eq.s32.totalorder %s18, 1
      %p57 = por %p55, %p56
      %p58 = scmp.ne.s32.totalorder %s49, %s50
      %p59 = scmp.eq.s32.totalorder %s18, 0
      %p60 = por %p58, %p59
      %p61 = scmp.ne.s32.totalorder %s49, %s50
      %p62 = scmp.eq.s32.totalorder %s19, 1
      %p63 = por %p61, %p62
      %p65 = scmp.ne.s32.totalorder %s50, %s64
      %p66 = scmp.eq.s32.totalorder %s19, 0
      %p67 = por %p65, %p66
      %s69 = sadd.s32 %s68, 1
      %p72 = scmp.eq.s32.totalorder %s13, 1
      %p73 = scmp.ne.s32.totalorder %s68, %s70
      %p74 = scmp.eq.s32.totalorder %s13, 0
      %p75 = por %p73, %p74
      %p76 = scmp.ne.s32.totalorder %s68, %s70
      %p77 = scmp.eq.s32.totalorder %s18, 1
      %p78 = por %p76, %p77
      %p79 = scmp.ne.s32.totalorder %s70, %s71
      %p80 = scmp.eq.s32.totalorder %s18, 0
      %p81 = por %p79, %p80
      %p82 = scmp.ne.s32.totalorder %s70, %s71
      %p83 = scmp.eq.s32.totalorder %s19, 1
      %p84 = por %p82, %p83
      %p86 = scmp.ne.s32.totalorder %s71, %s85
      %p87 = scmp.eq.s32.totalorder %s19, 0
      %p88 = por %p86, %p87
      %s90 = sadd.s32 %s89, 1
      %p93 = scmp.eq.s32.totalorder %s13, 1
      %p94 = scmp.ne.s32.totalorder %s89, %s91
      %p95 = scmp.eq.s32.totalorder %s13, 0
      %p96 = por %p94, %p95
      %p97 = scmp.ne.s32.totalorder %s89, %s91
      %p98 = scmp.eq.s32.totalorder %s18, 1
      %p99 = por %p97, %p98
      %p100 = scmp.ne.s32.totalorder %s91, %s92
      %p101 = scmp.eq.s32.totalorder %s18, 0
      %p102 = por %p100, %p101
      %p103 = scmp.ne.s32.totalorder %s91, %s92
      %p104 = scmp.eq.s32.totalorder %s19, 1
      %p105 = por %p103, %p104
      %p107 = scmp.ne.s32.totalorder %s92, %s106
      %p108 = scmp.eq.s32.totalorder %s19, 0
      %p109 = por %p107, %p108
      %s111 = sadd.s32 %s110, 1
      %p114 = scmp.eq.s32.totalorder %s13, 1
      %p115 = scmp.ne.s32.totalorder %s110, %s112
      %p116 = scmp.eq.s32.totalorder %s13, 0
      %p117 = por %p115, %p116
      %p118 = scmp.ne.s32.totalorder %s110, %s112
      %p119 = scmp.eq.s32.totalorder %s18, 1
      %p120 = por %p118, %p119
      %p121 = scmp.ne.s32.totalorder %s112, %s113
      %p122 = scmp.eq.s32.totalorder %s18, 0
      %p123 = por %p121, %p122
      %p124 = scmp.ne.s32.totalorder %s112, %s113
      %p125 = scmp.eq.s32.totalorder %s19, 1
      %p126 = por %p124, %p125
      %p128 = scmp.ne.s32.totalorder %s113, %s127
      %p129 = scmp.eq.s32.totalorder %s19, 0
      %p130 = por %p128, %p129
      %s131 = ssub.s32 %s13, %s20
      %p132 = scmp.eq.s32.totalorder %s131, 0
      %s134 = sadd.s32 %s133, 1
      %s135 = scalar_select %p132, %s133, %s134
      %p138 = pneg %p132
      %p139 = scmp.eq.s32.totalorder %s13, 1
      %p140 = por %p138, %p139
      %p141 = scmp.ne.s32.totalorder %s133, %s136
      %p142 = scmp.eq.s32.totalorder %s13, 0
      %p143 = por %p141, %p142
      %p144 = scmp.ne.s32.totalorder %s133, %s136
      %p145 = scmp.eq.s32.totalorder %s18, 1
      %p146 = por %p144, %p145
      %p147 = scmp.ne.s32.totalorder %s136, %s137
      %p148 = scmp.eq.s32.totalorder %s18, 0
      %p149 = por %p147, %p148
      %p150 = scmp.ne.s32.totalorder %s136, %s137
      %p151 = scmp.eq.s32.totalorder %s19, 1
      %p152 = por %p150, %p151
      %p154 = scmp.ne.s32.totalorder %s137, %s153
      %p155 = scmp.eq.s32.totalorder %s19, 0
      %p156 = por %p154, %p155
      %p157 = scmp.le.s32.totalorder 1, %s13
      %p158 = scmp.lt.s32.totalorder %s13, 3
      %p159 = pnand %p157, %p158
      %p160 = pneg %p159
      // Predicated region
      $region9: #{residual_attention_block_ivlp.3} parent=5 // pred_check
        _
      $region10: #{residual_attention_block_ivlp.3} parent=5 // pred_check_branch
        %162 = sbr.rel (%p159) target = $region12
      $region11: #{residual_attention_block_ivlp.3} parent=5 // pred_region
        %s163 = ssub.s32 %s13, 1
        // Predicated region
        $region13: #{residual_attention_block_ivlp.3} parent=11 // pred_check
          %p164 = pneg %p60
        $region14: #{residual_attention_block_ivlp.3} parent=11 // pred_check_branch
          %166 = sbr.rel (%p164) target = $region16
        $region15: #{residual_attention_block_ivlp.3} parent=11 // pred_region
          %s168 = ssub.s32 16, 16
          %169 = vsyncadd [#allocation3], %s168
          %s171 = sshll.u32 [#allocation2], 4
          %s172 = int_to_ptr.vmem [resolvable:$true] %s171
          %174 = dma.hbm_to_vmem [thread:$0]  %s1, 16, %s172, [#allocation3]
        $region16: #{residual_attention_block_ivlp.3} parent=11 // pred_fallthru
          _
        // Predicated region
        $region17: #{residual_attention_block_ivlp.3} parent=11 // pred_check
          %p175 = pneg %p81
        $region18: #{residual_attention_block_ivlp.3} parent=11 // pred_check_branch
          %177 = sbr.rel (%p175) target = $region20
        $region19: #{residual_attention_block_ivlp.3} parent=11 // pred_region
          %s179 = ssub.s32 16, 16
          %180 = vsyncadd [#allocation5], %s179
          %s182 = sshll.u32 [#allocation4], 4
          %s183 = int_to_ptr.vmem [resolvable:$true] %s182
          %185 = dma.hbm_to_vmem [thread:$0]  %s2, 16, %s183, [#allocation5]
        $region20: #{residual_attention_block_ivlp.3} parent=11 // pred_fallthru
          _
        // Predicated region
        $region21: #{residual_attention_block_ivlp.3} parent=11 // pred_check
          %p186 = pneg %p102
        $region22: #{residual_attention_block_ivlp.3} parent=11 // pred_check_branch
          %188 = sbr.rel (%p186) target = $region24
        $region23: #{residual_attention_block_ivlp.3} parent=11 // pred_region
          _
        $region24: #{residual_attention_block_ivlp.3} parent=11 // pred_fallthru
          _
        // Predicated region
        $region25: #{residual_attention_block_ivlp.3} parent=11 // pred_check
          %p189 = pneg %p123
        $region26: #{residual_attention_block_ivlp.3} parent=11 // pred_check_branch
          %191 = sbr.rel (%p189) target = $region28
        $region27: #{residual_attention_block_ivlp.3} parent=11 // pred_region
          _
        $region28: #{residual_attention_block_ivlp.3} parent=11 // pred_fallthru
          _
      $region12: #{residual_attention_block_ivlp.3} parent=5 // pred_fallthru
        _
      %p192 = scmp.lt.s32.totalorder %s13, 2
      // Predicated region
      $region29: #{residual_attention_block_ivlp.3} parent=5 // pred_check
        %p193 = pneg %p192
      $region30: #{residual_attention_block_ivlp.3} parent=5 // pred_check_branch
        %195 = sbr.rel (%p193) target = $region32
      $region31: #{residual_attention_block_ivlp.3} parent=5 // pred_region
        // Predicated region
        $region33: #{residual_attention_block_ivlp.3} parent=31 // pred_check
          %p196 = pneg %p33
        $region34: #{residual_attention_block_ivlp.3} parent=31 // pred_check_branch
          %198 = sbr.rel (%p196) target = $region36
        $region35: #{residual_attention_block_ivlp.3} parent=31 // pred_region
          %s199 = smul.u32 2, %s13
          %p200 = scmp.lt.s32.totalorder %s199, 3
          %s201 = scalar_select %p200, %s199, 3
          %s202 = smul.addr %s201, 8
          %s203 = scalar_lea.vmem %s0, %s202
          %s204 = smul.u32 2, %s13
        $region36: #{residual_attention_block_ivlp.3} parent=31 // pred_fallthru
          _
      $region32: #{residual_attention_block_ivlp.3} parent=5 // pred_fallthru
        _
      %p205 = scmp.le.s32.totalorder 1, %s13
      %p206 = scmp.lt.s32.totalorder %s13, 3
      %p207 = pnand %p205, %p206
      %p208 = pneg %p207
      // Predicated region
      $region37: #{residual_attention_block_ivlp.3} parent=5 // pred_check
        _
      $region38: #{residual_attention_block_ivlp.3} parent=5 // pred_check_branch
        %210 = sbr.rel (%p207) target = $region40
      $region39: #{residual_attention_block_ivlp.3} parent=5 // pred_region
        %s211 = ssub.s32 %s13, 1
        // Predicated region
        $region41: #{residual_attention_block_ivlp.3} parent=39 // pred_check
          %p212 = pneg %p60
        $region42: #{residual_attention_block_ivlp.3} parent=39 // pred_check_branch
          %214 = sbr.rel (%p212) target = $region44
        $region43: #{residual_attention_block_ivlp.3} parent=39 // pred_region
          %215 = dma.done [#allocation3], 16
        $region44: #{residual_attention_block_ivlp.3} parent=39 // pred_fallthru
          _
        // Predicated region
        $region45: #{residual_attention_block_ivlp.3} parent=39 // pred_check
          %p216 = pneg %p81
        $region46: #{residual_attention_block_ivlp.3} parent=39 // pred_check_branch
          %218 = sbr.rel (%p216) target = $region48
        $region47: #{residual_attention_block_ivlp.3} parent=39 // pred_region
          %219 = dma.done [#allocation5], 16
        $region48: #{residual_attention_block_ivlp.3} parent=39 // pred_fallthru
          _
        %s220 = smul.u32 2, %s18
        %p221 = scmp.lt.s32.totalorder %s220, 3
        %s222 = scalar_select %p221, %s220, 3
        %s223 = smul.addr %s222, 8
        %s224 = scalar_lea.vmem %s0, %s223
        %p225 = pneg %p39
        %p226 = pneg %p36
        %p227 = pneg %p60
        %p228 = pneg %p57
        %p229 = pneg %p81
        %p230 = pneg %p78
        %p231 = pneg %p102
        %p232 = pneg %p99
        %p233 = pneg %p123
        %p234 = pneg %p120
        %p235 = pneg %p149
        %p236 = pneg %p146
        %s237 = sand.u32 %s136, 1
        %s238 = sand.u32 %s136, 1
        %s239 = smul.addr %s238, 24
        %s240 = scalar_lea.vmem [#allocation6], %s239
        %s241 = smul.u32 2, %s18
        %p242 = scmp.lt.s32.totalorder %s241, 3
        %s243 = scalar_select %p242, %s241, 3
        %s244 = smul.addr %s243, 8
        %s245 = scalar_lea.vmem %s0, %s244
        %s246 = smul.u32 2, %s18
        %s247 = smul.u32 2, %s18
        %v249 = vld [vmem:[%s245] sm:$0xff]
        %v250 = vld [vmem:[%s245 + $0x8] sm:$0xff]
        %v251 = vld [vmem:[#allocation2] sm:$0x1]
        %v252 = vld [vmem:[#allocation4] sm:$0x1]
        %253 = vadd.xlane.f32.xlu0 %v249
        %v254 = vpop.xlane.xlu0 %253
        %255 = vadd.xlane.f32.xlu0 %v250
        %v256 = vpop.xlane.xlu0 %255
        %v257 = vrcp.pop 128.0
        %v258 = vmul.f32 %v254, %v257
        %v259 = vmul.f32 %v256, %v257
        %v260 = vsub.f32 %v249, %v258
        %v261 = vsub.f32 %v250, %v259
        %v262 = vmul.f32 %v260, %v260
        %v263 = vmul.f32 %v261, %v261
        %264 = vadd.xlane.f32.xlu0 %v262
        %v265 = vpop.xlane.xlu0 %264
        %266 = vadd.xlane.f32.xlu0 %v263
        %v267 = vpop.xlane.xlu0 %266
        %v268 = vmul.f32 %v265, %v257
        %v269 = vmul.f32 %v267, %v257
        %v270 = vadd.f32 %v268, 1e-05
        %v271 = vadd.f32 %v269, 1e-05
        %v272 = vrsqrt.pop %v270
        %v273 = vrsqrt.pop %v271
        %v274 = vmul.f32 %v260, %v272
        %v275 = vmul.f32 %v261, %v273
        %v277 = vlaneseq
        %v278 = vshrl.u32 %v277, 7
        %v279 = vsub.s32 0, %v278
        %v280 = vrot.slane %v251, %v279
        %v282 = vmul.f32 %v274, %v280
        %v283 = vmul.f32 %v275, %v280
        %v285 = vlaneseq
        %v286 = vshrl.u32 %v285, 7
        %v287 = vsub.s32 0, %v286
        %v288 = vrot.slane %v252, %v287
        %v290 = vadd.f32 %v282, %v288
        %v291 = vadd.f32 %v283, %v288
        %v292 = vpack.c.bf16 %v291, %v290
        %v293 = vld [vmem:[%s3] sm:$0xff]
        %v294 = vld [vmem:[%s3 + $0x8] sm:$0xf]
        %v295 = vld [vmem:[%s3 + $0xc] sm:$0xff]
        %v296 = vld [vmem:[%s3 + $0x14] sm:$0xf]
        %v297 = vld [vmem:[%s3 + $0x18] sm:$0xff]
        %v298 = vld [vmem:[%s3 + $0x20] sm:$0xf]
        %v299 = vld [vmem:[%s3 + $0x24] sm:$0xff]
        %v300 = vld [vmem:[%s3 + $0x2c] sm:$0xf]
        %v301 = vld [vmem:[%s3 + $0x30] sm:$0xff]
        %v302 = vld [vmem:[%s3 + $0x38] sm:$0xf]
        %v303 = vld [vmem:[%s3 + $0x3c] sm:$0xff]
        %v304 = vld [vmem:[%s3 + $0x44] sm:$0xf]
        %v305 = vld [vmem:[%s3 + $0x48] sm:$0xff]
        %v306 = vld [vmem:[%s3 + $0x50] sm:$0xf]
        %v307 = vld [vmem:[%s3 + $0x54] sm:$0xff]
        %v308 = vld [vmem:[%s3 + $0x5c] sm:$0xf]
        %v309 = vld [vmem:[%s3 + $0x60] sm:$0xff]
        %v310 = vld [vmem:[%s3 + $0x68] sm:$0xf]
        %v311 = vld [vmem:[%s3 + $0x6c] sm:$0xff]
        %v312 = vld [vmem:[%s3 + $0x74] sm:$0xf]
        %v313 = vld [vmem:[%s3 + $0x78] sm:$0xff]
        %v314 = vld [vmem:[%s3 + $0x80] sm:$0xf]
        %v315 = vld [vmem:[%s3 + $0x84] sm:$0xff]
        %v316 = vld [vmem:[%s3 + $0x8c] sm:$0xf]
        %v317 = vld [vmem:[%s3 + $0x90] sm:$0xff]
        %v318 = vld [vmem:[%s3 + $0x98] sm:$0xf]
        %v319 = vld [vmem:[%s3 + $0x9c] sm:$0xff]
        %v320 = vld [vmem:[%s3 + $0xa4] sm:$0xf]
        %v321 = vld [vmem:[%s3 + $0xa8] sm:$0xff]
        %v322 = vld [vmem:[%s3 + $0xb0] sm:$0xf]
        %v323 = vld [vmem:[%s3 + $0xb4] sm:$0xff]
        %v324 = vld [vmem:[%s3 + $0xbc] sm:$0xf]
        %v325 = vld [vmem:[%s4] sm:$0x7]
        %v327 = vlaneseq
        %v328 = vshrl.u32 %v327, 7
        %v329 = vsub.s32 0, %v328
        %v330 = vrot.slane %v325, %v329
        %v331 = vlaneseq
        %v332 = vshrl.u32 %v331, 7
        %v333 = vsub.s32 1, %v332
        %v334 = vrot.slane %v325, %v333
        %v335 = vlaneseq
        %v336 = vshrl.u32 %v335, 7
        %v337 = vsub.s32 2, %v336
        %v338 = vrot.slane %v325, %v337
        %v374 = vunpack.c.l.b16 %v293
        %v375 = vunpack.c.h.b16 %v293
        %v376 = vunpack.c.l.b16 %v294
        %v377 = vunpack.c.l.b16 %v295
        %v378 = vunpack.c.h.b16 %v295
        %v379 = vunpack.c.l.b16 %v296
        %v380 = vunpack.c.l.b16 %v297
        %v381 = vunpack.c.h.b16 %v297
        %v382 = vunpack.c.l.b16 %v298
        %v383 = vunpack.c.l.b16 %v299
        %v384 = vunpack.c.h.b16 %v299
        %v385 = vunpack.c.l.b16 %v300
        %v386 = vunpack.c.l.b16 %v301
        %v387 = vunpack.c.h.b16 %v301
        %v388 = vunpack.c.l.b16 %v302
        %v389 = vunpack.c.l.b16 %v303
        %v390 = vunpack.c.h.b16 %v303
        %v391 = vunpack.c.l.b16 %v304
        %v392 = vunpack.c.l.b16 %v305
        %v393 = vunpack.c.h.b16 %v305
        %v394 = vunpack.c.l.b16 %v306
        %v395 = vunpack.c.l.b16 %v307
        %v396 = vunpack.c.h.b16 %v307
        %v397 = vunpack.c.l.b16 %v308
        %v398 = vunpack.c.l.b16 %v309
        %v399 = vunpack.c.h.b16 %v309
        %v400 = vunpack.c.l.b16 %v310
        %v401 = vunpack.c.l.b16 %v311
        %v402 = vunpack.c.h.b16 %v311
        %v403 = vunpack.c.l.b16 %v312
        %v404 = vunpack.c.l.b16 %v313
        %v405 = vunpack.c.h.b16 %v313
        %v406 = vunpack.c.l.b16 %v314
        %v407 = vunpack.c.l.b16 %v315
        %v408 = vunpack.c.h.b16 %v315
        %v409 = vunpack.c.l.b16 %v316
        %v410 = vunpack.c.l.b16 %v317
        %v411 = vunpack.c.h.b16 %v317
        %v412 = vunpack.c.l.b16 %v318
        %v413 = vunpack.c.l.b16 %v319
        %v414 = vunpack.c.h.b16 %v319
        %v415 = vunpack.c.l.b16 %v320
        %v416 = vunpack.c.l.b16 %v321
        %v417 = vunpack.c.h.b16 %v321
        %v418 = vunpack.c.l.b16 %v322
        %v419 = vunpack.c.l.b16 %v323
        %v420 = vunpack.c.h.b16 %v323
        %v421 = vunpack.c.l.b16 %v324
        %v422 = vpack.c.b16 %v377, %v374
        %v423 = vpack.c.b16 %v378, %v375
        %v424 = vpack.c.b16 %v379, %v376
        %v425 = vpack.c.b16 %v383, %v380
        %v426 = vpack.c.b16 %v384, %v381
        %v427 = vpack.c.b16 %v385, %v382
        %v428 = vpack.c.b16 %v389, %v386
        %v429 = vpack.c.b16 %v390, %v387
        %v430 = vpack.c.b16 %v391, %v388
        %v431 = vpack.c.b16 %v395, %v392
        %v432 = vpack.c.b16 %v396, %v393
        %v433 = vpack.c.b16 %v397, %v394
        %v434 = vpack.c.b16 %v401, %v398
        %v435 = vpack.c.b16 %v402, %v399
        %v436 = vpack.c.b16 %v403, %v400
        %v437 = vpack.c.b16 %v407, %v404
        %v438 = vpack.c.b16 %v408, %v405
        %v439 = vpack.c.b16 %v409, %v406
        %v440 = vpack.c.b16 %v413, %v410
        %v441 = vpack.c.b16 %v414, %v411
        %v442 = vpack.c.b16 %v415, %v412
        %v443 = vpack.c.b16 %v419, %v416
        %v444 = vpack.c.b16 %v420, %v417
        %v445 = vpack.c.b16 %v421, %v418
        %470 = vmatprep.subr.bf16.mxu0 %v423
        %471 = vmatpush1.bf16.msra.mxu0 %v422
        %472 = vmatprep.subr.bf16.mxu0 %v426
        %473 = vmatpush1.bf16.msra.mxu0 %v425
        %474 = vmatprep.subr.bf16.mxu0 %v429
        %475 = vmatpush1.bf16.msra.mxu0 %v428
        %476 = vmatprep.subr.bf16.mxu0 %v432
        %477 = vmatpush1.bf16.msra.mxu0 %v431
        %478 = vmatprep.subr.bf16.mxu0 %v435
        %479 = vmatpush1.bf16.msra.mxu0 %v434
        %480 = vmatprep.subr.bf16.mxu0 %v438
        %481 = vmatpush1.bf16.msra.mxu0 %v437
        %482 = vmatprep.subr.bf16.mxu0 %v441
        %483 = vmatpush1.bf16.msra.mxu0 %v440
        %484 = vmatprep.subr.bf16.mxu0 %v444
        %485 = vmatpush1.bf16.msra.mxu0 %v443
        %486 = vmatprep.subr.bf16.mxu0 0
        %487 = vmatpush1.bf16.msra.mxu0 0
        %488 = vmatprep.subr.bf16.mxu0 0
        %489 = vmatpush1.bf16.msra.mxu0 0
        %490 = vmatprep.subr.bf16.mxu0 0
        %491 = vmatpush1.bf16.msra.mxu0 0
        %492 = vmatprep.subr.bf16.mxu0 0
        %493 = vmatpush1.bf16.msra.mxu0 0
        %494 = vmatprep.subr.bf16.mxu0 0
        %495 = vmatpush1.bf16.msra.mxu0 0
        %496 = vmatprep.subr.bf16.mxu0 0
        %497 = vmatpush1.bf16.msra.mxu0 0
        %498 = vmatprep.subr.bf16.mxu0 0
        %499 = vmatpush1.bf16.msra.mxu0 0
        %500 = vmatprep.subr.bf16.mxu0 0
        %501 = vmatpush1.bf16.msra.mxu0 0
        %502 = vmatprep.mubr.bf16.mxu0 0
        %503 = vmatmul.mubr.bf16.gmra.mrb[0].mxu0 %v292
        %v504 = vpop.f32.mrb[0].mxu0
        %v505 = vadd.f32 %v330, %v504
        %v506 = vpop.f32.mrb[0].mxu0
        %v507 = vadd.f32 %v334, %v506
        %v508 = vpop.f32.mrb[0].mxu0
        %v509 = vadd.f32 %v330, %v508
        %v510 = vpop.f32.mrb[0].mxu0
        %v511 = vadd.f32 %v334, %v510
        %512 = vdwg.mxu0
        %513 = vmatprep.subr.bf16.mxu0 0
        %514 = vmatpush1.bf16.msra.mxu0 %v424
        %515 = vmatprep.subr.bf16.mxu0 0
        %516 = vmatpush1.bf16.msra.mxu0 %v427
        %517 = vmatprep.subr.bf16.mxu0 0
        %518 = vmatpush1.bf16.msra.mxu0 %v430
        %519 = vmatprep.subr.bf16.mxu0 0
        %520 = vmatpush1.bf16.msra.mxu0 %v433
        %521 = vmatprep.subr.bf16.mxu0 0
        %522 = vmatpush1.bf16.msra.mxu0 %v436
        %523 = vmatprep.subr.bf16.mxu0 0
        %524 = vmatpush1.bf16.msra.mxu0 %v439
        %525 = vmatprep.subr.bf16.mxu0 0
        %526 = vmatpush1.bf16.msra.mxu0 %v442
        %527 = vmatprep.subr.bf16.mxu0 0
        %528 = vmatpush1.bf16.msra.mxu0 %v445
        %529 = vmatprep.subr.bf16.mxu0 0
        %530 = vmatpush1.bf16.msra.mxu0 0
        %531 = vmatprep.subr.bf16.mxu0 0
        %532 = vmatpush1.bf16.msra.mxu0 0
        %533 = vmatprep.subr.bf16.mxu0 0
        %534 = vmatpush1.bf16.msra.mxu0 0
        %535 = vmatprep.subr.bf16.mxu0 0
        %536 = vmatpush1.bf16.msra.mxu0 0
        %537 = vmatprep.subr.bf16.mxu0 0
        %538 = vmatpush1.bf16.msra.mxu0 0
        %539 = vmatprep.subr.bf16.mxu0 0
        %540 = vmatpush1.bf16.msra.mxu0 0
        %541 = vmatprep.subr.bf16.mxu0 0
        %542 = vmatpush1.bf16.msra.mxu0 0
        %543 = vmatprep.subr.bf16.mxu0 0
        %544 = vmatpush1.bf16.msra.mxu0 0
        %545 = vmatprep.mubr.bf16.mxu0 0
        %546 = vmatmul.mubr.bf16.gmra.mrb[0].mxu0 %v292
        %v547 = vpop.f32.mrb[0].mxu0
        %v548 = vadd.f32 %v338, %v547
        %v549 = vpop.f32.mrb[0].mxu0
        %v550 = vpop.f32.mrb[0].mxu0
        %v551 = vadd.f32 %v338, %v550
        %v552 = vpop.f32.mrb[0].mxu0
        %553 = vdwg.mxu0
        %v554 = vpack.c.bf16 %v509, %v505
        %v555 = vpack.c.bf16 %v511, %v507
        %v556 = vpack.c.bf16 %v551, %v548
        %v558 = vunpack.c.l.b16 %v554
        %v559 = vunpack.c.h.b16 %v554
        %v560 = vpack.c.b16 %v558, %v558
        %v561 = vpack.c.b16 %v559, %v559
        %564 = vst [vmem:[%s240] sm:$0xf] %v560
        %565 = vst [vmem:[%s240 + $0x4] sm:$0xf] %v561
        %v567 = vunpack.c.l.b16 %v555
        %v568 = vunpack.c.h.b16 %v555
        %v569 = vpack.c.b16 %v567, %v567
        %v570 = vpack.c.b16 %v568, %v568
        %s573 = scalar_lea.vmem %s240, 8 [#allocation6]
        %574 = vst [vmem:[%s573] sm:$0xf] %v569
        %575 = vst [vmem:[%s573 + $0x4] sm:$0xf] %v570
        %v577 = vunpack.c.l.b16 %v556
        %v578 = vunpack.c.h.b16 %v556
        %v579 = vpack.c.b16 %v577, %v577
        %v580 = vpack.c.b16 %v578, %v578
        %s583 = scalar_lea.vmem %s240, 16 [#allocation6]
        %584 = vst [vmem:[%s583] sm:$0xf] %v579
        %585 = vst [vmem:[%s583 + $0x4] sm:$0xf] %v580
        %s586 = sand.u32 %s136, 1
        %s587 = sand.u32 %s136, 1
        %s588 = smul.addr %s587, 24
        %s589 = scalar_lea.vmem [#allocation6], %s588
        // Predicated region
        $region49: #{residual_attention_block_ivlp.3} parent=39 // pred_check
          %p590 = pneg %p146
        $region50: #{residual_attention_block_ivlp.3} parent=39 // pred_check_branch
          %592 = sbr.rel (%p590) target = $region52
        $region51: #{residual_attention_block_ivlp.3} parent=39 // pred_region
          %s593 = smul.u32 2, %s18
          %s594 = smul.addr %s593, 4
          %s595 = scalar_lea.vmem %s5, %s594
          // Predicated region
          $region53: #{residual_attention_block_ivlp.3} parent=51 // pred_check
            _
          $region54: #{residual_attention_block_ivlp.3} parent=51 // pred_check_branch
            %597 = sbr.rel (0) target = $region56
          $region55: #{residual_attention_block_ivlp.3} parent=51 // pred_region
            // Predicated region
            $region57: #{residual_attention_block_ivlp.3} parent=55 // pred_check
              _
            $region58: #{residual_attention_block_ivlp.3} parent=55 // pred_check_branch
              %599 = sbr.rel target = $region60
            $region59: #{residual_attention_block_ivlp.3} parent=55 // pred_region
              // Predicated region
              $region72: #{residual_attention_block_ivlp.3} parent=59 // pred_check
                _
              $region73: #{residual_attention_block_ivlp.3} parent=59 // pred_check_branch
                %624 = sbr.rel (0) target = $region75
              $region74: #{residual_attention_block_ivlp.3} parent=59 // pred_region
                loop: start=0, step=1, limit=1
                $region76: #{residual_attention_block_ivlp.3} parent=74 // loop_pre_header
                  _
                $region77: #{residual_attention_block_ivlp.3} parent=74 // loop_header
                  %s626 = sphi 0, %s630
                  %p627 = scmp.ge.s32.totalorder %s626, 1
                  %s631 = sphi %s589, %s589
                  %s632 = sphi %s595, %s595
                $region78: #{residual_attention_block_ivlp.3} parent=74 // loop_header_branch
                  %629 = sbr.rel (%p627) target = $region82
                $region79: #{residual_attention_block_ivlp.3} parent=74 // loop_body
                  _
                $region80: #{residual_attention_block_ivlp.3} parent=74 // loop_footer
                  %s630 = sadd.s32 1, %s626
                $region81: #{residual_attention_block_ivlp.3} parent=74 // loop_footer_branch
                  %625 = sbr.rel target = $region77
                $region82: #{residual_attention_block_ivlp.3} parent=74 // loop_exit
                  _
                loop: start=0, step=1, limit=1
                $region83: #{residual_attention_block_ivlp.3} parent=74 // loop_pre_header
                  _
                $region84: #{residual_attention_block_ivlp.3} parent=74 // loop_header
                  %s635 = sphi 0, %s639
                  %p636 = scmp.ge.s32.totalorder %s635, 1
                  %s640 = sphi %s589, %s589
                  %s641 = sphi %s595, %s595
                $region85: #{residual_attention_block_ivlp.3} parent=74 // loop_header_branch
                  %638 = sbr.rel (%p636) target = $region89
                $region86: #{residual_attention_block_ivlp.3} parent=74 // loop_body
                  %v642 = vld [vmem:[%s640] sm:$0xf]
                  %643 = vst [vmem:[%s641] sm:$0xf] %v642
                  %v644 = vld [vmem:[%s640 + $0x4] sm:$0xf]
                  %645 = vst [vmem:[%s641 + $0x4] sm:$0xf] %v644
                  %v646 = vld [vmem:[%s640 + $0x8] sm:$0xf]
                  %647 = vst [vmem:[%s641 + $0x10] sm:$0xf] %v646
                  %v648 = vld [vmem:[%s640 + $0xc] sm:$0xf]
                  %649 = vst [vmem:[%s641 + $0x14] sm:$0xf] %v648
                  %v650 = vld [vmem:[%s640 + $0x10] sm:$0xf]
                  %651 = vst [vmem:[%s641 + $0x20] sm:$0xf] %v650
                  %v652 = vld [vmem:[%s640 + $0x14] sm:$0xf]
                  %653 = vst [vmem:[%s641 + $0x24] sm:$0xf] %v652
                $region87: #{residual_attention_block_ivlp.3} parent=74 // loop_footer
                  %s639 = sadd.s32 1, %s635
                $region88: #{residual_attention_block_ivlp.3} parent=74 // loop_footer_branch
                  %634 = sbr.rel target = $region84
                $region89: #{residual_attention_block_ivlp.3} parent=74 // loop_exit
                  _
              $region75: #{residual_attention_block_ivlp.3} parent=59 // pred_fallthru
                _
            $region60: #{residual_attention_block_ivlp.3} parent=55 // pred_fallthru
              _
            // Predicated region
            $region61: #{residual_attention_block_ivlp.3} parent=55 // pred_check
              _
            $region62: #{residual_attention_block_ivlp.3} parent=55 // pred_check_branch
              %601 = sbr.rel (0) target = $region64
            $region63: #{residual_attention_block_ivlp.3} parent=55 // pred_region
              loop: start=0, step=1, limit=1
              $region65: #{residual_attention_block_ivlp.3} parent=63 // loop_pre_header
                _
              $region66: #{residual_attention_block_ivlp.3} parent=63 // loop_header
                %s604 = sphi 0, %s608
                %p605 = scmp.ge.s32.totalorder %s604, 1
                %s609 = sphi %s589, %s589
                %s610 = sphi %s595, %s595
              $region67: #{residual_attention_block_ivlp.3} parent=63 // loop_header_branch
                %607 = sbr.rel (%p605) target = $region71
              $region68: #{residual_attention_block_ivlp.3} parent=63 // loop_body
                %v611 = vld [vmem:[%s609] sm:$0xf]
                %612 = vst [vmem:[%s610] sm:$0xf] %v611
                %v613 = vld [vmem:[%s609 + $0x4] sm:$0xf]
                %614 = vst [vmem:[%s610 + $0x4] sm:$0xf] %v613
                %v615 = vld [vmem:[%s609 + $0x8] sm:$0xf]
                %616 = vst [vmem:[%s610 + $0x10] sm:$0xf] %v615
                %v617 = vld [vmem:[%s609 + $0xc] sm:$0xf]
                %618 = vst [vmem:[%s610 + $0x14] sm:$0xf] %v617
                %v619 = vld [vmem:[%s609 + $0x10] sm:$0xf]
                %620 = vst [vmem:[%s610 + $0x20] sm:$0xf] %v619
                %v621 = vld [vmem:[%s609 + $0x14] sm:$0xf]
                %622 = vst [vmem:[%s610 + $0x24] sm:$0xf] %v621
              $region69: #{residual_attention_block_ivlp.3} parent=63 // loop_footer
                %s608 = sadd.s32 1, %s604
              $region70: #{residual_attention_block_ivlp.3} parent=63 // loop_footer_branch
                %603 = sbr.rel target = $region66
              $region71: #{residual_attention_block_ivlp.3} parent=63 // loop_exit
                _
            $region64: #{residual_attention_block_ivlp.3} parent=55 // pred_fallthru
              _
          $region56: #{residual_attention_block_ivlp.3} parent=51 // pred_fallthru
            _
          %654 = vnop
        $region52: #{residual_attention_block_ivlp.3} parent=39 // pred_fallthru
          _
      $region40: #{residual_attention_block_ivlp.3} parent=5 // pred_fallthru
        _
      %p655 = scmp.le.s32.totalorder 2, %s13
      // Predicated region
      $region90: #{residual_attention_block_ivlp.3} parent=5 // pred_check
        %p656 = pneg %p655
      $region91: #{residual_attention_block_ivlp.3} parent=5 // pred_check_branch
        %658 = sbr.rel (%p656) target = $region93
      $region92: #{residual_attention_block_ivlp.3} parent=5 // pred_region
        %s659 = ssub.s32 %s13, 2
        // Predicated region
        $region94: #{residual_attention_block_ivlp.3} parent=92 // pred_check
          %p660 = pneg %p152
        $region95: #{residual_attention_block_ivlp.3} parent=92 // pred_check_branch
          %662 = sbr.rel (%p660) target = $region97
        $region96: #{residual_attention_block_ivlp.3} parent=92 // pred_region
          %s663 = sand.u32 %s137, 1
          %s664 = sand.u32 %s137, 1
          %s665 = smul.addr %s664, 24
          %s666 = scalar_lea.vmem [#allocation6], %s665
        $region97: #{residual_attention_block_ivlp.3} parent=92 // pred_fallthru
          _
      $region93: #{residual_attention_block_ivlp.3} parent=5 // pred_fallthru
        _
    $region6: #{residual_attention_block_ivlp.3} parent=1 // loop_footer
      %s17 = sadd.s32 1, %s13
    $region7: #{residual_attention_block_ivlp.3} parent=1 // loop_footer_branch
      %12 = sbr.rel target = $region3
    $region8: #{residual_attention_block_ivlp.3} parent=1 // loop_exit
      _
    %667 = vsyncpa [#allocation3], 1
    %s668 = scalar_lea.sflag [#allocation3], 1
    %669 = vsyncpa %s668, 1
    %670 = vsyncpa [#allocation5], 1

// kernel: residual_attention_block_ivlp.5
$region0: #{residual_attention_block_ivlp.5}
  #allocation0 [shape = 'u32[]', space=smem, size = 0x4, offset = 0x4, fixed_abs, tag = 'smem constant byte address 0x4 - core index']
  #allocation1 [shape = 'u32[144,128]{1,0:T(1,128)}', space=vmem, size = 0x12000, scoped, tag = 'internal scratch']
  %s0 = inlined_call_operand.vmem [shape: f32[32,128], index: 0, kind: input, shape index: {}]
  %s1 = inlined_call_operand.hbm [shape: f32[1,128], index: 1, kind: input, shape index: {}]
  %s2 = inlined_call_operand.hbm [shape: f32[1,128], index: 2, kind: input, shape index: {}]
  %s3 = inlined_call_operand.vmem [shape: bf16[128,512], index: 3, kind: input, shape index: {}]
  %s4 = inlined_call_operand.hbm [shape: f32[1,512], index: 4, kind: input, shape index: {}]
  %s5 = inlined_call_operand.vmem [shape: bf16[512,128], index: 5, kind: input, shape index: {}]
  %s6 = inlined_call_operand.hbm [shape: f32[1,128], index: 6, kind: input, shape index: {}]
  %s7 = inlined_call_operand.vmem [shape: f32[32,128], index: 7, kind: output, shape index: {}]
  %s8 = sld [smem:[#allocation0]]
  $region77: #{residual_attention_block_ivlp.5} parent=0
    _
  %s10 = ssub.s32 1, %s8
  %s11 = scalar_select 0, %s10, %s8
  $region1: #{residual_attention_block_ivlp.5} parent=0
    #allocation2 [shape = 'u8[512]{0}', space=vmem, size = 0x400, scoped, tag = 'input window, operand 1, single buffered']
    #allocation3 [shape = 's32[2]{0}', space=sflag, size = 0x8, scoped, tag = 'scoped memory for residual_attention_block_ivlp.5']
    #allocation4 [shape = 'u8[512]{0}', space=vmem, size = 0x400, scoped, tag = 'input window, operand 2, single buffered']
    #allocation5 [shape = 's32[1]{0}', space=sflag, size = 0x4, scoped, tag = 'scoped memory for residual_attention_block_ivlp.5']
    #allocation6 [shape = 'u8[2048]{0}', space=vmem, size = 0x800, scoped, tag = 'input window, operand 4, single buffered']
    #allocation7 [shape = 'u8[512]{0}', space=vmem, size = 0x400, scoped, tag = 'input window, operand 6, single buffered']
    #allocation8 [shape = 's32[1]{0}', space=sflag, size = 0x4, scoped, tag = 'scoped memory for residual_attention_block_ivlp.5']
    %12 = vsyncpa [#allocation3], 0
    %13 = vsyncpa [#allocation5], 0
    %14 = vsyncpa [#allocation8], 0
    loop: start=0, step=1, limit=4
    $region2: #{residual_attention_block_ivlp.5} parent=1 // loop_pre_header
      _
    $region3: #{residual_attention_block_ivlp.5} parent=1 // loop_header
      %s16 = sphi 0, %s20
      %p17 = scmp.ge.s32.totalorder %s16, 4
      %s26 = sphi 0, %s28
      %s29 = sphi 0, %s26
      %s30 = sphi 0, %s29
      %s46 = sphi 0, %s30
      %s50 = sphi 0, %s50
      %s52 = sphi 0, %s50
      %s53 = sphi 0, %s52
      %s67 = sphi 0, %s53
      %s71 = sphi 0, %s71
      %s73 = sphi 0, %s71
      %s74 = sphi 0, %s73
      %s88 = sphi 0, %s74
      %s92 = sphi 0, %s92
      %s94 = sphi 0, %s92
      %s95 = sphi 0, %s94
      %s109 = sphi 0, %s95
      %s113 = sphi 0, %s113
      %s115 = sphi 0, %s113
      %s116 = sphi 0, %s115
      %s130 = sphi 0, %s116
      %s134 = sphi 0, %s134
      %s136 = sphi 0, %s134
      %s137 = sphi 0, %s136
      %s151 = sphi 0, %s137
      %s155 = sphi 0, %s155
      %s157 = sphi 0, %s155
      %s158 = sphi 0, %s157
      %s172 = sphi 0, %s158
      %s178 = sphi 0, %s180
      %s181 = sphi 0, %s178
      %s182 = sphi 0, %s181
      %s198 = sphi 0, %s182
    $region4: #{residual_attention_block_ivlp.5} parent=1 // loop_header_branch
      %19 = sbr.rel (%p17) target = $region8
    $region5: #{residual_attention_block_ivlp.5} parent=1 // loop_body
      %s21 = ssub.s32 %s16, 1
      %s22 = ssub.s32 %s16, 2
      %s23 = sadd.s32 %s16, 1
      %s24 = ssub.s32 %s16, %s23
      %p25 = scmp.eq.s32.totalorder %s24, 0
      %s27 = sadd.s32 %s26, 1
      %s28 = scalar_select %p25, %s26, %s27
      %p31 = pneg %p25
      %p32 = scmp.eq.s32.totalorder %s16, 1
      %p33 = por %p31, %p32
      %p34 = scmp.ne.s32.totalorder %s26, %s29
      %p35 = scmp.eq.s32.totalorder %s16, 0
      %p36 = por %p34, %p35
      %p37 = scmp.ne.s32.totalorder %s26, %s29
      %p38 = scmp.eq.s32.totalorder %s21, 1
      %p39 = por %p37, %p38
      %p40 = scmp.ne.s32.totalorder %s29, %s30
      %p41 = scmp.eq.s32.totalorder %s21, 0
      %p42 = por %p40, %p41
      %p43 = scmp.ne.s32.totalorder %s29, %s30
      %p44 = scmp.eq.s32.totalorder %s22, 1
      %p45 = por %p43, %p44
      %p47 = scmp.ne.s32.totalorder %s30, %s46
      %p48 = scmp.eq.s32.totalorder %s22, 0
      %p49 = por %p47, %p48
      %s51 = sadd.s32 %s50, 1
      %p54 = scmp.eq.s32.totalorder %s16, 1
      %p55 = scmp.ne.s32.totalorder %s50, %s52
      %p56 = scmp.eq.s32.totalorder %s16, 0
      %p57 = por %p55, %p56
      %p58 = scmp.ne.s32.totalorder %s50, %s52
      %p59 = scmp.eq.s32.totalorder %s21, 1
      %p60 = por %p58, %p59
      %p61 = scmp.ne.s32.totalorder %s52, %s53
      %p62 = scmp.eq.s32.totalorder %s21, 0
      %p63 = por %p61, %p62
      %p64 = scmp.ne.s32.totalorder %s52, %s53
      %p65 = scmp.eq.s32.totalorder %s22, 1
      %p66 = por %p64, %p65
      %p68 = scmp.ne.s32.totalorder %s53, %s67
      %p69 = scmp.eq.s32.totalorder %s22, 0
      %p70 = por %p68, %p69
      %s72 = sadd.s32 %s71, 1
      %p75 = scmp.eq.s32.totalorder %s16, 1
      %p76 = scmp.ne.s32.totalorder %s71, %s73
      %p77 = scmp.eq.s32.totalorder %s16, 0
      %p78 = por %p76, %p77
      %p79 = scmp.ne.s32.totalorder %s71, %s73
      %p80 = scmp.eq.s32.totalorder %s21, 1
      %p81 = por %p79, %p80
      %p82 = scmp.ne.s32.totalorder %s73, %s74
      %p83 = scmp.eq.s32.totalorder %s21, 0
      %p84 = por %p82, %p83
      %p85 = scmp.ne.s32.totalorder %s73, %s74
      %p86 = scmp.eq.s32.totalorder %s22, 1
      %p87 = por %p85, %p86
      %p89 = scmp.ne.s32.totalorder %s74, %s88
      %p90 = scmp.eq.s32.totalorder %s22, 0
      %p91 = por %p89, %p90
      %s93 = sadd.s32 %s92, 1
      %p96 = scmp.eq.s32.totalorder %s16, 1
      %p97 = scmp.ne.s32.totalorder %s92, %s94
      %p98 = scmp.eq.s32.totalorder %s16, 0
      %p99 = por %p97, %p98
      %p100 = scmp.ne.s32.totalorder %s92, %s94
      %p101 = scmp.eq.s32.totalorder %s21, 1
      %p102 = por %p100, %p101
      %p103 = scmp.ne.s32.totalorder %s94, %s95
      %p104 = scmp.eq.s32.totalorder %s21, 0
      %p105 = por %p103, %p104
      %p106 = scmp.ne.s32.totalorder %s94, %s95
      %p107 = scmp.eq.s32.totalorder %s22, 1
      %p108 = por %p106, %p107
      %p110 = scmp.ne.s32.totalorder %s95, %s109
      %p111 = scmp.eq.s32.totalorder %s22, 0
      %p112 = por %p110, %p111
      %s114 = sadd.s32 %s113, 1
      %p117 = scmp.eq.s32.totalorder %s16, 1
      %p118 = scmp.ne.s32.totalorder %s113, %s115
      %p119 = scmp.eq.s32.totalorder %s16, 0
      %p120 = por %p118, %p119
      %p121 = scmp.ne.s32.totalorder %s113, %s115
      %p122 = scmp.eq.s32.totalorder %s21, 1
      %p123 = por %p121, %p122
      %p124 = scmp.ne.s32.totalorder %s115, %s116
      %p125 = scmp.eq.s32.totalorder %s21, 0
      %p126 = por %p124, %p125
      %p127 = scmp.ne.s32.totalorder %s115, %s116
      %p128 = scmp.eq.s32.totalorder %s22, 1
      %p129 = por %p127, %p128
      %p131 = scmp.ne.s32.totalorder %s116, %s130
      %p132 = scmp.eq.s32.totalorder %s22, 0
      %p133 = por %p131, %p132
      %s135 = sadd.s32 %s134, 1
      %p138 = scmp.eq.s32.totalorder %s16, 1
      %p139 = scmp.ne.s32.totalorder %s134, %s136
      %p140 = scmp.eq.s32.totalorder %s16, 0
      %p141 = por %p139, %p140
      %p142 = scmp.ne.s32.totalorder %s134, %s136
      %p143 = scmp.eq.s32.totalorder %s21, 1
      %p144 = por %p142, %p143
      %p145 = scmp.ne.s32.totalorder %s136, %s137
      %p146 = scmp.eq.s32.totalorder %s21, 0
      %p147 = por %p145, %p146
      %p148 = scmp.ne.s32.totalorder %s136, %s137
      %p149 = scmp.eq.s32.totalorder %s22, 1
      %p150 = por %p148, %p149
      %p152 = scmp.ne.s32.totalorder %s137, %s151
      %p153 = scmp.eq.s32.totalorder %s22, 0
      %p154 = por %p152, %p153
      %s156 = sadd.s32 %s155, 1
      %p159 = scmp.eq.s32.totalorder %s16, 1
      %p160 = scmp.ne.s32.totalorder %s155, %s157
      %p161 = scmp.eq.s32.totalorder %s16, 0
      %p162 = por %p160, %p161
      %p163 = scmp.ne.s32.totalorder %s155, %s157
      %p164 = scmp.eq.s32.totalorder %s21, 1
      %p165 = por %p163, %p164
      %p166 = scmp.ne.s32.totalorder %s157, %s158
      %p167 = scmp.eq.s32.totalorder %s21, 0
      %p168 = por %p166, %p167
      %p169 = scmp.ne.s32.totalorder %s157, %s158
      %p170 = scmp.eq.s32.totalorder %s22, 1
      %p171 = por %p169, %p170
      %p173 = scmp.ne.s32.totalorder %s158, %s172
      %p174 = scmp.eq.s32.totalorder %s22, 0
      %p175 = por %p173, %p174
      %s176 = ssub.s32 %s16, %s23
      %p177 = scmp.eq.s32.totalorder %s176, 0
      %s179 = sadd.s32 %s178, 1
      %s180 = scalar_select %p177, %s178, %s179
      %p183 = pneg %p177
      %p184 = scmp.eq.s32.totalorder %s16, 1
      %p185 = por %p183, %p184
      %p186 = scmp.ne.s32.totalorder %s178, %s181
      %p187 = scmp.eq.s32.totalorder %s16, 0
      %p188 = por %p186, %p187
      %p189 = scmp.ne.s32.totalorder %s178, %s181
      %p190 = scmp.eq.s32.totalorder %s21, 1
      %p191 = por %p189, %p190
      %p192 = scmp.ne.s32.totalorder %s181, %s182
      %p193 = scmp.eq.s32.totalorder %s21, 0
      %p194 = por %p192, %p193
      %p195 = scmp.ne.s32.totalorder %s181, %s182
      %p196 = scmp.eq.s32.totalorder %s22, 1
      %p197 = por %p195, %p196
      %p199 = scmp.ne.s32.totalorder %s182, %s198
      %p200 = scmp.eq.s32.totalorder %s22, 0
      %p201 = por %p199, %p200
      %p202 = scmp.le.s32.totalorder 1, %s16
      %p203 = scmp.lt.s32.totalorder %s16, 3
      %p204 = pnand %p202, %p203
      %p205 = pneg %p204
      // Predicated region
      $region9: #{residual_attention_block_ivlp.5} parent=5 // pred_check
        _
      $region10: #{residual_attention_block_ivlp.5} parent=5 // pred_check_branch
        %207 = sbr.rel (%p204) target = $region12
      $region11: #{residual_attention_block_ivlp.5} parent=5 // pred_region
        %s208 = ssub.s32 %s16, 1
        // Predicated region
        $region13: #{residual_attention_block_ivlp.5} parent=11 // pred_check
          %p209 = pneg %p63
        $region14: #{residual_attention_block_ivlp.5} parent=11 // pred_check_branch
          %211 = sbr.rel (%p209) target = $region16
        $region15: #{residual_attention_block_ivlp.5} parent=11 // pred_region
          %s213 = ssub.s32 16, 16
          %214 = vsyncadd [#allocation3], %s213
          %s216 = sshll.u32 [#allocation2], 4
          %s217 = int_to_ptr.vmem [resolvable:$true] %s216
          %219 = dma.hbm_to_vmem [thread:$0]  %s1, 16, %s217, [#allocation3]
        $region16: #{residual_attention_block_ivlp.5} parent=11 // pred_fallthru
          _
        // Predicated region
        $region17: #{residual_attention_block_ivlp.5} parent=11 // pred_check
          %p220 = pneg %p84
        $region18: #{residual_attention_block_ivlp.5} parent=11 // pred_check_branch
          %222 = sbr.rel (%p220) target = $region20
        $region19: #{residual_attention_block_ivlp.5} parent=11 // pred_region
          %s224 = ssub.s32 16, 16
          %225 = vsyncadd [#allocation5], %s224
          %s227 = sshll.u32 [#allocation4], 4
          %s228 = int_to_ptr.vmem [resolvable:$true] %s227
          %230 = dma.hbm_to_vmem [thread:$0]  %s2, 16, %s228, [#allocation5]
        $region20: #{residual_attention_block_ivlp.5} parent=11 // pred_fallthru
          _
        // Predicated region
        $region21: #{residual_attention_block_ivlp.5} parent=11 // pred_check
          %p231 = pneg %p105
        $region22: #{residual_attention_block_ivlp.5} parent=11 // pred_check_branch
          %233 = sbr.rel (%p231) target = $region24
        $region23: #{residual_attention_block_ivlp.5} parent=11 // pred_region
          _
        $region24: #{residual_attention_block_ivlp.5} parent=11 // pred_fallthru
          _
        // Predicated region
        $region25: #{residual_attention_block_ivlp.5} parent=11 // pred_check
          %p234 = pneg %p126
        $region26: #{residual_attention_block_ivlp.5} parent=11 // pred_check_branch
          %236 = sbr.rel (%p234) target = $region28
        $region27: #{residual_attention_block_ivlp.5} parent=11 // pred_region
          %s238 = ssub.s32 64, 64
          %239 = vsyncadd [#allocation5], %s238
          %s241 = sshll.u32 [#allocation6], 4
          %s242 = int_to_ptr.vmem [resolvable:$true] %s241
          %244 = dma.hbm_to_vmem [thread:$0]  %s4, 64, %s242, [#allocation5]
        $region28: #{residual_attention_block_ivlp.5} parent=11 // pred_fallthru
          _
        // Predicated region
        $region29: #{residual_attention_block_ivlp.5} parent=11 // pred_check
          %p245 = pneg %p147
        $region30: #{residual_attention_block_ivlp.5} parent=11 // pred_check_branch
          %247 = sbr.rel (%p245) target = $region32
        $region31: #{residual_attention_block_ivlp.5} parent=11 // pred_region
          _
        $region32: #{residual_attention_block_ivlp.5} parent=11 // pred_fallthru
          _
        // Predicated region
        $region33: #{residual_attention_block_ivlp.5} parent=11 // pred_check
          %p248 = pneg %p168
        $region34: #{residual_attention_block_ivlp.5} parent=11 // pred_check_branch
          %250 = sbr.rel (%p248) target = $region36
        $region35: #{residual_attention_block_ivlp.5} parent=11 // pred_region
          %s252 = ssub.s32 16, 16
          %253 = vsyncadd [#allocation8], %s252
          %s255 = sshll.u32 [#allocation7], 4
          %s256 = int_to_ptr.vmem [resolvable:$true] %s255
          %258 = dma.hbm_to_vmem [thread:$0]  %s6, 16, %s256, [#allocation8]
        $region36: #{residual_attention_block_ivlp.5} parent=11 // pred_fallthru
          _
      $region12: #{residual_attention_block_ivlp.5} parent=5 // pred_fallthru
        _
      %p259 = scmp.lt.s32.totalorder %s16, 2
      // Predicated region
      $region37: #{residual_attention_block_ivlp.5} parent=5 // pred_check
        %p260 = pneg %p259
      $region38: #{residual_attention_block_ivlp.5} parent=5 // pred_check_branch
        %262 = sbr.rel (%p260) target = $region40
      $region39: #{residual_attention_block_ivlp.5} parent=5 // pred_region
        // Predicated region
        $region41: #{residual_attention_block_ivlp.5} parent=39 // pred_check
          %p263 = pneg %p36
        $region42: #{residual_attention_block_ivlp.5} parent=39 // pred_check_branch
          %265 = sbr.rel (%p263) target = $region44
        $region43: #{residual_attention_block_ivlp.5} parent=39 // pred_region
          %s266 = smul.u32 2, %s16
          %p267 = scmp.lt.s32.totalorder %s266, 3
          %s268 = scalar_select %p267, %s266, 3
          %s269 = smul.addr %s268, 8
          %s270 = scalar_lea.vmem %s0, %s269
          %s271 = smul.u32 2, %s16
        $region44: #{residual_attention_block_ivlp.5} parent=39 // pred_fallthru
          _
      $region40: #{residual_attention_block_ivlp.5} parent=5 // pred_fallthru
        _
      %p272 = scmp.le.s32.totalorder 1, %s16
      %p273 = scmp.lt.s32.totalorder %s16, 3
      %p274 = pnand %p272, %p273
      %p275 = pneg %p274
      // Predicated region
      $region45: #{residual_attention_block_ivlp.5} parent=5 // pred_check
        _
      $region46: #{residual_attention_block_ivlp.5} parent=5 // pred_check_branch
        %277 = sbr.rel (%p274) target = $region48
      $region47: #{residual_attention_block_ivlp.5} parent=5 // pred_region
        %s278 = ssub.s32 %s16, 1
        // Predicated region
        $region49: #{residual_attention_block_ivlp.5} parent=47 // pred_check
          %p279 = pneg %p63
        $region50: #{residual_attention_block_ivlp.5} parent=47 // pred_check_branch
          %281 = sbr.rel (%p279) target = $region52
        $region51: #{residual_attention_block_ivlp.5} parent=47 // pred_region
          %282 = dma.done [#allocation3], 16
        $region52: #{residual_attention_block_ivlp.5} parent=47 // pred_fallthru
          _
        // Predicated region
        $region53: #{residual_attention_block_ivlp.5} parent=47 // pred_check
          %p283 = pneg %p84
        $region54: #{residual_attention_block_ivlp.5} parent=47 // pred_check_branch
          %285 = sbr.rel (%p283) target = $region56
        $region55: #{residual_attention_block_ivlp.5} parent=47 // pred_region
          %286 = dma.done [#allocation5], 16
        $region56: #{residual_attention_block_ivlp.5} parent=47 // pred_fallthru
          _
        // Predicated region
        $region57: #{residual_attention_block_ivlp.5} parent=47 // pred_check
          %p287 = pneg %p126
        $region58: #{residual_attention_block_ivlp.5} parent=47 // pred_check_branch
          %289 = sbr.rel (%p287) target = $region60
        $region59: #{residual_attention_block_ivlp.5} parent=47 // pred_region
          %290 = dma.done [#allocation5], 64
        $region60: #{residual_attention_block_ivlp.5} parent=47 // pred_fallthru
          _
        // Predicated region
        $region61: #{residual_attention_block_ivlp.5} parent=47 // pred_check
          %p291 = pneg %p168
        $region62: #{residual_attention_block_ivlp.5} parent=47 // pred_check_branch
          %293 = sbr.rel (%p291) target = $region64
        $region63: #{residual_attention_block_ivlp.5} parent=47 // pred_region
          %294 = dma.done [#allocation8], 16
        $region64: #{residual_attention_block_ivlp.5} parent=47 // pred_fallthru
          _
        %s295 = smul.u32 2, %s21
        %p296 = scmp.lt.s32.totalorder %s295, 3
        %s297 = scalar_select %p296, %s295, 3
        %s298 = smul.addr %s297, 8
        %s299 = scalar_lea.vmem %s0, %s298
        %p300 = pneg %p42
        %p301 = pneg %p39
        %p302 = pneg %p63
        %p303 = pneg %p60
        %p304 = pneg %p84
        %p305 = pneg %p81
        %p306 = pneg %p105
        %p307 = pneg %p102
        %p308 = pneg %p126
        %p309 = pneg %p123
        %p310 = pneg %p147
        %p311 = pneg %p144
        %p312 = pneg %p168
        %p313 = pneg %p165
        %p314 = pneg %p194
        %p315 = pneg %p191
        %s316 = smul.u32 2, %s21
        %p317 = scmp.lt.s32.totalorder %s316, 3
        %s318 = scalar_select %p317, %s316, 3
        %s319 = smul.addr %s318, 8
        %s320 = scalar_lea.vmem %s7, %s319
        %s321 = smul.u32 2, %s21
        %p322 = scmp.lt.s32.totalorder %s321, 3
        %s323 = scalar_select %p322, %s321, 3
        %s324 = smul.addr %s323, 8
        %s325 = scalar_lea.vmem %s0, %s324
        %s326 = smul.u32 2, %s21
        %s327 = smul.u32 2, %s21
        %p328 = scmp.lt.s32.totalorder %s327, 3
        %s329 = scalar_select %p328, %s327, 3
        %s330 = smul.addr %s329, 8
        %s331 = scalar_lea.vmem %s7, %s330
        %s332 = smul.u32 2, %s21
        %v334 = vld [vmem:[%s325] sm:$0xff]
        %v335 = vld [vmem:[%s325 + $0x8] sm:$0xff]
        %v336 = vld [vmem:[#allocation2] sm:$0x1]
        %v337 = vld [vmem:[#allocation4] sm:$0x1]
        %338 = vadd.xlane.f32.xlu0 %v334
        %v339 = vpop.xlane.xlu0 %338
        %340 = vadd.xlane.f32.xlu0 %v335
        %v341 = vpop.xlane.xlu0 %340
        %v342 = vrcp.pop 128.0
        %v343 = vmul.f32 %v339, %v342
        %v344 = vmul.f32 %v341, %v342
        %v345 = vsub.f32 %v334, %v343
        %v346 = vsub.f32 %v335, %v344
        %v347 = vmul.f32 %v345, %v345
        %v348 = vmul.f32 %v346, %v346
        %349 = vadd.xlane.f32.xlu0 %v347
        %v350 = vpop.xlane.xlu0 %349
        %351 = vadd.xlane.f32.xlu0 %v348
        %v352 = vpop.xlane.xlu0 %351
        %v353 = vmul.f32 %v350, %v342
        %v354 = vmul.f32 %v352, %v342
        %v355 = vadd.f32 %v353, 1e-05
        %v356 = vadd.f32 %v354, 1e-05
        %v357 = vrsqrt.pop %v355
        %v358 = vrsqrt.pop %v356
        %v359 = vmul.f32 %v345, %v357
        %v360 = vmul.f32 %v346, %v358
        %v362 = vlaneseq
        %v363 = vshrl.u32 %v362, 7
        %v364 = vsub.s32 0, %v363
        %v365 = vrot.slane %v336, %v364
        %v367 = vmul.f32 %v359, %v365
        %v368 = vmul.f32 %v360, %v365
        %v370 = vlaneseq
        %v371 = vshrl.u32 %v370, 7
        %v372 = vsub.s32 0, %v371
        %v373 = vrot.slane %v337, %v372
        %v375 = vadd.f32 %v367, %v373
        %v376 = vadd.f32 %v368, %v373
        %v377 = vpack.c.bf16 %v376, %v375
        %v378 = vld [vmem:[%s3] sm:$0xff]
        %v379 = vld [vmem:[%s3 + $0x8] sm:$0xff]
        %v380 = vld [vmem:[%s3 + $0x10] sm:$0xff]
        %v381 = vld [vmem:[%s3 + $0x18] sm:$0xff]
        %v382 = vld [vmem:[%s3 + $0x20] sm:$0xff]
        %v383 = vld [vmem:[%s3 + $0x28] sm:$0xff]
        %v384 = vld [vmem:[%s3 + $0x30] sm:$0xff]
        %v385 = vld [vmem:[%s3 + $0x38] sm:$0xff]
        %v386 = vld [vmem:[%s3 + $0x40] sm:$0xff]
        %v387 = vld [vmem:[%s3 + $0x48] sm:$0xff]
        %v388 = vld [vmem:[%s3 + $0x50] sm:$0xff]
        %v389 = vld [vmem:[%s3 + $0x58] sm:$0xff]
        %v390 = vld [vmem:[%s3 + $0x60] sm:$0xff]
        %v391 = vld [vmem:[%s3 + $0x68] sm:$0xff]
        %v392 = vld [vmem:[%s3 + $0x70] sm:$0xff]
        %v393 = vld [vmem:[%s3 + $0x78] sm:$0xff]
        %v394 = vld [vmem:[%s3 + $0x80] sm:$0xff]
        %v395 = vld [vmem:[%s3 + $0x88] sm:$0xff]
        %v396 = vld [vmem:[%s3 + $0x90] sm:$0xff]
        %v397 = vld [vmem:[%s3 + $0x98] sm:$0xff]
        %v398 = vld [vmem:[%s3 + $0xa0] sm:$0xff]
        %v399 = vld [vmem:[%s3 + $0xa8] sm:$0xff]
        %v400 = vld [vmem:[%s3 + $0xb0] sm:$0xff]
        %v401 = vld [vmem:[%s3 + $0xb8] sm:$0xff]
        %v402 = vld [vmem:[%s3 + $0xc0] sm:$0xff]
        %v403 = vld [vmem:[%s3 + $0xc8] sm:$0xff]
        %v404 = vld [vmem:[%s3 + $0xd0] sm:$0xff]
        %v405 = vld [vmem:[%s3 + $0xd8] sm:$0xff]
        %v406 = vld [vmem:[%s3 + $0xe0] sm:$0xff]
        %v407 = vld [vmem:[%s3 + $0xe8] sm:$0xff]
        %v408 = vld [vmem:[%s3 + $0xf0] sm:$0xff]
        %v409 = vld [vmem:[%s3 + $0xf8] sm:$0xff]
        %v410 = vld [vmem:[#allocation6] sm:$0xf]
        %v412 = vlaneseq
        %v413 = vshrl.u32 %v412, 7
        %v414 = vsub.s32 0, %v413
        %v415 = vrot.slane %v410, %v414
        %v416 = vlaneseq
        %v417 = vshrl.u32 %v416, 7
        %v418 = vsub.s32 1, %v417
        %v419 = vrot.slane %v410, %v418
        %v420 = vlaneseq
        %v421 = vshrl.u32 %v420, 7
        %v422 = vsub.s32 2, %v421
        %v423 = vrot.slane %v410, %v422
        %v424 = vlaneseq
        %v425 = vshrl.u32 %v424, 7
        %v426 = vsub.s32 3, %v425
        %v427 = vrot.slane %v410, %v426
        %v464 = vunpack.c.l.b16 %v378
        %v465 = vunpack.c.h.b16 %v378
        %v466 = vunpack.c.l.b16 %v379
        %v467 = vunpack.c.h.b16 %v379
        %v468 = vunpack.c.l.b16 %v380
        %v469 = vunpack.c.h.b16 %v380
        %v470 = vunpack.c.l.b16 %v381
        %v471 = vunpack.c.h.b16 %v381
        %v472 = vunpack.c.l.b16 %v382
        %v473 = vunpack.c.h.b16 %v382
        %v474 = vunpack.c.l.b16 %v383
        %v475 = vunpack.c.h.b16 %v383
        %v476 = vunpack.c.l.b16 %v384
        %v477 = vunpack.c.h.b16 %v384
        %v478 = vunpack.c.l.b16 %v385
        %v479 = vunpack.c.h.b16 %v385
        %v480 = vunpack.c.l.b16 %v386
        %v481 = vunpack.c.h.b16 %v386
        %v482 = vunpack.c.l.b16 %v387
        %v483 = vunpack.c.h.b16 %v387
        %v484 = vunpack.c.l.b16 %v388
        %v485 = vunpack.c.h.b16 %v388
        %v486 = vunpack.c.l.b16 %v389
        %v487 = vunpack.c.h.b16 %v389
        %v488 = vunpack.c.l.b16 %v390
        %v489 = vunpack.c.h.b16 %v390
        %v490 = vunpack.c.l.b16 %v391
        %v491 = vunpack.c.h.b16 %v391
        %v492 = vunpack.c.l.b16 %v392
        %v493 = vunpack.c.h.b16 %v392
        %v494 = vunpack.c.l.b16 %v393
        %v495 = vunpack.c.h.b16 %v393
        %v496 = vunpack.c.l.b16 %v394
        %v497 = vunpack.c.h.b16 %v394
        %v498 = vunpack.c.l.b16 %v395
        %v499 = vunpack.c.h.b16 %v395
        %v500 = vunpack.c.l.b16 %v396
        %v501 = vunpack.c.h.b16 %v396
        %v502 = vunpack.c.l.b16 %v397
        %v503 = vunpack.c.h.b16 %v397
        %v504 = vunpack.c.l.b16 %v398
        %v505 = vunpack.c.h.b16 %v398
        %v506 = vunpack.c.l.b16 %v399
        %v507 = vunpack.c.h.b16 %v399
        %v508 = vunpack.c.l.b16 %v400
        %v509 = vunpack.c.h.b16 %v400
        %v510 = vunpack.c.l.b16 %v401
        %v511 = vunpack.c.h.b16 %v401
        %v512 = vunpack.c.l.b16 %v402
        %v513 = vunpack.c.h.b16 %v402
        %v514 = vunpack.c.l.b16 %v403
        %v515 = vunpack.c.h.b16 %v403
        %v516 = vunpack.c.l.b16 %v404
        %v517 = vunpack.c.h.b16 %v404
        %v518 = vunpack.c.l.b16 %v405
        %v519 = vunpack.c.h.b16 %v405
        %v520 = vunpack.c.l.b16 %v406
        %v521 = vunpack.c.h.b16 %v406
        %v522 = vunpack.c.l.b16 %v407
        %v523 = vunpack.c.h.b16 %v407
        %v524 = vunpack.c.l.b16 %v408
        %v525 = vunpack.c.h.b16 %v408
        %v526 = vunpack.c.l.b16 %v409
        %v527 = vunpack.c.h.b16 %v409
        %v528 = vpack.c.b16 %v468, %v464
        %v529 = vpack.c.b16 %v469, %v465
        %v530 = vpack.c.b16 %v470, %v466
        %v531 = vpack.c.b16 %v471, %v467
        %v532 = vpack.c.b16 %v476, %v472
        %v533 = vpack.c.b16 %v477, %v473
        %v534 = vpack.c.b16 %v478, %v474
        %v535 = vpack.c.b16 %v479, %v475
        %v536 = vpack.c.b16 %v484, %v480
        %v537 = vpack.c.b16 %v485, %v481
        %v538 = vpack.c.b16 %v486, %v482
        %v539 = vpack.c.b16 %v487, %v483
        %v540 = vpack.c.b16 %v492, %v488
        %v541 = vpack.c.b16 %v493, %v489
        %v542 = vpack.c.b16 %v494, %v490
        %v543 = vpack.c.b16 %v495, %v491
        %v544 = vpack.c.b16 %v500, %v496
        %v545 = vpack.c.b16 %v501, %v497
        %v546 = vpack.c.b16 %v502, %v498
        %v547 = vpack.c.b16 %v503, %v499
        %v548 = vpack.c.b16 %v508, %v504
        %v549 = vpack.c.b16 %v509, %v505
        %v550 = vpack.c.b16 %v510, %v506
        %v551 = vpack.c.b16 %v511, %v507
        %v552 = vpack.c.b16 %v516, %v512
        %v553 = vpack.c.b16 %v517, %v513
        %v554 = vpack.c.b16 %v518, %v514
        %v555 = vpack.c.b16 %v519, %v515
        %v556 = vpack.c.b16 %v524, %v520
        %v557 = vpack.c.b16 %v525, %v521
        %v558 = vpack.c.b16 %v526, %v522
        %v559 = vpack.c.b16 %v527, %v523
        %592 = vmatprep.subr.bf16.mxu0 %v529
        %593 = vmatpush1.bf16.msra.mxu0 %v528
        %594 = vmatprep.subr.bf16.mxu0 %v533
        %595 = vmatpush1.bf16.msra.mxu0 %v532
        %596 = vmatprep.subr.bf16.mxu0 %v537
        %597 = vmatpush1.bf16.msra.mxu0 %v536
        %598 = vmatprep.subr.bf16.mxu0 %v541
        %599 = vmatpush1.bf16.msra.mxu0 %v540
        %600 = vmatprep.subr.bf16.mxu0 %v545
        %601 = vmatpush1.bf16.msra.mxu0 %v544
        %602 = vmatprep.subr.bf16.mxu0 %v549
        %603 = vmatpush1.bf16.msra.mxu0 %v548
        %604 = vmatprep.subr.bf16.mxu0 %v553
        %605 = vmatpush1.bf16.msra.mxu0 %v552
        %606 = vmatprep.subr.bf16.mxu0 %v557
        %607 = vmatpush1.bf16.msra.mxu0 %v556
        %608 = vmatprep.subr.bf16.mxu0 0
        %609 = vmatpush1.bf16.msra.mxu0 0
        %610 = vmatprep.subr.bf16.mxu0 0
        %611 = vmatpush1.bf16.msra.mxu0 0
        %612 = vmatprep.subr.bf16.mxu0 0
        %613 = vmatpush1.bf16.msra.mxu0 0
        %614 = vmatprep.subr.bf16.mxu0 0
        %615 = vmatpush1.bf16.msra.mxu0 0
        %616 = vmatprep.subr.bf16.mxu0 0
        %617 = vmatpush1.bf16.msra.mxu0 0
        %618 = vmatprep.subr.bf16.mxu0 0
        %619 = vmatpush1.bf16.msra.mxu0 0
        %620 = vmatprep.subr.bf16.mxu0 0
        %621 = vmatpush1.bf16.msra.mxu0 0
        %622 = vmatprep.subr.bf16.mxu0 0
        %623 = vmatpush1.bf16.msra.mxu0 0
        %624 = vmatprep.mubr.bf16.mxu0 0
        %625 = vmatmul.mubr.bf16.gmra.mrb[0].mxu0 %v377
        %v626 = vpop.f32.mrb[0].mxu0
        %v627 = vadd.f32 %v415, %v626
        %v628 = vpop.f32.mrb[0].mxu0
        %v629 = vadd.f32 %v419, %v628
        %v630 = vpop.f32.mrb[0].mxu0
        %v631 = vadd.f32 %v415, %v630
        %v632 = vpop.f32.mrb[0].mxu0
        %v633 = vadd.f32 %v419, %v632
        %634 = vdwg.mxu0
        %635 = vmatprep.subr.bf16.mxu0 %v531
        %636 = vmatpush1.bf16.msra.mxu0 %v530
        %637 = vmatprep.subr.bf16.mxu0 %v535
        %638 = vmatpush1.bf16.msra.mxu0 %v534
        %639 = vmatprep.subr.bf16.mxu0 %v539
        %640 = vmatpush1.bf16.msra.mxu0 %v538
        %641 = vmatprep.subr.bf16.mxu0 %v543
        %642 = vmatpush1.bf16.msra.mxu0 %v542
        %643 = vmatprep.subr.bf16.mxu0 %v547
        %644 = vmatpush1.bf16.msra.mxu0 %v546
        %645 = vmatprep.subr.bf16.mxu0 %v551
        %646 = vmatpush1.bf16.msra.mxu0 %v550
        %647 = vmatprep.subr.bf16.mxu0 %v555
        %648 = vmatpush1.bf16.msra.mxu0 %v554
        %649 = vmatprep.subr.bf16.mxu0 %v559
        %650 = vmatpush1.bf16.msra.mxu0 %v558
        %651 = vmatprep.subr.bf16.mxu0 0
        %652 = vmatpush1.bf16.msra.mxu0 0
        %653 = vmatprep.subr.bf16.mxu0 0
        %654 = vmatpush1.bf16.msra.mxu0 0
        %655 = vmatprep.subr.bf16.mxu0 0
        %656 = vmatpush1.bf16.msra.mxu0 0
        %657 = vmatprep.subr.bf16.mxu0 0
        %658 = vmatpush1.bf16.msra.mxu0 0
        %659 = vmatprep.subr.bf16.mxu0 0
        %660 = vmatpush1.bf16.msra.mxu0 0
        %661 = vmatprep.subr.bf16.mxu0 0
        %662 = vmatpush1.bf16.msra.mxu0 0
        %663 = vmatprep.subr.bf16.mxu0 0
        %664 = vmatpush1.bf16.msra.mxu0 0
        %665 = vmatprep.subr.bf16.mxu0 0
        %666 = vmatpush1.bf16.msra.mxu0 0
        %667 = vmatprep.mubr.bf16.mxu0 0
        %668 = vmatmul.mubr.bf16.gmra.mrb[0].mxu0 %v377
        %v669 = vpop.f32.mrb[0].mxu0
        %v670 = vadd.f32 %v423, %v669
        %v671 = vpop.f32.mrb[0].mxu0
        %v672 = vadd.f32 %v427, %v671
        %v673 = vpop.f32.mrb[0].mxu0
        %v674 = vadd.f32 %v423, %v673
        %v675 = vpop.f32.mrb[0].mxu0
        %v676 = vadd.f32 %v427, %v675
        %677 = vdwg.mxu0
        %v678 = vmul.f32 %v627, 1.702
        %v679 = vmul.f32 %v629, 1.702
        %v680 = vmul.f32 %v670, 1.702
        %v681 = vmul.f32 %v672, 1.702
        %v682 = vmul.f32 %v631, 1.702
        %v683 = vmul.f32 %v633, 1.702
        %v684 = vmul.f32 %v674, 1.702
        %v685 = vmul.f32 %v676, 1.702
        %v686 = vxor.u32 %v678, 2147483648
        %v687 = vxor.u32 %v679, 2147483648
        %v688 = vxor.u32 %v680, 2147483648
        %v689 = vxor.u32 %v681, 2147483648
        %v690 = vxor.u32 %v682, 2147483648
        %v691 = vxor.u32 %v683, 2147483648
        %v692 = vxor.u32 %v684, 2147483648
        %v693 = vxor.u32 %v685, 2147483648
        %v694 = vmul.f32 %v686, 1.442695
        %v695 = vpow.pop %v694
        %v696 = vmul.f32 %v687, 1.442695
        %v697 = vpow.pop %v696
        %v698 = vmul.f32 %v688, 1.442695
        %v699 = vpow.pop %v698
        %v700 = vmul.f32 %v689, 1.442695
        %v701 = vpow.pop %v700
        %v702 = vmul.f32 %v690, 1.442695
        %v703 = vpow.pop %v702
        %v704 = vmul.f32 %v691, 1.442695
        %v705 = vpow.pop %v704
        %v706 = vmul.f32 %v692, 1.442695
        %v707 = vpow.pop %v706
        %v708 = vmul.f32 %v693, 1.442695
        %v709 = vpow.pop %v708
        %v710 = vadd.f32 %v695, 1.0
        %v711 = vadd.f32 %v697, 1.0
        %v712 = vadd.f32 %v699, 1.0
        %v713 = vadd.f32 %v701, 1.0
        %v714 = vadd.f32 %v703, 1.0
        %v715 = vadd.f32 %v705, 1.0
        %v716 = vadd.f32 %v707, 1.0
        %v717 = vadd.f32 %v709, 1.0
        %v718 = vrcp.pop %v710
        %v719 = vmul.f32 1.0, %v718
        %v720 = vrcp.pop %v711
        %v721 = vmul.f32 1.0, %v720
        %v722 = vrcp.pop %v712
        %v723 = vmul.f32 1.0, %v722
        %v724 = vrcp.pop %v713
        %v725 = vmul.f32 1.0, %v724
        %v726 = vrcp.pop %v714
        %v727 = vmul.f32 1.0, %v726
        %v728 = vrcp.pop %v715
        %v729 = vmul.f32 1.0, %v728
        %v730 = vrcp.pop %v716
        %v731 = vmul.f32 1.0, %v730
        %v732 = vrcp.pop %v717
        %v733 = vmul.f32 1.0, %v732
        %v734 = vmul.f32 %v627, %v719
        %v735 = vmul.f32 %v629, %v721
        %v736 = vmul.f32 %v670, %v723
        %v737 = vmul.f32 %v672, %v725
        %v738 = vmul.f32 %v631, %v727
        %v739 = vmul.f32 %v633, %v729
        %v740 = vmul.f32 %v674, %v731
        %v741 = vmul.f32 %v676, %v733
        %v742 = vpack.c.bf16 %v738, %v734
        %v743 = vpack.c.bf16 %v739, %v735
        %v744 = vpack.c.bf16 %v740, %v736
        %v745 = vpack.c.bf16 %v741, %v737
        %v746 = vld [vmem:[%s5] sm:$0xf]
        %v747 = vld [vmem:[%s5 + $0x4] sm:$0xf]
        %v748 = vld [vmem:[%s5 + $0x8] sm:$0xf]
        %v749 = vld [vmem:[%s5 + $0xc] sm:$0xf]
        %v750 = vld [vmem:[%s5 + $0x10] sm:$0xf]
        %v751 = vld [vmem:[%s5 + $0x14] sm:$0xf]
        %v752 = vld [vmem:[%s5 + $0x18] sm:$0xf]
        %v753 = vld [vmem:[%s5 + $0x1c] sm:$0xf]
        %v754 = vld [vmem:[%s5 + $0x20] sm:$0xf]
        %v755 = vld [vmem:[%s5 + $0x24] sm:$0xf]
        %v756 = vld [vmem:[%s5 + $0x28] sm:$0xf]
        %v757 = vld [vmem:[%s5 + $0x2c] sm:$0xf]
        %v758 = vld [vmem:[%s5 + $0x30] sm:$0xf]
        %v759 = vld [vmem:[%s5 + $0x34] sm:$0xf]
        %v760 = vld [vmem:[%s5 + $0x38] sm:$0xf]
        %v761 = vld [vmem:[%s5 + $0x3c] sm:$0xf]
        %v762 = vld [vmem:[%s5 + $0x40] sm:$0xf]
        %v763 = vld [vmem:[%s5 + $0x44] sm:$0xf]
        %v764 = vld [vmem:[%s5 + $0x48] sm:$0xf]
        %v765 = vld [vmem:[%s5 + $0x4c] sm:$0xf]
        %v766 = vld [vmem:[%s5 + $0x50] sm:$0xf]
        %v767 = vld [vmem:[%s5 + $0x54] sm:$0xf]
        %v768 = vld [vmem:[%s5 + $0x58] sm:$0xf]
        %v769 = vld [vmem:[%s5 + $0x5c] sm:$0xf]
        %v770 = vld [vmem:[%s5 + $0x60] sm:$0xf]
        %v771 = vld [vmem:[%s5 + $0x64] sm:$0xf]
        %v772 = vld [vmem:[%s5 + $0x68] sm:$0xf]
        %v773 = vld [vmem:[%s5 + $0x6c] sm:$0xf]
        %v774 = vld [vmem:[%s5 + $0x70] sm:$0xf]
        %v775 = vld [vmem:[%s5 + $0x74] sm:$0xf]
        %v776 = vld [vmem:[%s5 + $0x78] sm:$0xf]
        %v777 = vld [vmem:[%s5 + $0x7c] sm:$0xf]
        %v778 = vld [vmem:[%s5 + $0x80] sm:$0xf]
        %v779 = vld [vmem:[%s5 + $0x84] sm:$0xf]
        %v780 = vld [vmem:[%s5 + $0x88] sm:$0xf]
        %v781 = vld [vmem:[%s5 + $0x8c] sm:$0xf]
        %v782 = vld [vmem:[%s5 + $0x90] sm:$0xf]
        %v783 = vld [vmem:[%s5 + $0x94] sm:$0xf]
        %v784 = vld [vmem:[%s5 + $0x98] sm:$0xf]
        %v785 = vld [vmem:[%s5 + $0x9c] sm:$0xf]
        %v786 = vld [vmem:[%s5 + $0xa0] sm:$0xf]
        %v787 = vld [vmem:[%s5 + $0xa4] sm:$0xf]
        %v788 = vld [vmem:[%s5 + $0xa8] sm:$0xf]
        %v789 = vld [vmem:[%s5 + $0xac] sm:$0xf]
        %v790 = vld [vmem:[%s5 + $0xb0] sm:$0xf]
        %v791 = vld [vmem:[%s5 + $0xb4] sm:$0xf]
        %v792 = vld [vmem:[%s5 + $0xb8] sm:$0xf]
        %v793 = vld [vmem:[%s5 + $0xbc] sm:$0xf]
        %v794 = vld [vmem:[%s5 + $0xc0] sm:$0xf]
        %v795 = vld [vmem:[%s5 + $0xc4] sm:$0xf]
        %v796 = vld [vmem:[%s5 + $0xc8] sm:$0xf]
        %v797 = vld [vmem:[%s5 + $0xcc] sm:$0xf]
        %v798 = vld [vmem:[%s5 + $0xd0] sm:$0xf]
        %v799 = vld [vmem:[%s5 + $0xd4] sm:$0xf]
        %v800 = vld [vmem:[%s5 + $0xd8] sm:$0xf]
        %v801 = vld [vmem:[%s5 + $0xdc] sm:$0xf]
        %v802 = vld [vmem:[%s5 + $0xe0] sm:$0xf]
        %v803 = vld [vmem:[%s5 + $0xe4] sm:$0xf]
        %v804 = vld [vmem:[%s5 + $0xe8] sm:$0xf]
        %v805 = vld [vmem:[%s5 + $0xec] sm:$0xf]
        %v806 = vld [vmem:[%s5 + $0xf0] sm:$0xf]
        %v807 = vld [vmem:[%s5 + $0xf4] sm:$0xf]
        %v808 = vld [vmem:[%s5 + $0xf8] sm:$0xf]
        %v809 = vld [vmem:[%s5 + $0xfc] sm:$0xf]
        %v810 = vld [vmem:[#allocation7] sm:$0x1]
        %v812 = vlaneseq
        %v813 = vshrl.u32 %v812, 7
        %v814 = vsub.s32 0, %v813
        %v815 = vrot.slane %v810, %v814
        %v881 = vunpack.c.l.b16 %v746
        %v882 = vunpack.c.l.b16 %v747
        %v883 = vunpack.c.l.b16 %v748
        %v884 = vunpack.c.l.b16 %v749
        %v885 = vunpack.c.l.b16 %v750
        %v886 = vunpack.c.l.b16 %v751
        %v887 = vunpack.c.l.b16 %v752
        %v888 = vunpack.c.l.b16 %v753
        %v889 = vunpack.c.l.b16 %v754
        %v890 = vunpack.c.l.b16 %v755
        %v891 = vunpack.c.l.b16 %v756
        %v892 = vunpack.c.l.b16 %v757
        %v893 = vunpack.c.l.b16 %v758
        %v894 = vunpack.c.l.b16 %v759
        %v895 = vunpack.c.l.b16 %v760
        %v896 = vunpack.c.l.b16 %v761
        %v897 = vunpack.c.l.b16 %v762
        %v898 = vunpack.c.l.b16 %v763
        %v899 = vunpack.c.l.b16 %v764
        %v900 = vunpack.c.l.b16 %v765
        %v901 = vunpack.c.l.b16 %v766
        %v902 = vunpack.c.l.b16 %v767
        %v903 = vunpack.c.l.b16 %v768
        %v904 = vunpack.c.l.b16 %v769
        %v905 = vunpack.c.l.b16 %v770
        %v906 = vunpack.c.l.b16 %v771
        %v907 = vunpack.c.l.b16 %v772
        %v908 = vunpack.c.l.b16 %v773
        %v909 = vunpack.c.l.b16 %v774
        %v910 = vunpack.c.l.b16 %v775
        %v911 = vunpack.c.l.b16 %v776
        %v912 = vunpack.c.l.b16 %v777
        %v913 = vunpack.c.l.b16 %v778
        %v914 = vunpack.c.l.b16 %v779
        %v915 = vunpack.c.l.b16 %v780
        %v916 = vunpack.c.l.b16 %v781
        %v917 = vunpack.c.l.b16 %v782
        %v918 = vunpack.c.l.b16 %v783
        %v919 = vunpack.c.l.b16 %v784
        %v920 = vunpack.c.l.b16 %v785
        %v921 = vunpack.c.l.b16 %v786
        %v922 = vunpack.c.l.b16 %v787
        %v923 = vunpack.c.l.b16 %v788
        %v924 = vunpack.c.l.b16 %v789
        %v925 = vunpack.c.l.b16 %v790
        %v926 = vunpack.c.l.b16 %v791
        %v927 = vunpack.c.l.b16 %v792
        %v928 = vunpack.c.l.b16 %v793
        %v929 = vunpack.c.l.b16 %v794
        %v930 = vunpack.c.l.b16 %v795
        %v931 = vunpack.c.l.b16 %v796
        %v932 = vunpack.c.l.b16 %v797
        %v933 = vunpack.c.l.b16 %v798
        %v934 = vunpack.c.l.b16 %v799
        %v935 = vunpack.c.l.b16 %v800
        %v936 = vunpack.c.l.b16 %v801
        %v937 = vunpack.c.l.b16 %v802
        %v938 = vunpack.c.l.b16 %v803
        %v939 = vunpack.c.l.b16 %v804
        %v940 = vunpack.c.l.b16 %v805
        %v941 = vunpack.c.l.b16 %v806
        %v942 = vunpack.c.l.b16 %v807
        %v943 = vunpack.c.l.b16 %v808
        %v944 = vunpack.c.l.b16 %v809
        %v945 = vpack.c.b16 %v882, %v881
        %v946 = vpack.c.b16 %v884, %v883
        %v947 = vpack.c.b16 %v886, %v885
        %v948 = vpack.c.b16 %v888, %v887
        %v949 = vpack.c.b16 %v890, %v889
        %v950 = vpack.c.b16 %v892, %v891
        %v951 = vpack.c.b16 %v894, %v893
        %v952 = vpack.c.b16 %v896, %v895
        %v953 = vpack.c.b16 %v898, %v897
        %v954 = vpack.c.b16 %v900, %v899
        %v955 = vpack.c.b16 %v902, %v901
        %v956 = vpack.c.b16 %v904, %v903
        %v957 = vpack.c.b16 %v906, %v905
        %v958 = vpack.c.b16 %v908, %v907
        %v959 = vpack.c.b16 %v910, %v909
        %v960 = vpack.c.b16 %v912, %v911
        %v961 = vpack.c.b16 %v914, %v913
        %v962 = vpack.c.b16 %v916, %v915
        %v963 = vpack.c.b16 %v918, %v917
        %v964 = vpack.c.b16 %v920, %v919
        %v965 = vpack.c.b16 %v922, %v921
        %v966 = vpack.c.b16 %v924, %v923
        %v967 = vpack.c.b16 %v926, %v925
        %v968 = vpack.c.b16 %v928, %v927
        %v969 = vpack.c.b16 %v930, %v929
        %v970 = vpack.c.b16 %v932, %v931
        %v971 = vpack.c.b16 %v934, %v933
        %v972 = vpack.c.b16 %v936, %v935
        %v973 = vpack.c.b16 %v938, %v937
        %v974 = vpack.c.b16 %v940, %v939
        %v975 = vpack.c.b16 %v942, %v941
        %v976 = vpack.c.b16 %v944, %v943
        %1009 = vmatprep.subr.bf16.mxu0 0
        %1010 = vmatpush1.bf16.msra.mxu0 %v945
        %1011 = vmatprep.subr.bf16.mxu0 0
        %1012 = vmatpush1.bf16.msra.mxu0 %v946
        %1013 = vmatprep.subr.bf16.mxu0 0
        %1014 = vmatpush1.bf16.msra.mxu0 %v947
        %1015 = vmatprep.subr.bf16.mxu0 0
        %1016 = vmatpush1.bf16.msra.mxu0 %v948
        %1017 = vmatprep.subr.bf16.mxu0 0
        %1018 = vmatpush1.bf16.msra.mxu0 %v949
        %1019 = vmatprep.subr.bf16.mxu0 0
        %1020 = vmatpush1.bf16.msra.mxu0 %v950
        %1021 = vmatprep.subr.bf16.mxu0 0
        %1022 = vmatpush1.bf16.msra.mxu0 %v951
        %1023 = vmatprep.subr.bf16.mxu0 0
        %1024 = vmatpush1.bf16.msra.mxu0 %v952
        %1025 = vmatprep.subr.bf16.mxu0 0
        %1026 = vmatpush1.bf16.msra.mxu0 %v953
        %1027 = vmatprep.subr.bf16.mxu0 0
        %1028 = vmatpush1.bf16.msra.mxu0 %v954
        %1029 = vmatprep.subr.bf16.mxu0 0
        %1030 = vmatpush1.bf16.msra.mxu0 %v955
        %1031 = vmatprep.subr.bf16.mxu0 0
        %1032 = vmatpush1.bf16.msra.mxu0 %v956
        %1033 = vmatprep.subr.bf16.mxu0 0
        %1034 = vmatpush1.bf16.msra.mxu0 %v957
        %1035 = vmatprep.subr.bf16.mxu0 0
        %1036 = vmatpush1.bf16.msra.mxu0 %v958
        %1037 = vmatprep.subr.bf16.mxu0 0
        %1038 = vmatpush1.bf16.msra.mxu0 %v959
        %1039 = vmatprep.subr.bf16.mxu0 0
        %1040 = vmatpush1.bf16.msra.mxu0 %v960
        %1041 = vmatprep.mubr.bf16.mxu0 %v743
        %1042 = vmatmul.mubr.bf16.gmra.mrb[0].mxu0 %v742
        %v1043 = vpop.f32.mrb[0].mxu0
        %v1044 = vadd.f32 %v815, %v1043
        %v1045 = vpop.f32.mrb[0].mxu0
        %v1046 = vpop.f32.mrb[0].mxu0
        %v1047 = vadd.f32 %v815, %v1046
        %v1048 = vpop.f32.mrb[0].mxu0
        %1049 = vdwg.mxu0
        %1050 = vmatprep.subr.bf16.mxu0 0
        %1051 = vmatpush1.bf16.msra.mxu0 %v961
        %1052 = vmatprep.subr.bf16.mxu0 0
        %1053 = vmatpush1.bf16.msra.mxu0 %v962
        %1054 = vmatprep.subr.bf16.mxu0 0
        %1055 = vmatpush1.bf16.msra.mxu0 %v963
        %1056 = vmatprep.subr.bf16.mxu0 0
        %1057 = vmatpush1.bf16.msra.mxu0 %v964
        %1058 = vmatprep.subr.bf16.mxu0 0
        %1059 = vmatpush1.bf16.msra.mxu0 %v965
        %1060 = vmatprep.subr.bf16.mxu0 0
        %1061 = vmatpush1.bf16.msra.mxu0 %v966
        %1062 = vmatprep.subr.bf16.mxu0 0
        %1063 = vmatpush1.bf16.msra.mxu0 %v967
        %1064 = vmatprep.subr.bf16.mxu0 0
        %1065 = vmatpush1.bf16.msra.mxu0 %v968
        %1066 = vmatprep.subr.bf16.mxu0 0
        %1067 = vmatpush1.bf16.msra.mxu0 %v969
        %1068 = vmatprep.subr.bf16.mxu0 0
        %1069 = vmatpush1.bf16.msra.mxu0 %v970
        %1070 = vmatprep.subr.bf16.mxu0 0
        %1071 = vmatpush1.bf16.msra.mxu0 %v971
        %1072 = vmatprep.subr.bf16.mxu0 0
        %1073 = vmatpush1.bf16.msra.mxu0 %v972
        %1074 = vmatprep.subr.bf16.mxu0 0
        %1075 = vmatpush1.bf16.msra.mxu0 %v973
        %1076 = vmatprep.subr.bf16.mxu0 0
        %1077 = vmatpush1.bf16.msra.mxu0 %v974
        %1078 = vmatprep.subr.bf16.mxu0 0
        %1079 = vmatpush1.bf16.msra.mxu0 %v975
        %1080 = vmatprep.subr.bf16.mxu0 0
        %1081 = vmatpush1.bf16.msra.mxu0 %v976
        %1082 = vmatprep.mubr.bf16.mxu0 %v745
        %1083 = vmatmul.mubr.bf16.gmra.mrb[0].mxu0 %v744
        %v1084 = vpop.f32.mrb[0].mxu0
        %v1085 = vadd.f32 %v1044, %v1084
        %v1086 = vpop.f32.mrb[0].mxu0
        %v1087 = vpop.f32.mrb[0].mxu0
        %v1088 = vadd.f32 %v1047, %v1087
        %v1089 = vpop.f32.mrb[0].mxu0
        %1090 = vdwg.mxu0
        %v1091 = vadd.f32 %v334, %v1085
        %v1092 = vadd.f32 %v335, %v1088
        %1093 = vst [vmem:[%s331] sm:$0xff] %v1091
        %1094 = vst [vmem:[%s331 + $0x8] sm:$0xff] %v1092
        %s1095 = smul.u32 2, %s21
        %p1096 = scmp.lt.s32.totalorder %s1095, 3
        %s1097 = scalar_select %p1096, %s1095, 3
        %s1098 = smul.addr %s1097, 8
        %s1099 = scalar_lea.vmem %s7, %s1098
        // Predicated region
        $region65: #{residual_attention_block_ivlp.5} parent=47 // pred_check
          %p1100 = pneg %p191
        $region66: #{residual_attention_block_ivlp.5} parent=47 // pred_check_branch
          %1102 = sbr.rel (%p1100) target = $region68
        $region67: #{residual_attention_block_ivlp.5} parent=47 // pred_region
          %s1103 = smul.u32 2, %s21
        $region68: #{residual_attention_block_ivlp.5} parent=47 // pred_fallthru
          _
      $region48: #{residual_attention_block_ivlp.5} parent=5 // pred_fallthru
        _
      %p1104 = scmp.le.s32.totalorder 2, %s16
      // Predicated region
      $region69: #{residual_attention_block_ivlp.5} parent=5 // pred_check
        %p1105 = pneg %p1104
      $region70: #{residual_attention_block_ivlp.5} parent=5 // pred_check_branch
        %1107 = sbr.rel (%p1105) target = $region72
      $region71: #{residual_attention_block_ivlp.5} parent=5 // pred_region
        %s1108 = ssub.s32 %s16, 2
        // Predicated region
        $region73: #{residual_attention_block_ivlp.5} parent=71 // pred_check
          %p1109 = pneg %p197
        $region74: #{residual_attention_block_ivlp.5} parent=71 // pred_check_branch
          %1111 = sbr.rel (%p1109) target = $region76
        $region75: #{residual_attention_block_ivlp.5} parent=71 // pred_region
          %s1112 = smul.u32 2, %s22
          %p1113 = scmp.lt.s32.totalorder %s1112, 3
          %s1114 = scalar_select %p1113, %s1112, 3
          %s1115 = smul.addr %s1114, 8
          %s1116 = scalar_lea.vmem %s7, %s1115
        $region76: #{residual_attention_block_ivlp.5} parent=71 // pred_fallthru
          _
      $region72: #{residual_attention_block_ivlp.5} parent=5 // pred_fallthru
        _
    $region6: #{residual_attention_block_ivlp.5} parent=1 // loop_footer
      %s20 = sadd.s32 1, %s16
    $region7: #{residual_attention_block_ivlp.5} parent=1 // loop_footer_branch
      %15 = sbr.rel target = $region3
    $region8: #{residual_attention_block_ivlp.5} parent=1 // loop_exit
      _
    %1117 = vsyncpa [#allocation3], 1
    %s1118 = scalar_lea.sflag [#allocation3], 1
    %1119 = vsyncpa %s1118, 1
    %1120 = vsyncpa [#allocation5], 1
    %1121 = vsyncpa [#allocation8], 1

// kernel: residual_attention_block_ivlp.4
$region0: #{residual_attention_block_ivlp.4}
  #allocation0 [shape = 'u32[]', space=smem, size = 0x4, offset = 0x4, fixed_abs, tag = 'smem constant byte address 0x4 - core index']
  #allocation1 [shape = 'u32[144,128]{1,0:T(1,128)}', space=vmem, size = 0x12000, scoped, tag = 'internal scratch']
  #allocation2 [shape = 'f32[16,128]{1,0:T(8,128)}', space=vmem, size = 0x2000, scoped, tag = 'scratch operand']
  %s0 = inlined_call_operand.vmem [shape: bf16[3,2,16,128], index: 0, kind: input, shape index: {}]
  %s1 = inlined_call_operand.vmem [shape: f32[2,16,128], index: 1, kind: input, shape index: {}]
  %s2 = inlined_call_operand.vmem [shape: bf16[128,128], index: 2, kind: input, shape index: {}]
  %s3 = inlined_call_operand.hbm [shape: f32[1,128], index: 3, kind: input, shape index: {}]
  %s4 = inlined_call_operand.vmem [shape: f32[2,16,128], index: 4, kind: output, shape index: {}]
  %s5 = sld [smem:[#allocation0]]
  $region102: #{residual_attention_block_ivlp.4} parent=0
    _
  %s7 = ssub.s32 1, %s5
  %s8 = scalar_select 0, %s7, %s5
  $region1: #{residual_attention_block_ivlp.4} parent=0
    #allocation3 [shape = 'u8[24576]{0}', space=vmem, size = 0x6000, scoped, tag = 'input window, operand 0']
    #allocation4 [shape = 'u8[512]{0}', space=vmem, size = 0x400, scoped, tag = 'input window, operand 3, single buffered']
    #allocation5 [shape = 's32[2]{0}', space=sflag, size = 0x8, scoped, tag = 'scoped memory for residual_attention_block_ivlp.4']
    %9 = vsyncpa [#allocation5], 0
    loop: start=0, step=1, limit=4
    $region2: #{residual_attention_block_ivlp.4} parent=1 // loop_pre_header
      _
    $region3: #{residual_attention_block_ivlp.4} parent=1 // loop_header
      %s11 = sphi 0, %s15
      %p12 = scmp.ge.s32.totalorder %s11, 4
      %s18 = sphi 0, %s30
      %s19 = sphi 0, %s26
      %s20 = sphi 0, %s18
      %s21 = sphi 0, %s19
      %s22 = sphi 0, %s20
      %s23 = sphi 0, %s21
      %s35 = sphi 0, %s37
      %s38 = sphi 0, %s35
      %s39 = sphi 0, %s38
      %s55 = sphi 0, %s39
      %s61 = sphi 0, %s63
      %s64 = sphi 0, %s61
      %s65 = sphi 0, %s64
      %s81 = sphi 0, %s65
      %s87 = sphi 0, %s89
      %s90 = sphi 0, %s87
      %s91 = sphi 0, %s90
      %s107 = sphi 0, %s91
      %s111 = sphi 0, %s111
      %s113 = sphi 0, %s111
      %s114 = sphi 0, %s113
      %s128 = sphi 0, %s114
      %s134 = sphi 0, %s136
      %s137 = sphi 0, %s134
      %s138 = sphi 0, %s137
      %s154 = sphi 0, %s138
    $region4: #{residual_attention_block_ivlp.4} parent=1 // loop_header_branch
      %14 = sbr.rel (%p12) target = $region8
    $region5: #{residual_attention_block_ivlp.4} parent=1 // loop_body
      %s16 = ssub.s32 %s11, 1
      %s17 = ssub.s32 %s11, 2
      %s24 = sadd.s32 1, %s19
      %p25 = scmp.ge.s32.totalorder %s24, 1
      %s26 = scalar_select %p25, 0, %s24
      %s27 = sadd.s32 1, %s18
      %s28 = scalar_select %p25, %s27, %s18
      %p29 = scmp.ge.s32.totalorder %s28, 2
      %s30 = scalar_select %p29, 0, %s28
      %s31 = ssub.s32 %s18, %s30
      %s32 = ssub.s32 %s19, %s26
      %s33 = sor.u32 %s31, %s32
      %p34 = scmp.eq.s32.totalorder %s33, 0
      %s36 = sadd.s32 %s35, 1
      %s37 = scalar_select %p34, %s35, %s36
      %p40 = pneg %p34
      %p41 = scmp.eq.s32.totalorder %s11, 1
      %p42 = por %p40, %p41
      %p43 = scmp.ne.s32.totalorder %s35, %s38
      %p44 = scmp.eq.s32.totalorder %s11, 0
      %p45 = por %p43, %p44
      %p46 = scmp.ne.s32.totalorder %s35, %s38
      %p47 = scmp.eq.s32.totalorder %s16, 1
      %p48 = por %p46, %p47
      %p49 = scmp.ne.s32.totalorder %s38, %s39
      %p50 = scmp.eq.s32.totalorder %s16, 0
      %p51 = por %p49, %p50
      %p52 = scmp.ne.s32.totalorder %s38, %s39
      %p53 = scmp.eq.s32.totalorder %s17, 1
      %p54 = por %p52, %p53
      %p56 = scmp.ne.s32.totalorder %s39, %s55
      %p57 = scmp.eq.s32.totalorder %s17, 0
      %p58 = por %p56, %p57
      %s59 = ssub.s32 %s18, %s30
      %p60 = scmp.eq.s32.totalorder %s59, 0
      %s62 = sadd.s32 %s61, 1
      %s63 = scalar_select %p60, %s61, %s62
      %p66 = pneg %p60
      %p67 = scmp.eq.s32.totalorder %s11, 1
      %p68 = por %p66, %p67
      %p69 = scmp.ne.s32.totalorder %s61, %s64
      %p70 = scmp.eq.s32.totalorder %s11, 0
      %p71 = por %p69, %p70
      %p72 = scmp.ne.s32.totalorder %s61, %s64
      %p73 = scmp.eq.s32.totalorder %s16, 1
      %p74 = por %p72, %p73
      %p75 = scmp.ne.s32.totalorder %s64, %s65
      %p76 = scmp.eq.s32.totalorder %s16, 0
      %p77 = por %p75, %p76
      %p78 = scmp.ne.s32.totalorder %s64, %s65
      %p79 = scmp.eq.s32.totalorder %s17, 1
      %p80 = por %p78, %p79
      %p82 = scmp.ne.s32.totalorder %s65, %s81
      %p83 = scmp.eq.s32.totalorder %s17, 0
      %p84 = por %p82, %p83
      %s85 = ssub.s32 %s19, %s26
      %p86 = scmp.eq.s32.totalorder %s85, 0
      %s88 = sadd.s32 %s87, 1
      %s89 = scalar_select %p86, %s87, %s88
      %p92 = pneg %p86
      %p93 = scmp.eq.s32.totalorder %s11, 1
      %p94 = por %p92, %p93
      %p95 = scmp.ne.s32.totalorder %s87, %s90
      %p96 = scmp.eq.s32.totalorder %s11, 0
      %p97 = por %p95, %p96
      %p98 = scmp.ne.s32.totalorder %s87, %s90
      %p99 = scmp.eq.s32.totalorder %s16, 1
      %p100 = por %p98, %p99
      %p101 = scmp.ne.s32.totalorder %s90, %s91
      %p102 = scmp.eq.s32.totalorder %s16, 0
      %p103 = por %p101, %p102
      %p104 = scmp.ne.s32.totalorder %s90, %s91
      %p105 = scmp.eq.s32.totalorder %s17, 1
      %p106 = por %p104, %p105
      %p108 = scmp.ne.s32.totalorder %s91, %s107
      %p109 = scmp.eq.s32.totalorder %s17, 0
      %p110 = por %p108, %p109
      %s112 = sadd.s32 %s111, 1
      %p115 = scmp.eq.s32.totalorder %s11, 1
      %p116 = scmp.ne.s32.totalorder %s111, %s113
      %p117 = scmp.eq.s32.totalorder %s11, 0
      %p118 = por %p116, %p117
      %p119 = scmp.ne.s32.totalorder %s111, %s113
      %p120 = scmp.eq.s32.totalorder %s16, 1
      %p121 = por %p119, %p120
      %p122 = scmp.ne.s32.totalorder %s113, %s114
      %p123 = scmp.eq.s32.totalorder %s16, 0
      %p124 = por %p122, %p123
      %p125 = scmp.ne.s32.totalorder %s113, %s114
      %p126 = scmp.eq.s32.totalorder %s17, 1
      %p127 = por %p125, %p126
      %p129 = scmp.ne.s32.totalorder %s114, %s128
      %p130 = scmp.eq.s32.totalorder %s17, 0
      %p131 = por %p129, %p130
      %s132 = ssub.s32 %s18, %s30
      %p133 = scmp.eq.s32.totalorder %s132, 0
      %s135 = sadd.s32 %s134, 1
      %s136 = scalar_select %p133, %s134, %s135
      %p139 = pneg %p133
      %p140 = scmp.eq.s32.totalorder %s11, 1
      %p141 = por %p139, %p140
      %p142 = scmp.ne.s32.totalorder %s134, %s137
      %p143 = scmp.eq.s32.totalorder %s11, 0
      %p144 = por %p142, %p143
      %p145 = scmp.ne.s32.totalorder %s134, %s137
      %p146 = scmp.eq.s32.totalorder %s16, 1
      %p147 = por %p145, %p146
      %p148 = scmp.ne.s32.totalorder %s137, %s138
      %p149 = scmp.eq.s32.totalorder %s16, 0
      %p150 = por %p148, %p149
      %p151 = scmp.ne.s32.totalorder %s137, %s138
      %p152 = scmp.eq.s32.totalorder %s17, 1
      %p153 = por %p151, %p152
      %p155 = scmp.ne.s32.totalorder %s138, %s154
      %p156 = scmp.eq.s32.totalorder %s17, 0
      %p157 = por %p155, %p156
      %p158 = scmp.le.s32.totalorder 1, %s11
      %p159 = scmp.lt.s32.totalorder %s11, 3
      %p160 = pnand %p158, %p159
      %p161 = pneg %p160
      // Predicated region
      $region9: #{residual_attention_block_ivlp.4} parent=5 // pred_check
        _
      $region10: #{residual_attention_block_ivlp.4} parent=5 // pred_check_branch
        %163 = sbr.rel (%p160) target = $region12
      $region11: #{residual_attention_block_ivlp.4} parent=5 // pred_region
        %s164 = ssub.s32 %s11, 1
        // Predicated region
        $region13: #{residual_attention_block_ivlp.4} parent=11 // pred_check
          %p165 = pneg %p103
        $region14: #{residual_attention_block_ivlp.4} parent=11 // pred_check_branch
          %167 = sbr.rel (%p165) target = $region16
        $region15: #{residual_attention_block_ivlp.4} parent=11 // pred_region
          %s168 = smul.u32 16, %s21
          %p169 = scmp.lt.s32.totalorder %s168, 15
          %s170 = scalar_select %p169, %s168, 15
          %s171 = smul.addr %s170, 4
          %s172 = scalar_lea.vmem %s2, %s171
          %s173 = smul.u32 16, %s21
        $region16: #{residual_attention_block_ivlp.4} parent=11 // pred_fallthru
          _
        // Predicated region
        $region17: #{residual_attention_block_ivlp.4} parent=11 // pred_check
          %p174 = pneg %p124
        $region18: #{residual_attention_block_ivlp.4} parent=11 // pred_check_branch
          %176 = sbr.rel (%p174) target = $region20
        $region19: #{residual_attention_block_ivlp.4} parent=11 // pred_region
          %s178 = ssub.s32 16, 16
          %179 = vsyncadd [#allocation5], %s178
          %s181 = sshll.u32 [#allocation4], 4
          %s182 = int_to_ptr.vmem [resolvable:$true] %s181
          %184 = dma.hbm_to_vmem [thread:$0]  %s3, 16, %s182, [#allocation5]
        $region20: #{residual_attention_block_ivlp.4} parent=11 // pred_fallthru
          _
      $region12: #{residual_attention_block_ivlp.4} parent=5 // pred_fallthru
        _
      %p185 = scmp.lt.s32.totalorder %s11, 2
      // Predicated region
      $region21: #{residual_attention_block_ivlp.4} parent=5 // pred_check
        %p186 = pneg %p185
      $region22: #{residual_attention_block_ivlp.4} parent=5 // pred_check_branch
        %188 = sbr.rel (%p186) target = $region24
      $region23: #{residual_attention_block_ivlp.4} parent=5 // pred_region
        // Predicated region
        $region25: #{residual_attention_block_ivlp.4} parent=23 // pred_check
          %p189 = pneg %p45
        $region26: #{residual_attention_block_ivlp.4} parent=23 // pred_check_branch
          %191 = sbr.rel (%p189) target = $region28
        $region27: #{residual_attention_block_ivlp.4} parent=23 // pred_region
          %s192 = sand.u32 %s35, 1
          %s193 = sand.u32 %s35, 1
          %s194 = smul.addr %s193, 24
          %s195 = scalar_lea.vmem [#allocation3], %s194
          %s196 = smul.addr %s18, 2
          %s197 = sadd.s32 %s19, %s196
          %s198 = smul.addr %s197, 4
          %s199 = scalar_lea.vmem %s0, %s198
          // Predicated region
          $region29: #{residual_attention_block_ivlp.4} parent=27 // pred_check
            _
          $region30: #{residual_attention_block_ivlp.4} parent=27 // pred_check_branch
            %201 = sbr.rel (0) target = $region32
          $region31: #{residual_attention_block_ivlp.4} parent=27 // pred_region
            // Predicated region
            $region33: #{residual_attention_block_ivlp.4} parent=31 // pred_check
              _
            $region34: #{residual_attention_block_ivlp.4} parent=31 // pred_check_branch
              %203 = sbr.rel target = $region36
            $region35: #{residual_attention_block_ivlp.4} parent=31 // pred_region
              // Predicated region
              $region48: #{residual_attention_block_ivlp.4} parent=35 // pred_check
                _
              $region49: #{residual_attention_block_ivlp.4} parent=35 // pred_check_branch
                %228 = sbr.rel (0) target = $region51
              $region50: #{residual_attention_block_ivlp.4} parent=35 // pred_region
                loop: start=0, step=1, limit=1
                $region52: #{residual_attention_block_ivlp.4} parent=50 // loop_pre_header
                  _
                $region53: #{residual_attention_block_ivlp.4} parent=50 // loop_header
                  %s230 = sphi 0, %s234
                  %p231 = scmp.ge.s32.totalorder %s230, 1
                  %s235 = sphi %s199, %s199
                  %s236 = sphi %s195, %s195
                $region54: #{residual_attention_block_ivlp.4} parent=50 // loop_header_branch
                  %233 = sbr.rel (%p231) target = $region58
                $region55: #{residual_attention_block_ivlp.4} parent=50 // loop_body
                  _
                $region56: #{residual_attention_block_ivlp.4} parent=50 // loop_footer
                  %s234 = sadd.s32 1, %s230
                $region57: #{residual_attention_block_ivlp.4} parent=50 // loop_footer_branch
                  %229 = sbr.rel target = $region53
                $region58: #{residual_attention_block_ivlp.4} parent=50 // loop_exit
                  _
                loop: start=0, step=1, limit=1
                $region59: #{residual_attention_block_ivlp.4} parent=50 // loop_pre_header
                  _
                $region60: #{residual_attention_block_ivlp.4} parent=50 // loop_header
                  %s239 = sphi 0, %s243
                  %p240 = scmp.ge.s32.totalorder %s239, 1
                  %s244 = sphi %s199, %s199
                  %s245 = sphi %s195, %s195
                $region61: #{residual_attention_block_ivlp.4} parent=50 // loop_header_branch
                  %242 = sbr.rel (%p240) target = $region65
                $region62: #{residual_attention_block_ivlp.4} parent=50 // loop_body
                  %v246 = vld [vmem:[%s244] sm:$0xf]
                  %247 = vst [vmem:[%s245] sm:$0xf] %v246
                  %v248 = vld [vmem:[%s244 + $0x4] sm:$0xf]
                  %249 = vst [vmem:[%s245 + $0x4] sm:$0xf] %v248
                  %v250 = vld [vmem:[%s244 + $0x10] sm:$0xf]
                  %251 = vst [vmem:[%s245 + $0x8] sm:$0xf] %v250
                  %v252 = vld [vmem:[%s244 + $0x14] sm:$0xf]
                  %253 = vst [vmem:[%s245 + $0xc] sm:$0xf] %v252
                  %v254 = vld [vmem:[%s244 + $0x20] sm:$0xf]
                  %255 = vst [vmem:[%s245 + $0x10] sm:$0xf] %v254
                  %v256 = vld [vmem:[%s244 + $0x24] sm:$0xf]
                  %257 = vst [vmem:[%s245 + $0x14] sm:$0xf] %v256
                $region63: #{residual_attention_block_ivlp.4} parent=50 // loop_footer
                  %s243 = sadd.s32 1, %s239
                $region64: #{residual_attention_block_ivlp.4} parent=50 // loop_footer_branch
                  %238 = sbr.rel target = $region60
                $region65: #{residual_attention_block_ivlp.4} parent=50 // loop_exit
                  _
              $region51: #{residual_attention_block_ivlp.4} parent=35 // pred_fallthru
                _
            $region36: #{residual_attention_block_ivlp.4} parent=31 // pred_fallthru
              _
            // Predicated region
            $region37: #{residual_attention_block_ivlp.4} parent=31 // pred_check
              _
            $region38: #{residual_attention_block_ivlp.4} parent=31 // pred_check_branch
              %205 = sbr.rel (0) target = $region40
            $region39: #{residual_attention_block_ivlp.4} parent=31 // pred_region
              loop: start=0, step=1, limit=1
              $region41: #{residual_attention_block_ivlp.4} parent=39 // loop_pre_header
                _
              $region42: #{residual_attention_block_ivlp.4} parent=39 // loop_header
                %s208 = sphi 0, %s212
                %p209 = scmp.ge.s32.totalorder %s208, 1
                %s213 = sphi %s199, %s199
                %s214 = sphi %s195, %s195
              $region43: #{residual_attention_block_ivlp.4} parent=39 // loop_header_branch
                %211 = sbr.rel (%p209) target = $region47
              $region44: #{residual_attention_block_ivlp.4} parent=39 // loop_body
                %v215 = vld [vmem:[%s213] sm:$0xf]
                %216 = vst [vmem:[%s214] sm:$0xf] %v215
                %v217 = vld [vmem:[%s213 + $0x4] sm:$0xf]
                %218 = vst [vmem:[%s214 + $0x4] sm:$0xf] %v217
                %v219 = vld [vmem:[%s213 + $0x10] sm:$0xf]
                %220 = vst [vmem:[%s214 + $0x8] sm:$0xf] %v219
                %v221 = vld [vmem:[%s213 + $0x14] sm:$0xf]
                %222 = vst [vmem:[%s214 + $0xc] sm:$0xf] %v221
                %v223 = vld [vmem:[%s213 + $0x20] sm:$0xf]
                %224 = vst [vmem:[%s214 + $0x10] sm:$0xf] %v223
                %v225 = vld [vmem:[%s213 + $0x24] sm:$0xf]
                %226 = vst [vmem:[%s214 + $0x14] sm:$0xf] %v225
              $region45: #{residual_attention_block_ivlp.4} parent=39 // loop_footer
                %s212 = sadd.s32 1, %s208
              $region46: #{residual_attention_block_ivlp.4} parent=39 // loop_footer_branch
                %207 = sbr.rel target = $region42
              $region47: #{residual_attention_block_ivlp.4} parent=39 // loop_exit
                _
            $region40: #{residual_attention_block_ivlp.4} parent=31 // pred_fallthru
              _
          $region32: #{residual_attention_block_ivlp.4} parent=27 // pred_fallthru
            _
          %258 = vnop
        $region28: #{residual_attention_block_ivlp.4} parent=23 // pred_fallthru
          _
        // Predicated region
        $region66: #{residual_attention_block_ivlp.4} parent=23 // pred_check
          %p259 = pneg %p71
        $region67: #{residual_attention_block_ivlp.4} parent=23 // pred_check_branch
          %261 = sbr.rel (%p259) target = $region69
        $region68: #{residual_attention_block_ivlp.4} parent=23 // pred_region
          %p262 = scmp.lt.s32.totalorder %s18, 1
          %s263 = scalar_select %p262, %s18, 1
          %s264 = smul.addr %s263, 2
          %s265 = smul.addr %s264, 8
          %s266 = scalar_lea.vmem %s1, %s265
        $region69: #{residual_attention_block_ivlp.4} parent=23 // pred_fallthru
          _
      $region24: #{residual_attention_block_ivlp.4} parent=5 // pred_fallthru
        _
      %p267 = scmp.le.s32.totalorder 1, %s11
      %p268 = scmp.lt.s32.totalorder %s11, 3
      %p269 = pnand %p267, %p268
      %p270 = pneg %p269
      // Predicated region
      $region70: #{residual_attention_block_ivlp.4} parent=5 // pred_check
        _
      $region71: #{residual_attention_block_ivlp.4} parent=5 // pred_check_branch
        %272 = sbr.rel (%p269) target = $region73
      $region72: #{residual_attention_block_ivlp.4} parent=5 // pred_region
        %s273 = ssub.s32 %s11, 1
        %s274 = sand.u32 %s38, 1
        %s275 = sand.u32 %s38, 1
        %s276 = smul.addr %s275, 24
        %s277 = scalar_lea.vmem [#allocation3], %s276
        // Predicated region
        $region74: #{residual_attention_block_ivlp.4} parent=72 // pred_check
          %p278 = pneg %p51
        $region75: #{residual_attention_block_ivlp.4} parent=72 // pred_check_branch
          %280 = sbr.rel (%p278) target = $region77
        $region76: #{residual_attention_block_ivlp.4} parent=72 // pred_region
          _
        $region77: #{residual_attention_block_ivlp.4} parent=72 // pred_fallthru
          _
        // Predicated region
        $region78: #{residual_attention_block_ivlp.4} parent=72 // pred_check
          %p281 = pneg %p124
        $region79: #{residual_attention_block_ivlp.4} parent=72 // pred_check_branch
          %283 = sbr.rel (%p281) target = $region81
        $region80: #{residual_attention_block_ivlp.4} parent=72 // pred_region
          %284 = dma.done [#allocation5], 16
        $region81: #{residual_attention_block_ivlp.4} parent=72 // pred_fallthru
          _
        %s285 = sand.u32 %s38, 1
        %s286 = sand.u32 %s38, 1
        %s287 = smul.addr %s286, 24
        %s288 = scalar_lea.vmem [#allocation3], %s287
        %p289 = pneg %p51
        %p290 = pneg %p48
        %p291 = scmp.lt.s32.totalorder %s20, 1
        %s292 = scalar_select %p291, %s20, 1
        %s293 = smul.addr %s292, 2
        %s294 = smul.addr %s293, 8
        %s295 = scalar_lea.vmem %s1, %s294
        %p296 = pneg %p77
        %p297 = pneg %p74
        %s298 = smul.u32 16, %s21
        %p299 = scmp.lt.s32.totalorder %s298, 15
        %s300 = scalar_select %p299, %s298, 15
        %s301 = smul.addr %s300, 4
        %s302 = scalar_lea.vmem %s2, %s301
        %p303 = pneg %p103
        %p304 = pneg %p100
        %p305 = pneg %p124
        %p306 = pneg %p121
        %p307 = pneg %p150
        %p308 = pneg %p147
        %p309 = scmp.lt.s32.totalorder %s20, 1
        %s310 = scalar_select %p309, %s20, 1
        %s311 = smul.addr %s310, 2
        %s312 = smul.addr %s311, 8
        %s313 = scalar_lea.vmem %s4, %s312
        %p314 = scmp.lt.s32.totalorder %s20, 1
        %s315 = scalar_select %p314, %s20, 1
        %s316 = smul.addr %s315, 2
        %s317 = smul.addr %s316, 8
        %s318 = scalar_lea.vmem %s1, %s317
        %s319 = smul.u32 16, %s21
        %p320 = scmp.lt.s32.totalorder %s319, 15
        %s321 = scalar_select %p320, %s319, 15
        %s322 = smul.addr %s321, 4
        %s323 = scalar_lea.vmem %s2, %s322
        %s324 = smul.u32 16, %s21
        %p325 = scmp.lt.s32.totalorder %s20, 1
        %s326 = scalar_select %p325, %s20, 1
        %s327 = smul.addr %s326, 2
        %s328 = smul.addr %s327, 8
        %s329 = scalar_lea.vmem %s4, %s328
        %p331 = scmp.eq.s32.totalorder %s21, 0
        // Predicated region
        $region82: #{residual_attention_block_ivlp.4} parent=72 // pred_check
          %p332 = pneg %p331
        $region83: #{residual_attention_block_ivlp.4} parent=72 // pred_check_branch
          %334 = sbr.rel (%p332) target = $region85
        $region84: #{residual_attention_block_ivlp.4} parent=72 // pred_region
          %v335 = vld [vmem:[%s318] sm:$0xff]
          %v336 = vld [vmem:[%s318 + $0x8] sm:$0xff]
          %v337 = vld [vmem:[#allocation4] sm:$0x1]
          %v339 = vlaneseq
          %v340 = vshrl.u32 %v339, 7
          %v341 = vsub.s32 0, %v340
          %v342 = vrot.slane %v337, %v341
          %v344 = vadd.f32 %v335, %v342
          %v345 = vadd.f32 %v336, %v342
          %346 = vst [vmem:[#allocation2] sm:$0xff] %v344
          %347 = vst [vmem:[#allocation2 + $0x8] sm:$0xff] %v345
        $region85: #{residual_attention_block_ivlp.4} parent=72 // pred_fallthru
          _
        %v348 = vld [vmem:[%s277] sm:$0xf]
        %v349 = vld [vmem:[%s277 + $0x4] sm:$0xf]
        %s350 = scalar_lea.vmem %s277, 8 [#allocation3]
        %v351 = vld [vmem:[%s350] sm:$0xf]
        %v352 = vld [vmem:[%s350 + $0x4] sm:$0xf]
        %s353 = scalar_lea.vmem %s277, 16 [#allocation3]
        %v354 = vld [vmem:[%s353] sm:$0xf]
        %v355 = vld [vmem:[%s353 + $0x4] sm:$0xf]
        %v358 = vunpack.c.l.b16 %v348
        %v359 = vunpack.c.l.b16 %v349
        %v360 = vpack.c.b16 %v359, %v358
        %v363 = vunpack.c.l.b16 %v351
        %v364 = vunpack.c.l.b16 %v352
        %v365 = vpack.c.b16 %v364, %v363
        %vm366 = vcmask 523264
        %v368 = vsel %vm366, %v360, 0
        %v371 = vsel %vm366, %v365, 0
        %373 = vmatprep.subr.bf16.mxu0 0
        %374 = vmatpush1.bf16.xpose.msra.mxu0 %v371
        %375 = vmatprep.subr.bf16.mxu0 0
        %376 = vmatpush1.bf16.xpose.msra.mxu0 0
        %377 = vmatprep.subr.bf16.mxu0 0
        %378 = vmatpush1.bf16.xpose.msra.mxu0 0
        %379 = vmatprep.subr.bf16.mxu0 0
        %380 = vmatpush1.bf16.xpose.msra.mxu0 0
        %381 = vmatprep.subr.bf16.mxu0 0
        %382 = vmatpush1.bf16.xpose.msra.mxu0 0
        %383 = vmatprep.subr.bf16.mxu0 0
        %384 = vmatpush1.bf16.xpose.msra.mxu0 0
        %385 = vmatprep.subr.bf16.mxu0 0
        %386 = vmatpush1.bf16.xpose.msra.mxu0 0
        %387 = vmatprep.subr.bf16.mxu0 0
        %388 = vmatpush1.bf16.xpose.msra.mxu0 0
        %389 = vmatprep.subr.bf16.mxu0 0
        %390 = vmatpush1.bf16.xpose.msra.mxu0 0
        %391 = vmatprep.subr.bf16.mxu0 0
        %392 = vmatpush1.bf16.xpose.msra.mxu0 0
        %393 = vmatprep.subr.bf16.mxu0 0
        %394 = vmatpush1.bf16.xpose.msra.mxu0 0
        %395 = vmatprep.subr.bf16.mxu0 0
        %396 = vmatpush1.bf16.xpose.msra.mxu0 0
        %397 = vmatprep.subr.bf16.mxu0 0
        %398 = vmatpush1.bf16.xpose.msra.mxu0 0
        %399 = vmatprep.subr.bf16.mxu0 0
        %400 = vmatpush1.bf16.xpose.msra.mxu0 0
        %401 = vmatprep.subr.bf16.mxu0 0
        %402 = vmatpush1.bf16.xpose.msra.mxu0 0
        %403 = vmatprep.subr.bf16.mxu0 0
        %404 = vmatpush1.bf16.xpose.msra.mxu0 0
        %405 = vmatprep.mubr.bf16.mxu0 0
        %406 = vmatmul.mubr.bf16.gmra.mrb[0].mxu0 %v368
        %v407 = vpop.f32.mrb[0].mxu0
        %v408 = vadd.f32 0.0, %v407
        %v409 = vpop.f32.mrb[0].mxu0
        %v410 = vpop.f32.mrb[0].mxu0
        %v411 = vadd.f32 0.0, %v410
        %v412 = vpop.f32.mrb[0].mxu0
        %413 = vdwg.mxu0
        %v414 = vmul.f32 %v408, 0.125
        %v415 = vmul.f32 %v411, 0.125
        %vm416 = vcmask 130048
        %v417 = vsel %vm416, %v414, -inf
        %418 = vmax.xlane.f32.xlu0 %v417
        %v419 = vpop.xlane.xlu0 %418
        %v420 = vsel %vm416, %v415, -inf
        %421 = vmax.xlane.f32.xlu0 %v420
        %v422 = vpop.xlane.xlu0 %421
        %v423 = vsub.f32 %v414, %v419
        %v424 = vsub.f32 %v415, %v422
        %v425 = vmul.f32 %v423, 1.442695
        %v426 = vpow.pop %v425
        %v427 = vmul.f32 %v424, 1.442695
        %v428 = vpow.pop %v427
        %v429 = vsel %vm416, %v426, 0.0
        %430 = vadd.xlane.f32.xlu0 %v429
        %v431 = vpop.xlane.xlu0 %430
        %v432 = vsel %vm416, %v428, 0.0
        %433 = vadd.xlane.f32.xlu0 %v432
        %v434 = vpop.xlane.xlu0 %433
        %v435 = vrcp.pop %v431
        %v436 = vrcp.pop %v434
        %v437 = vmul.f32 %v426, %v435
        %v438 = vmul.f32 %v428, %v436
        %v439 = vpack.c.bf16 %v438, %v437
        %v442 = vunpack.c.l.b16 %v354
        %v443 = vunpack.c.l.b16 %v355
        %v444 = vpack.c.b16 %v443, %v442
        %v447 = vsel %vm416, %v439, 0
        %449 = vmatprep.subr.bf16.mxu0 0
        %450 = vmatpush1.bf16.msra.mxu0 %v444
        %451 = vmatprep.subr.bf16.mxu0 0
        %452 = vmatpush1.bf16.msra.mxu0 0
        %453 = vmatprep.subr.bf16.mxu0 0
        %454 = vmatpush1.bf16.msra.mxu0 0
        %455 = vmatprep.subr.bf16.mxu0 0
        %456 = vmatpush1.bf16.msra.mxu0 0
        %457 = vmatprep.subr.bf16.mxu0 0
        %458 = vmatpush1.bf16.msra.mxu0 0
        %459 = vmatprep.subr.bf16.mxu0 0
        %460 = vmatpush1.bf16.msra.mxu0 0
        %461 = vmatprep.subr.bf16.mxu0 0
        %462 = vmatpush1.bf16.msra.mxu0 0
        %463 = vmatprep.subr.bf16.mxu0 0
        %464 = vmatpush1.bf16.msra.mxu0 0
        %465 = vmatprep.subr.bf16.mxu0 0
        %466 = vmatpush1.bf16.msra.mxu0 0
        %467 = vmatprep.subr.bf16.mxu0 0
        %468 = vmatpush1.bf16.msra.mxu0 0
        %469 = vmatprep.subr.bf16.mxu0 0
        %470 = vmatpush1.bf16.msra.mxu0 0
        %471 = vmatprep.subr.bf16.mxu0 0
        %472 = vmatpush1.bf16.msra.mxu0 0
        %473 = vmatprep.subr.bf16.mxu0 0
        %474 = vmatpush1.bf16.msra.mxu0 0
        %475 = vmatprep.subr.bf16.mxu0 0
        %476 = vmatpush1.bf16.msra.mxu0 0
        %477 = vmatprep.subr.bf16.mxu0 0
        %478 = vmatpush1.bf16.msra.mxu0 0
        %479 = vmatprep.subr.bf16.mxu0 0
        %480 = vmatpush1.bf16.msra.mxu0 0
        %481 = vmatprep.mubr.bf16.mxu0 0
        %482 = vmatmul.mubr.bf16.gmra.mrb[0].mxu0 %v447
        %v483 = vpop.f32.mrb[0].mxu0
        %v484 = vadd.f32 0.0, %v483
        %v485 = vpop.f32.mrb[0].mxu0
        %v486 = vpop.f32.mrb[0].mxu0
        %v487 = vadd.f32 0.0, %v486
        %v488 = vpop.f32.mrb[0].mxu0
        %489 = vdwg.mxu0
        %490 = vrot.lane.b32.xlu0 %v360, 64
        %v491 = vpop.permute.xlu0 %490
        %492 = vrot.lane.b32.xlu0 %v365, 64
        %v493 = vpop.permute.xlu0 %492
        %v495 = vsel %vm366, %v491, 0
        %v498 = vsel %vm366, %v493, 0
        %500 = vmatprep.subr.bf16.mxu0 0
        %501 = vmatpush1.bf16.xpose.msra.mxu0 %v498
        %502 = vmatprep.subr.bf16.mxu0 0
        %503 = vmatpush1.bf16.xpose.msra.mxu0 0
        %504 = vmatprep.subr.bf16.mxu0 0
        %505 = vmatpush1.bf16.xpose.msra.mxu0 0
        %506 = vmatprep.subr.bf16.mxu0 0
        %507 = vmatpush1.bf16.xpose.msra.mxu0 0
        %508 = vmatprep.subr.bf16.mxu0 0
        %509 = vmatpush1.bf16.xpose.msra.mxu0 0
        %510 = vmatprep.subr.bf16.mxu0 0
        %511 = vmatpush1.bf16.xpose.msra.mxu0 0
        %512 = vmatprep.subr.bf16.mxu0 0
        %513 = vmatpush1.bf16.xpose.msra.mxu0 0
        %514 = vmatprep.subr.bf16.mxu0 0
        %515 = vmatpush1.bf16.xpose.msra.mxu0 0
        %516 = vmatprep.subr.bf16.mxu0 0
        %517 = vmatpush1.bf16.xpose.msra.mxu0 0
        %518 = vmatprep.subr.bf16.mxu0 0
        %519 = vmatpush1.bf16.xpose.msra.mxu0 0
        %520 = vmatprep.subr.bf16.mxu0 0
        %521 = vmatpush1.bf16.xpose.msra.mxu0 0
        %522 = vmatprep.subr.bf16.mxu0 0
        %523 = vmatpush1.bf16.xpose.msra.mxu0 0
        %524 = vmatprep.subr.bf16.mxu0 0
        %525 = vmatpush1.bf16.xpose.msra.mxu0 0
        %526 = vmatprep.subr.bf16.mxu0 0
        %527 = vmatpush1.bf16.xpose.msra.mxu0 0
        %528 = vmatprep.subr.bf16.mxu0 0
        %529 = vmatpush1.bf16.xpose.msra.mxu0 0
        %530 = vmatprep.subr.bf16.mxu0 0
        %531 = vmatpush1.bf16.xpose.msra.mxu0 0
        %532 = vmatprep.mubr.bf16.mxu0 0
        %533 = vmatmul.mubr.bf16.gmra.mrb[0].mxu0 %v495
        %v534 = vpop.f32.mrb[0].mxu0
        %v535 = vadd.f32 0.0, %v534
        %v536 = vpop.f32.mrb[0].mxu0
        %v537 = vpop.f32.mrb[0].mxu0
        %v538 = vadd.f32 0.0, %v537
        %v539 = vpop.f32.mrb[0].mxu0
        %540 = vdwg.mxu0
        %v541 = vmul.f32 %v535, 0.125
        %v542 = vmul.f32 %v538, 0.125
        %v543 = vsel %vm416, %v541, -inf
        %544 = vmax.xlane.f32.xlu0 %v543
        %v545 = vpop.xlane.xlu0 %544
        %v546 = vsel %vm416, %v542, -inf
        %547 = vmax.xlane.f32.xlu0 %v546
        %v548 = vpop.xlane.xlu0 %547
        %v549 = vsub.f32 %v541, %v545
        %v550 = vsub.f32 %v542, %v548
        %v551 = vmul.f32 %v549, 1.442695
        %v552 = vpow.pop %v551
        %v553 = vmul.f32 %v550, 1.442695
        %v554 = vpow.pop %v553
        %v555 = vsel %vm416, %v552, 0.0
        %556 = vadd.xlane.f32.xlu0 %v555
        %v557 = vpop.xlane.xlu0 %556
        %v558 = vsel %vm416, %v554, 0.0
        %559 = vadd.xlane.f32.xlu0 %v558
        %v560 = vpop.xlane.xlu0 %559
        %v561 = vrcp.pop %v557
        %v562 = vrcp.pop %v560
        %v563 = vmul.f32 %v552, %v561
        %v564 = vmul.f32 %v554, %v562
        %v565 = vpack.c.bf16 %v564, %v563
        %566 = vrot.lane.b32.xlu0 %v444, 64
        %v567 = vpop.permute.xlu0 %566
        %v570 = vsel %vm416, %v565, 0
        %572 = vmatprep.subr.bf16.mxu0 0
        %573 = vmatpush1.bf16.msra.mxu0 %v567
        %574 = vmatprep.subr.bf16.mxu0 0
        %575 = vmatpush1.bf16.msra.mxu0 0
        %576 = vmatprep.subr.bf16.mxu0 0
        %577 = vmatpush1.bf16.msra.mxu0 0
        %578 = vmatprep.subr.bf16.mxu0 0
        %579 = vmatpush1.bf16.msra.mxu0 0
        %580 = vmatprep.subr.bf16.mxu0 0
        %581 = vmatpush1.bf16.msra.mxu0 0
        %582 = vmatprep.subr.bf16.mxu0 0
        %583 = vmatpush1.bf16.msra.mxu0 0
        %584 = vmatprep.subr.bf16.mxu0 0
        %585 = vmatpush1.bf16.msra.mxu0 0
        %586 = vmatprep.subr.bf16.mxu0 0
        %587 = vmatpush1.bf16.msra.mxu0 0
        %588 = vmatprep.subr.bf16.mxu0 0
        %589 = vmatpush1.bf16.msra.mxu0 0
        %590 = vmatprep.subr.bf16.mxu0 0
        %591 = vmatpush1.bf16.msra.mxu0 0
        %592 = vmatprep.subr.bf16.mxu0 0
        %593 = vmatpush1.bf16.msra.mxu0 0
        %594 = vmatprep.subr.bf16.mxu0 0
        %595 = vmatpush1.bf16.msra.mxu0 0
        %596 = vmatprep.subr.bf16.mxu0 0
        %597 = vmatpush1.bf16.msra.mxu0 0
        %598 = vmatprep.subr.bf16.mxu0 0
        %599 = vmatpush1.bf16.msra.mxu0 0
        %600 = vmatprep.subr.bf16.mxu0 0
        %601 = vmatpush1.bf16.msra.mxu0 0
        %602 = vmatprep.subr.bf16.mxu0 0
        %603 = vmatpush1.bf16.msra.mxu0 0
        %604 = vmatprep.mubr.bf16.mxu0 0
        %605 = vmatmul.mubr.bf16.gmra.mrb[0].mxu0 %v570
        %v606 = vpop.f32.mrb[0].mxu0
        %v607 = vadd.f32 0.0, %v606
        %v608 = vpop.f32.mrb[0].mxu0
        %v609 = vpop.f32.mrb[0].mxu0
        %v610 = vadd.f32 0.0, %v609
        %v611 = vpop.f32.mrb[0].mxu0
        %612 = vdwg.mxu0
        %615 = vrot.lane.b32.xlu0 %v607, 64
        %v616 = vpop.permute.xlu0 %615
        %617 = vrot.lane.b32.xlu0 %v610, 64
        %v618 = vpop.permute.xlu0 %617
        %v621 = vsel %vm366, %v484, %v616
        %v622 = vsel %vm366, %v487, %v618
        %v623 = vld [vmem:[#allocation2] sm:$0xff]
        %v624 = vld [vmem:[#allocation2 + $0x8] sm:$0xff]
        %v625 = vpack.c.bf16 %v622, %v621
        %v626 = vld [vmem:[%s323] sm:$0xf]
        %v627 = vld [vmem:[%s323 + $0x4] sm:$0xf]
        %v628 = vld [vmem:[%s323 + $0x8] sm:$0xf]
        %v629 = vld [vmem:[%s323 + $0xc] sm:$0xf]
        %v630 = vld [vmem:[%s323 + $0x10] sm:$0xf]
        %v631 = vld [vmem:[%s323 + $0x14] sm:$0xf]
        %v632 = vld [vmem:[%s323 + $0x18] sm:$0xf]
        %v633 = vld [vmem:[%s323 + $0x1c] sm:$0xf]
        %v634 = vld [vmem:[%s323 + $0x20] sm:$0xf]
        %v635 = vld [vmem:[%s323 + $0x24] sm:$0xf]
        %v636 = vld [vmem:[%s323 + $0x28] sm:$0xf]
        %v637 = vld [vmem:[%s323 + $0x2c] sm:$0xf]
        %v638 = vld [vmem:[%s323 + $0x30] sm:$0xf]
        %v639 = vld [vmem:[%s323 + $0x34] sm:$0xf]
        %v640 = vld [vmem:[%s323 + $0x38] sm:$0xf]
        %v641 = vld [vmem:[%s323 + $0x3c] sm:$0xf]
        %v658 = vunpack.c.l.b16 %v626
        %v659 = vunpack.c.l.b16 %v627
        %v660 = vunpack.c.l.b16 %v628
        %v661 = vunpack.c.l.b16 %v629
        %v662 = vunpack.c.l.b16 %v630
        %v663 = vunpack.c.l.b16 %v631
        %v664 = vunpack.c.l.b16 %v632
        %v665 = vunpack.c.l.b16 %v633
        %v666 = vunpack.c.l.b16 %v634
        %v667 = vunpack.c.l.b16 %v635
        %v668 = vunpack.c.l.b16 %v636
        %v669 = vunpack.c.l.b16 %v637
        %v670 = vunpack.c.l.b16 %v638
        %v671 = vunpack.c.l.b16 %v639
        %v672 = vunpack.c.l.b16 %v640
        %v673 = vunpack.c.l.b16 %v641
        %v674 = vpack.c.b16 %v659, %v658
        %v675 = vpack.c.b16 %v661, %v660
        %v676 = vpack.c.b16 %v663, %v662
        %v677 = vpack.c.b16 %v665, %v664
        %v678 = vpack.c.b16 %v667, %v666
        %v679 = vpack.c.b16 %v669, %v668
        %v680 = vpack.c.b16 %v671, %v670
        %v681 = vpack.c.b16 %v673, %v672
        %690 = vmatprep.subr.bf16.mxu0 0
        %691 = vmatpush1.bf16.msra.mxu0 %v674
        %692 = vmatprep.subr.bf16.mxu0 0
        %693 = vmatpush1.bf16.msra.mxu0 %v675
        %694 = vmatprep.subr.bf16.mxu0 0
        %695 = vmatpush1.bf16.msra.mxu0 %v676
        %696 = vmatprep.subr.bf16.mxu0 0
        %697 = vmatpush1.bf16.msra.mxu0 %v677
        %698 = vmatprep.subr.bf16.mxu0 0
        %699 = vmatpush1.bf16.msra.mxu0 %v678
        %700 = vmatprep.subr.bf16.mxu0 0
        %701 = vmatpush1.bf16.msra.mxu0 %v679
        %702 = vmatprep.subr.bf16.mxu0 0
        %703 = vmatpush1.bf16.msra.mxu0 %v680
        %704 = vmatprep.subr.bf16.mxu0 0
        %705 = vmatpush1.bf16.msra.mxu0 %v681
        %706 = vmatprep.subr.bf16.mxu0 0
        %707 = vmatpush1.bf16.msra.mxu0 0
        %708 = vmatprep.subr.bf16.mxu0 0
        %709 = vmatpush1.bf16.msra.mxu0 0
        %710 = vmatprep.subr.bf16.mxu0 0
        %711 = vmatpush1.bf16.msra.mxu0 0
        %712 = vmatprep.subr.bf16.mxu0 0
        %713 = vmatpush1.bf16.msra.mxu0 0
        %714 = vmatprep.subr.bf16.mxu0 0
        %715 = vmatpush1.bf16.msra.mxu0 0
        %716 = vmatprep.subr.bf16.mxu0 0
        %717 = vmatpush1.bf16.msra.mxu0 0
        %718 = vmatprep.subr.bf16.mxu0 0
        %719 = vmatpush1.bf16.msra.mxu0 0
        %720 = vmatprep.subr.bf16.mxu0 0
        %721 = vmatpush1.bf16.msra.mxu0 0
        %722 = vmatprep.mubr.bf16.mxu0 0
        %723 = vmatmul.mubr.bf16.gmra.mrb[0].mxu0 %v625
        %v724 = vpop.f32.mrb[0].mxu0
        %v725 = vadd.f32 0.0, %v724
        %v726 = vpop.f32.mrb[0].mxu0
        %v727 = vpop.f32.mrb[0].mxu0
        %v728 = vadd.f32 0.0, %v727
        %v729 = vpop.f32.mrb[0].mxu0
        %730 = vdwg.mxu0
        %v731 = vadd.f32 %v623, %v725
        %v732 = vadd.f32 %v624, %v728
        %733 = vst [vmem:[#allocation2] sm:$0xff] %v731
        %734 = vst [vmem:[#allocation2 + $0x8] sm:$0xff] %v732
        // Predicated region
        $region86: #{residual_attention_block_ivlp.4} parent=72 // pred_check
          %p735 = pneg %p331
        $region87: #{residual_attention_block_ivlp.4} parent=72 // pred_check_branch
          %737 = sbr.rel (%p735) target = $region89
        $region88: #{residual_attention_block_ivlp.4} parent=72 // pred_region
          %v738 = vld [vmem:[#allocation2] sm:$0xff]
          %v739 = vld [vmem:[#allocation2 + $0x8] sm:$0xff]
          %740 = vst [vmem:[%s329] sm:$0xff] %v738
          %741 = vst [vmem:[%s329 + $0x8] sm:$0xff] %v739
        $region89: #{residual_attention_block_ivlp.4} parent=72 // pred_fallthru
          _
        %p742 = scmp.lt.s32.totalorder %s20, 1
        %s743 = scalar_select %p742, %s20, 1
        %s744 = smul.addr %s743, 2
        %s745 = smul.addr %s744, 8
        %s746 = scalar_lea.vmem %s4, %s745
        // Predicated region
        $region90: #{residual_attention_block_ivlp.4} parent=72 // pred_check
          %p747 = pneg %p147
        $region91: #{residual_attention_block_ivlp.4} parent=72 // pred_check_branch
          %749 = sbr.rel (%p747) target = $region93
        $region92: #{residual_attention_block_ivlp.4} parent=72 // pred_region
          _
        $region93: #{residual_attention_block_ivlp.4} parent=72 // pred_fallthru
          _
      $region73: #{residual_attention_block_ivlp.4} parent=5 // pred_fallthru
        _
      %p750 = scmp.le.s32.totalorder 2, %s11
      // Predicated region
      $region94: #{residual_attention_block_ivlp.4} parent=5 // pred_check
        %p751 = pneg %p750
      $region95: #{residual_attention_block_ivlp.4} parent=5 // pred_check_branch
        %753 = sbr.rel (%p751) target = $region97
      $region96: #{residual_attention_block_ivlp.4} parent=5 // pred_region
        %s754 = ssub.s32 %s11, 2
        // Predicated region
        $region98: #{residual_attention_block_ivlp.4} parent=96 // pred_check
          %p755 = pneg %p153
        $region99: #{residual_attention_block_ivlp.4} parent=96 // pred_check_branch
          %757 = sbr.rel (%p755) target = $region101
        $region100: #{residual_attention_block_ivlp.4} parent=96 // pred_region
          %p758 = scmp.lt.s32.totalorder %s22, 1
          %s759 = scalar_select %p758, %s22, 1
          %s760 = smul.addr %s759, 2
          %s761 = smul.addr %s760, 8
          %s762 = scalar_lea.vmem %s4, %s761
        $region101: #{residual_attention_block_ivlp.4} parent=96 // pred_fallthru
          _
      $region97: #{residual_attention_block_ivlp.4} parent=5 // pred_fallthru
        _
    $region6: #{residual_attention_block_ivlp.4} parent=1 // loop_footer
      %s15 = sadd.s32 1, %s11
    $region7: #{residual_attention_block_ivlp.4} parent=1 // loop_footer_branch
      %10 = sbr.rel target = $region3
    $region8: #{residual_attention_block_ivlp.4} parent=1 // loop_exit
      _
    %763 = vsyncpa [#allocation5], 1
    %s764 = scalar_lea.sflag [#allocation5], 1
    %765 = vsyncpa %s764, 1

</llo_original>
